<compile_context>
chip_gen: v7x
topology: tpu7x:2x2x1
jax: 0.10.0
libtpu: 0.0.40
codegen_flags: <defaults>
</compile_context>

<pallas_src>
import functools

import numpy as np
import jax
import jax.numpy as jnp
from jax.experimental import pallas as pl
from jax.experimental.pallas import tpu as pltpu

FILTER = 5
STRIDE = 2
PAD = 2          # 'same'-style padding for 5x5 stride-2


def _conv_out_dim(d):
    return (d + 2 * PAD - FILTER) // STRIDE + 1


# ----------------------------------------------------------------------------
# Host-side (init-time) weight prep: fold zero-padding and the stride-2 gather
# into small constant matrices so the in-kernel conv is a pure chain of 2-D
# matmuls (no strided slicing, no reshapes, no scratch buffers in the kernel).
# ----------------------------------------------------------------------------
def _build_row_select(H):
    """RS[i, oh, h] = 1  iff  h == STRIDE*oh + i - PAD  (rows outside -> zeros)."""
    OH = _conv_out_dim(H)
    rs = np.zeros((FILTER, OH, H), np.float32)
    for i in range(FILTER):
        for oh in range(OH):
            h = STRIDE * oh + i - PAD
            if 0 <= h < H:
                rs[i, oh, h] = 1.0
    return jnp.asarray(rs)


def _build_col_weights(wconv, W):
    """WB[i, w*Cin + c, ow*Cout + co] = wconv[i, j, c, co] with j = w + PAD - STRIDE*ow."""
    wc = np.asarray(wconv)                       # [5, 5, Cin, Cout]
    k, _, cin, cout = wc.shape
    OW = _conv_out_dim(W)
    wb = np.zeros((k, W * cin, OW * cout), np.float32)
    for i in range(k):
        for ow in range(OW):
            for j in range(k):
                w = STRIDE * ow + j - PAD
                if 0 <= w < W:
                    wb[i, w * cin:(w + 1) * cin, ow * cout:(ow + 1) * cout] = wc[i, j]
    return jnp.asarray(wb)


# ----------------------------------------------------------------------------
# Fused kernel: one grid step == one sample through the whole encoder.
# ----------------------------------------------------------------------------
def _encoder_kernel(*refs, n_conv):
    f32 = jnp.float32
    x_ref, y_ref = refs[0], refs[1]
    conv_refs = refs[2:2 + 3 * n_conv]
    (fcw_ref, fcb_ref, m1wa_ref, m1wb_ref, m1b_ref,
     m2w_ref, m2b_ref) = refs[2 + 3 * n_conv:-1]
    o_ref = refs[-1]

    def conv_relu(act, rs_ref, wb_ref, bt_ref):
        acc = None
        for i in range(FILTER):
            rows = jnp.dot(rs_ref[i], act, preferred_element_type=f32)    # [OH, W*Cin]
            part = jnp.dot(rows, wb_ref[i], preferred_element_type=f32)   # [OH, OW*Cout]
            acc = part if acc is None else acc + part
        return jnp.maximum(acc + bt_ref[...], 0.0)

    # ConvNet: 3x (5x5 conv, stride 2, padding 2) + ReLU, lane-dense [H, W*C]
    act = x_ref[0]                                                        # [H, W*Cin]
    for l in range(n_conv):
        rs_ref, wb_ref, bt_ref = conv_refs[3 * l:3 * l + 3]
        act = conv_relu(act, rs_ref, wb_ref, bt_ref)

    # Flatten + FC(dimH) + ReLU (flatten expressed as per-row matmul sum; the
    # FC weight is pre-reshaped on host to [OH, OW*C, dimH] in (h, w, c) order).
    acc = None
    for h in range(act.shape[0]):
        t = jnp.dot(act[h:h + 1, :], fcw_ref[h], preferred_element_type=f32)
        acc = t if acc is None else acc + t
    conv_out = jnp.maximum(acc + fcb_ref[...], 0.0)                       # [1, dimH]

    # enc_mlp layer 0 (ReLU): concat([conv_out, y]) @ W  ==  two fused dots
    z = jnp.dot(conv_out, m1wa_ref[...], preferred_element_type=f32)
    z = z + jnp.dot(y_ref[0], m1wb_ref[...], preferred_element_type=f32)
    z = jnp.maximum(z + m1b_ref[...], 0.0)                                # [1, dimH]

    # enc_mlp layer 1 (linear) -> (mu | log_sigma) packed in one row
    out = jnp.dot(z, m2w_ref[...], preferred_element_type=f32) + m2b_ref[...]
    o_ref[0] = out.astype(o_ref.dtype)


def _const_index_map(*_, ndim):
    return (0,) * ndim


_WEIGHT_KEYS = ["rs1", "wb1", "bt1", "rs2", "wb2", "bt2", "rs3", "wb3", "bt3",
                "fcw3", "fcb", "m1wa", "m1wb", "m1b", "m2w", "m2b"]


@jax.jit
def _forward(params, x_nchw, y):
    B, C, H, W = x_nchw.shape
    dimY = y.shape[1]
    # NCHW -> lane-dense [B, H, W*C] (layout prep only; all compute is in-kernel)
    x3 = jnp.transpose(x_nchw, (0, 2, 3, 1)).reshape(B, H, W * C).astype(jnp.float32)
    y3 = y.reshape(B, 1, dimY).astype(jnp.float32)

    weights = [params[k] for k in _WEIGHT_KEYS]
    dim_out = params["m2b"].shape[1]

    in_specs = [
        pl.BlockSpec((1, H, W * C), lambda b: (b, 0, 0)),      # x: one sample / step
        pl.BlockSpec((1, 1, dimY), lambda b: (b, 0, 0)),       # y: one sample / step
    ] + [
        # weights: full block, constant index map -> DMA'd once, VMEM-resident
        pl.BlockSpec(wa.shape, functools.partial(_const_index_map, ndim=wa.ndim))
        for wa in weights
    ]

    out = pl.pallas_call(
        functools.partial(_encoder_kernel, n_conv=3),
        out_shape=jax.ShapeDtypeStruct((B, 1, dim_out), jnp.float32),
        grid=(B,),
        in_specs=in_specs,
        out_specs=pl.BlockSpec((1, 1, dim_out), lambda b: (b, 0, 0)),
        compiler_params=pltpu.CompilerParams(
            dimension_semantics=("parallel",)),
    )(x3, y3, *weights)
    return out.reshape(B, dim_out)


def gaussian_conv_encoder_forward(params, x_nchw, y, dimZ):
    out = _forward(params, x_nchw, y)
    return out[:, :dimZ], out[:, dimZ:]        # == torch.chunk(out, 2, dim=1)


# ----------------------------------------------------------------------------
# Parameter construction (deterministic, in-script) + pure-JAX reference
# ----------------------------------------------------------------------------
def init_params(key, input_shape, dimH, dimZ, dimY, n_channel):
    C_in, H, W = input_shape
    layer_channels = [n_channel, 2 * n_channel, 4 * n_channel]
    keys = jax.random.split(key, 6)
    raw = {"conv": []}
    kp = {}
    c_prev, h, w = C_in, H, W
    for li, c_out in enumerate(layer_channels):
        kw = jax.random.normal(keys[li], (FILTER, FILTER, c_prev, c_out),
                               jnp.float32) * 0.05
        kb = jnp.zeros((c_out,), jnp.float32)
        raw["conv"].append((kw, kb))
        ow = _conv_out_dim(w)
        kp[f"rs{li + 1}"] = _build_row_select(h)
        kp[f"wb{li + 1}"] = _build_col_weights(kw, w)
        kp[f"bt{li + 1}"] = jnp.tile(kb, ow).reshape(1, ow * c_out)
        c_prev, h, w = c_out, _conv_out_dim(h), ow

    flat = h * w * c_prev
    fcw = jax.random.normal(keys[3], (flat, dimH), jnp.float32) * 0.05
    fcb = jnp.zeros((dimH,), jnp.float32)
    raw["fc"] = (fcw, fcb)
    kp["fcw3"] = fcw.reshape(h, w * c_prev, dimH)
    kp["fcb"] = fcb.reshape(1, dimH)

    # enc_mlp: [dimH + dimY, dimH, 2*dimZ]; last layer linear, first relu
    m1w = jax.random.normal(keys[4], (dimH + dimY, dimH), jnp.float32) * 0.05
    m1b = jnp.zeros((dimH,), jnp.float32)
    m2w = jax.random.normal(keys[5], (dimH, 2 * dimZ), jnp.float32) * 0.05
    m2b = jnp.zeros((2 * dimZ,), jnp.float32)
    raw["mlp"] = [(m1w, m1b, "relu"), (m2w, m2b, "linear")]
    kp["m1wa"] = m1w[:dimH]
    kp["m1wb"] = m1w[dimH:]
    kp["m1b"] = m1b.reshape(1, dimH)
    kp["m2w"] = m2w
    kp["m2b"] = m2b.reshape(1, 2 * dimZ)
    return raw, kp


def reference_forward(raw, x_nchw, y, dimZ):
    """Pure-JAX (XLA) reference of the same forward, for validation."""
    h = jnp.transpose(x_nchw, (0, 2, 3, 1)).astype(jnp.float32)
    for kw, kb in raw["conv"]:
        h = jax.lax.conv_general_dilated(
            h, kw, window_strides=(STRIDE, STRIDE),
            padding=((PAD, PAD), (PAD, PAD)),
            dimension_numbers=("NHWC", "HWIO", "NHWC"))
        h = jnp.maximum(h + kb, 0.0)
    h = h.reshape(h.shape[0], -1)
    fcw, fcb = raw["fc"]
    h = jnp.maximum(h @ fcw + fcb, 0.0)
    out = jnp.concatenate([h, y.astype(jnp.float32)], axis=1)
    for mw, mb, act in raw["mlp"]:
        out = out @ mw + mb
        if act == "relu":
            out = jnp.maximum(out, 0.0)
    return out[:, :dimZ], out[:, dimZ:]


# ----------------------------------------------------------------------------
if __name__ == "__main__":
    batch = 2
    input_shape = (4, 16, 16)          # (C, H, W)
    dimH, dimZ, dimY, n_channel = 32, 8, 10, 8

    key = jax.random.PRNGKey(0)
    k_param, k_x, k_y = jax.random.split(key, 3)

    raw, kparams = init_params(k_param, input_shape, dimH, dimZ, dimY, n_channel)
    x = jax.random.normal(k_x, (batch,) + input_shape, dtype=jnp.float32)   # NCHW
    y = jax.random.normal(k_y, (batch, dimY), dtype=jnp.float32)

    mu, log_sigma = gaussian_conv_encoder_forward(kparams, x, y, dimZ)
    jax.block_until_ready((mu, log_sigma))

    assert mu.shape == (batch, dimZ) and log_sigma.shape == (batch, dimZ)

    mu_ref, ls_ref = reference_forward(raw, x, y, dimZ)
    assert jnp.allclose(mu, mu_ref, rtol=3e-2, atol=3e-2), \
        ("mu mismatch", float(jnp.max(jnp.abs(mu - mu_ref))))
    assert jnp.allclose(log_sigma, ls_ref, rtol=3e-2, atol=3e-2), \
        ("log_sigma mismatch", float(jnp.max(jnp.abs(log_sigma - ls_ref))))

    print("KERNEL_OK")
</pallas_src>

<mosaic_0001>
module attributes {stable_mosaic.version = 11 : i64} {
  func.func @_encoder_kernel(%arg0: i32, %arg1: memref<1x16x64xf32, #tpu.memory_space<vmem>>, %arg2: memref<1x1x10xf32, #tpu.memory_space<vmem>>, %arg3: memref<5x8x16xf32, #tpu.memory_space<vmem>>, %arg4: memref<5x64x64xf32, #tpu.memory_space<vmem>>, %arg5: memref<1x64xf32, #tpu.memory_space<vmem>>, %arg6: memref<5x4x8xf32, #tpu.memory_space<vmem>>, %arg7: memref<5x64x64xf32, #tpu.memory_space<vmem>>, %arg8: memref<1x64xf32, #tpu.memory_space<vmem>>, %arg9: memref<5x2x4xf32, #tpu.memory_space<vmem>>, %arg10: memref<5x64x64xf32, #tpu.memory_space<vmem>>, %arg11: memref<1x64xf32, #tpu.memory_space<vmem>>, %arg12: memref<2x64x32xf32, #tpu.memory_space<vmem>>, %arg13: memref<1x32xf32, #tpu.memory_space<vmem>>, %arg14: memref<32x32xf32, #tpu.memory_space<vmem>>, %arg15: memref<10x32xf32, #tpu.memory_space<vmem>>, %arg16: memref<1x32xf32, #tpu.memory_space<vmem>>, %arg17: memref<32x16xf32, #tpu.memory_space<vmem>>, %arg18: memref<1x16xf32, #tpu.memory_space<vmem>>, %arg19: memref<1x1x16xf32, #tpu.memory_space<vmem>>) attributes {dimension_semantics = [#tpu.dimension_semantics<parallel>], iteration_bounds = array<i64: 2>, scalar_prefetch = 0 : i64, scratch_operands = 0 : i64, tpu.core_type = #tpu.core_type<tc>, window_params = [{transform_indices = @transform_0, window_bounds = array<i64: 1, 16, 64>}, {transform_indices = @transform_1, window_bounds = array<i64: 1, 1, 10>}, {pipeline_mode = #tpu.pipeline_mode<synchronous>, transform_indices = @transform_2, window_bounds = array<i64: 5, 8, 16>}, {pipeline_mode = #tpu.pipeline_mode<synchronous>, transform_indices = @transform_3, window_bounds = array<i64: 5, 64, 64>}, {pipeline_mode = #tpu.pipeline_mode<synchronous>, transform_indices = @transform_4, window_bounds = array<i64: 1, 64>}, {pipeline_mode = #tpu.pipeline_mode<synchronous>, transform_indices = @transform_5, window_bounds = array<i64: 5, 4, 8>}, {pipeline_mode = #tpu.pipeline_mode<synchronous>, transform_indices = @transform_6, window_bounds = array<i64: 5, 64, 64>}, {pipeline_mode = #tpu.pipeline_mode<synchronous>, transform_indices = @transform_7, window_bounds = array<i64: 1, 64>}, {pipeline_mode = #tpu.pipeline_mode<synchronous>, transform_indices = @transform_8, window_bounds = array<i64: 5, 2, 4>}, {pipeline_mode = #tpu.pipeline_mode<synchronous>, transform_indices = @transform_9, window_bounds = array<i64: 5, 64, 64>}, {pipeline_mode = #tpu.pipeline_mode<synchronous>, transform_indices = @transform_10, window_bounds = array<i64: 1, 64>}, {pipeline_mode = #tpu.pipeline_mode<synchronous>, transform_indices = @transform_11, window_bounds = array<i64: 2, 64, 32>}, {pipeline_mode = #tpu.pipeline_mode<synchronous>, transform_indices = @transform_12, window_bounds = array<i64: 1, 32>}, {pipeline_mode = #tpu.pipeline_mode<synchronous>, transform_indices = @transform_13, window_bounds = array<i64: 32, 32>}, {pipeline_mode = #tpu.pipeline_mode<synchronous>, transform_indices = @transform_14, window_bounds = array<i64: 10, 32>}, {pipeline_mode = #tpu.pipeline_mode<synchronous>, transform_indices = @transform_15, window_bounds = array<i64: 1, 32>}, {pipeline_mode = #tpu.pipeline_mode<synchronous>, transform_indices = @transform_16, window_bounds = array<i64: 32, 16>}, {pipeline_mode = #tpu.pipeline_mode<synchronous>, transform_indices = @transform_17, window_bounds = array<i64: 1, 16>}, {transform_indices = @transform_18, window_bounds = array<i64: 1, 1, 16>}]} {
    %c0 = arith.constant 0 : index
    %c0_0 = arith.constant 0 : index
    %c0_1 = arith.constant 0 : index
    %0 = vector.load %arg1[%c0, %c0_0, %c0_1] : memref<1x16x64xf32, #tpu.memory_space<vmem>>, vector<1x16x64xf32>
    %1 = vector.shape_cast %0 : vector<1x16x64xf32> to vector<16x64xf32>
    %c0_2 = arith.constant 0 : index
    %c0_3 = arith.constant 0 : index
    %c0_4 = arith.constant 0 : index
    %2 = vector.load %arg3[%c0_2, %c0_3, %c0_4] : memref<5x8x16xf32, #tpu.memory_space<vmem>>, vector<1x8x16xf32>
    %3 = vector.shape_cast %2 : vector<1x8x16xf32> to vector<8x16xf32>
    %cst = arith.constant dense<0.000000e+00> : vector<8x64xf32>
    %4 = tpu.matmul %3, %1, %cst {dimension_numbers = #tpu.dot_dimension_numbers<[1], [0], [0], [1], [0, 0, 1, 1], [], []>} : vector<8x16xf32>, vector<16x64xf32>, vector<8x64xf32> -> vector<8x64xf32>
    %c0_5 = arith.constant 0 : index
    %c0_6 = arith.constant 0 : index
    %c0_7 = arith.constant 0 : index
    %5 = vector.load %arg4[%c0_5, %c0_6, %c0_7] : memref<5x64x64xf32, #tpu.memory_space<vmem>>, vector<1x64x64xf32>
    %6 = vector.shape_cast %5 : vector<1x64x64xf32> to vector<64x64xf32>
    %cst_8 = arith.constant dense<0.000000e+00> : vector<8x64xf32>
    %7 = tpu.matmul %4, %6, %cst_8 {dimension_numbers = #tpu.dot_dimension_numbers<[1], [0], [0], [1], [0, 0, 1, 1], [], []>} : vector<8x64xf32>, vector<64x64xf32>, vector<8x64xf32> -> vector<8x64xf32>
    %c1 = arith.constant 1 : index
    %c0_9 = arith.constant 0 : index
    %c0_10 = arith.constant 0 : index
    %8 = vector.load %arg3[%c1, %c0_9, %c0_10] : memref<5x8x16xf32, #tpu.memory_space<vmem>>, vector<1x8x16xf32>
    %9 = vector.shape_cast %8 : vector<1x8x16xf32> to vector<8x16xf32>
    %cst_11 = arith.constant dense<0.000000e+00> : vector<8x64xf32>
    %10 = tpu.matmul %9, %1, %cst_11 {dimension_numbers = #tpu.dot_dimension_numbers<[1], [0], [0], [1], [0, 0, 1, 1], [], []>} : vector<8x16xf32>, vector<16x64xf32>, vector<8x64xf32> -> vector<8x64xf32>
    %c1_12 = arith.constant 1 : index
    %c0_13 = arith.constant 0 : index
    %c0_14 = arith.constant 0 : index
    %11 = vector.load %arg4[%c1_12, %c0_13, %c0_14] : memref<5x64x64xf32, #tpu.memory_space<vmem>>, vector<1x64x64xf32>
    %12 = vector.shape_cast %11 : vector<1x64x64xf32> to vector<64x64xf32>
    %cst_15 = arith.constant dense<0.000000e+00> : vector<8x64xf32>
    %13 = tpu.matmul %10, %12, %cst_15 {dimension_numbers = #tpu.dot_dimension_numbers<[1], [0], [0], [1], [0, 0, 1, 1], [], []>} : vector<8x64xf32>, vector<64x64xf32>, vector<8x64xf32> -> vector<8x64xf32>
    %14 = arith.addf %7, %13 : vector<8x64xf32>
    %c2 = arith.constant 2 : index
    %c0_16 = arith.constant 0 : index
    %c0_17 = arith.constant 0 : index
    %15 = vector.load %arg3[%c2, %c0_16, %c0_17] : memref<5x8x16xf32, #tpu.memory_space<vmem>>, vector<1x8x16xf32>
    %16 = vector.shape_cast %15 : vector<1x8x16xf32> to vector<8x16xf32>
    %cst_18 = arith.constant dense<0.000000e+00> : vector<8x64xf32>
    %17 = tpu.matmul %16, %1, %cst_18 {dimension_numbers = #tpu.dot_dimension_numbers<[1], [0], [0], [1], [0, 0, 1, 1], [], []>} : vector<8x16xf32>, vector<16x64xf32>, vector<8x64xf32> -> vector<8x64xf32>
    %c2_19 = arith.constant 2 : index
    %c0_20 = arith.constant 0 : index
    %c0_21 = arith.constant 0 : index
    %18 = vector.load %arg4[%c2_19, %c0_20, %c0_21] : memref<5x64x64xf32, #tpu.memory_space<vmem>>, vector<1x64x64xf32>
    %19 = vector.shape_cast %18 : vector<1x64x64xf32> to vector<64x64xf32>
    %cst_22 = arith.constant dense<0.000000e+00> : vector<8x64xf32>
    %20 = tpu.matmul %17, %19, %cst_22 {dimension_numbers = #tpu.dot_dimension_numbers<[1], [0], [0], [1], [0, 0, 1, 1], [], []>} : vector<8x64xf32>, vector<64x64xf32>, vector<8x64xf32> -> vector<8x64xf32>
    %21 = arith.addf %14, %20 : vector<8x64xf32>
    %c3 = arith.constant 3 : index
    %c0_23 = arith.constant 0 : index
    %c0_24 = arith.constant 0 : index
    %22 = vector.load %arg3[%c3, %c0_23, %c0_24] : memref<5x8x16xf32, #tpu.memory_space<vmem>>, vector<1x8x16xf32>
    %23 = vector.shape_cast %22 : vector<1x8x16xf32> to vector<8x16xf32>
    %cst_25 = arith.constant dense<0.000000e+00> : vector<8x64xf32>
    %24 = tpu.matmul %23, %1, %cst_25 {dimension_numbers = #tpu.dot_dimension_numbers<[1], [0], [0], [1], [0, 0, 1, 1], [], []>} : vector<8x16xf32>, vector<16x64xf32>, vector<8x64xf32> -> vector<8x64xf32>
    %c3_26 = arith.constant 3 : index
    %c0_27 = arith.constant 0 : index
    %c0_28 = arith.constant 0 : index
    %25 = vector.load %arg4[%c3_26, %c0_27, %c0_28] : memref<5x64x64xf32, #tpu.memory_space<vmem>>, vector<1x64x64xf32>
    %26 = vector.shape_cast %25 : vector<1x64x64xf32> to vector<64x64xf32>
    %cst_29 = arith.constant dense<0.000000e+00> : vector<8x64xf32>
    %27 = tpu.matmul %24, %26, %cst_29 {dimension_numbers = #tpu.dot_dimension_numbers<[1], [0], [0], [1], [0, 0, 1, 1], [], []>} : vector<8x64xf32>, vector<64x64xf32>, vector<8x64xf32> -> vector<8x64xf32>
    %28 = arith.addf %21, %27 : vector<8x64xf32>
    %c4 = arith.constant 4 : index
    %c0_30 = arith.constant 0 : index
    %c0_31 = arith.constant 0 : index
    %29 = vector.load %arg3[%c4, %c0_30, %c0_31] : memref<5x8x16xf32, #tpu.memory_space<vmem>>, vector<1x8x16xf32>
    %30 = vector.shape_cast %29 : vector<1x8x16xf32> to vector<8x16xf32>
    %cst_32 = arith.constant dense<0.000000e+00> : vector<8x64xf32>
    %31 = tpu.matmul %30, %1, %cst_32 {dimension_numbers = #tpu.dot_dimension_numbers<[1], [0], [0], [1], [0, 0, 1, 1], [], []>} : vector<8x16xf32>, vector<16x64xf32>, vector<8x64xf32> -> vector<8x64xf32>
    %c4_33 = arith.constant 4 : index
    %c0_34 = arith.constant 0 : index
    %c0_35 = arith.constant 0 : index
    %32 = vector.load %arg4[%c4_33, %c0_34, %c0_35] : memref<5x64x64xf32, #tpu.memory_space<vmem>>, vector<1x64x64xf32>
    %33 = vector.shape_cast %32 : vector<1x64x64xf32> to vector<64x64xf32>
    %cst_36 = arith.constant dense<0.000000e+00> : vector<8x64xf32>
    %34 = tpu.matmul %31, %33, %cst_36 {dimension_numbers = #tpu.dot_dimension_numbers<[1], [0], [0], [1], [0, 0, 1, 1], [], []>} : vector<8x64xf32>, vector<64x64xf32>, vector<8x64xf32> -> vector<8x64xf32>
    %35 = arith.addf %28, %34 : vector<8x64xf32>
    %c0_37 = arith.constant 0 : index
    %c0_38 = arith.constant 0 : index
    %36 = vector.load %arg5[%c0_37, %c0_38] : memref<1x64xf32, #tpu.memory_space<vmem>>, vector<1x64xf32>
    %37 = vector.broadcast %36 : vector<1x64xf32> to vector<8x64xf32>
    %38 = arith.addf %35, %37 : vector<8x64xf32>
    %cst_39 = arith.constant 0.000000e+00 : f32
    %39 = vector.broadcast %cst_39 : f32 to vector<8x64xf32>
    %40 = arith.maximumf %38, %39 : vector<8x64xf32>
    %c0_40 = arith.constant 0 : index
    %c0_41 = arith.constant 0 : index
    %c0_42 = arith.constant 0 : index
    %41 = vector.load %arg6[%c0_40, %c0_41, %c0_42] : memref<5x4x8xf32, #tpu.memory_space<vmem>>, vector<1x4x8xf32>
    %42 = vector.shape_cast %41 : vector<1x4x8xf32> to vector<4x8xf32>
    %cst_43 = arith.constant dense<0.000000e+00> : vector<4x64xf32>
    %43 = tpu.matmul %42, %40, %cst_43 {dimension_numbers = #tpu.dot_dimension_numbers<[1], [0], [0], [1], [0, 0, 1, 1], [], []>} : vector<4x8xf32>, vector<8x64xf32>, vector<4x64xf32> -> vector<4x64xf32>
    %c0_44 = arith.constant 0 : index
    %c0_45 = arith.constant 0 : index
    %c0_46 = arith.constant 0 : index
    %44 = vector.load %arg7[%c0_44, %c0_45, %c0_46] : memref<5x64x64xf32, #tpu.memory_space<vmem>>, vector<1x64x64xf32>
    %45 = vector.shape_cast %44 : vector<1x64x64xf32> to vector<64x64xf32>
    %cst_47 = arith.constant dense<0.000000e+00> : vector<4x64xf32>
    %46 = tpu.matmul %43, %45, %cst_47 {dimension_numbers = #tpu.dot_dimension_numbers<[1], [0], [0], [1], [0, 0, 1, 1], [], []>} : vector<4x64xf32>, vector<64x64xf32>, vector<4x64xf32> -> vector<4x64xf32>
    %c1_48 = arith.constant 1 : index
    %c0_49 = arith.constant 0 : index
    %c0_50 = arith.constant 0 : index
    %47 = vector.load %arg6[%c1_48, %c0_49, %c0_50] : memref<5x4x8xf32, #tpu.memory_space<vmem>>, vector<1x4x8xf32>
    %48 = vector.shape_cast %47 : vector<1x4x8xf32> to vector<4x8xf32>
    %cst_51 = arith.constant dense<0.000000e+00> : vector<4x64xf32>
    %49 = tpu.matmul %48, %40, %cst_51 {dimension_numbers = #tpu.dot_dimension_numbers<[1], [0], [0], [1], [0, 0, 1, 1], [], []>} : vector<4x8xf32>, vector<8x64xf32>, vector<4x64xf32> -> vector<4x64xf32>
    %c1_52 = arith.constant 1 : index
    %c0_53 = arith.constant 0 : index
    %c0_54 = arith.constant 0 : index
    %50 = vector.load %arg7[%c1_52, %c0_53, %c0_54] : memref<5x64x64xf32, #tpu.memory_space<vmem>>, vector<1x64x64xf32>
    %51 = vector.shape_cast %50 : vector<1x64x64xf32> to vector<64x64xf32>
    %cst_55 = arith.constant dense<0.000000e+00> : vector<4x64xf32>
    %52 = tpu.matmul %49, %51, %cst_55 {dimension_numbers = #tpu.dot_dimension_numbers<[1], [0], [0], [1], [0, 0, 1, 1], [], []>} : vector<4x64xf32>, vector<64x64xf32>, vector<4x64xf32> -> vector<4x64xf32>
    %53 = arith.addf %46, %52 : vector<4x64xf32>
    %c2_56 = arith.constant 2 : index
    %c0_57 = arith.constant 0 : index
    %c0_58 = arith.constant 0 : index
    %54 = vector.load %arg6[%c2_56, %c0_57, %c0_58] : memref<5x4x8xf32, #tpu.memory_space<vmem>>, vector<1x4x8xf32>
    %55 = vector.shape_cast %54 : vector<1x4x8xf32> to vector<4x8xf32>
    %cst_59 = arith.constant dense<0.000000e+00> : vector<4x64xf32>
    %56 = tpu.matmul %55, %40, %cst_59 {dimension_numbers = #tpu.dot_dimension_numbers<[1], [0], [0], [1], [0, 0, 1, 1], [], []>} : vector<4x8xf32>, vector<8x64xf32>, vector<4x64xf32> -> vector<4x64xf32>
    %c2_60 = arith.constant 2 : index
    %c0_61 = arith.constant 0 : index
    %c0_62 = arith.constant 0 : index
    %57 = vector.load %arg7[%c2_60, %c0_61, %c0_62] : memref<5x64x64xf32, #tpu.memory_space<vmem>>, vector<1x64x64xf32>
    %58 = vector.shape_cast %57 : vector<1x64x64xf32> to vector<64x64xf32>
    %cst_63 = arith.constant dense<0.000000e+00> : vector<4x64xf32>
    %59 = tpu.matmul %56, %58, %cst_63 {dimension_numbers = #tpu.dot_dimension_numbers<[1], [0], [0], [1], [0, 0, 1, 1], [], []>} : vector<4x64xf32>, vector<64x64xf32>, vector<4x64xf32> -> vector<4x64xf32>
    %60 = arith.addf %53, %59 : vector<4x64xf32>
    %c3_64 = arith.constant 3 : index
    %c0_65 = arith.constant 0 : index
    %c0_66 = arith.constant 0 : index
    %61 = vector.load %arg6[%c3_64, %c0_65, %c0_66] : memref<5x4x8xf32, #tpu.memory_space<vmem>>, vector<1x4x8xf32>
    %62 = vector.shape_cast %61 : vector<1x4x8xf32> to vector<4x8xf32>
    %cst_67 = arith.constant dense<0.000000e+00> : vector<4x64xf32>
    %63 = tpu.matmul %62, %40, %cst_67 {dimension_numbers = #tpu.dot_dimension_numbers<[1], [0], [0], [1], [0, 0, 1, 1], [], []>} : vector<4x8xf32>, vector<8x64xf32>, vector<4x64xf32> -> vector<4x64xf32>
    %c3_68 = arith.constant 3 : index
    %c0_69 = arith.constant 0 : index
    %c0_70 = arith.constant 0 : index
    %64 = vector.load %arg7[%c3_68, %c0_69, %c0_70] : memref<5x64x64xf32, #tpu.memory_space<vmem>>, vector<1x64x64xf32>
    %65 = vector.shape_cast %64 : vector<1x64x64xf32> to vector<64x64xf32>
    %cst_71 = arith.constant dense<0.000000e+00> : vector<4x64xf32>
    %66 = tpu.matmul %63, %65, %cst_71 {dimension_numbers = #tpu.dot_dimension_numbers<[1], [0], [0], [1], [0, 0, 1, 1], [], []>} : vector<4x64xf32>, vector<64x64xf32>, vector<4x64xf32> -> vector<4x64xf32>
    %67 = arith.addf %60, %66 : vector<4x64xf32>
    %c4_72 = arith.constant 4 : index
    %c0_73 = arith.constant 0 : index
    %c0_74 = arith.constant 0 : index
    %68 = vector.load %arg6[%c4_72, %c0_73, %c0_74] : memref<5x4x8xf32, #tpu.memory_space<vmem>>, vector<1x4x8xf32>
    %69 = vector.shape_cast %68 : vector<1x4x8xf32> to vector<4x8xf32>
    %cst_75 = arith.constant dense<0.000000e+00> : vector<4x64xf32>
    %70 = tpu.matmul %69, %40, %cst_75 {dimension_numbers = #tpu.dot_dimension_numbers<[1], [0], [0], [1], [0, 0, 1, 1], [], []>} : vector<4x8xf32>, vector<8x64xf32>, vector<4x64xf32> -> vector<4x64xf32>
    %c4_76 = arith.constant 4 : index
    %c0_77 = arith.constant 0 : index
    %c0_78 = arith.constant 0 : index
    %71 = vector.load %arg7[%c4_76, %c0_77, %c0_78] : memref<5x64x64xf32, #tpu.memory_space<vmem>>, vector<1x64x64xf32>
    %72 = vector.shape_cast %71 : vector<1x64x64xf32> to vector<64x64xf32>
    %cst_79 = arith.constant dense<0.000000e+00> : vector<4x64xf32>
    %73 = tpu.matmul %70, %72, %cst_79 {dimension_numbers = #tpu.dot_dimension_numbers<[1], [0], [0], [1], [0, 0, 1, 1], [], []>} : vector<4x64xf32>, vector<64x64xf32>, vector<4x64xf32> -> vector<4x64xf32>
    %74 = arith.addf %67, %73 : vector<4x64xf32>
    %c0_80 = arith.constant 0 : index
    %c0_81 = arith.constant 0 : index
    %75 = vector.load %arg8[%c0_80, %c0_81] : memref<1x64xf32, #tpu.memory_space<vmem>>, vector<1x64xf32>
    %76 = vector.broadcast %75 : vector<1x64xf32> to vector<4x64xf32>
    %77 = arith.addf %74, %76 : vector<4x64xf32>
    %cst_82 = arith.constant 0.000000e+00 : f32
    %78 = vector.broadcast %cst_82 : f32 to vector<4x64xf32>
    %79 = arith.maximumf %77, %78 : vector<4x64xf32>
    %c0_83 = arith.constant 0 : index
    %c0_84 = arith.constant 0 : index
    %c0_85 = arith.constant 0 : index
    %80 = vector.load %arg9[%c0_83, %c0_84, %c0_85] : memref<5x2x4xf32, #tpu.memory_space<vmem>>, vector<1x2x4xf32>
    %81 = vector.shape_cast %80 : vector<1x2x4xf32> to vector<2x4xf32>
    %cst_86 = arith.constant dense<0.000000e+00> : vector<2x64xf32>
    %82 = tpu.matmul %81, %79, %cst_86 {dimension_numbers = #tpu.dot_dimension_numbers<[1], [0], [0], [1], [0, 0, 1, 1], [], []>} : vector<2x4xf32>, vector<4x64xf32>, vector<2x64xf32> -> vector<2x64xf32>
    %c0_87 = arith.constant 0 : index
    %c0_88 = arith.constant 0 : index
    %c0_89 = arith.constant 0 : index
    %83 = vector.load %arg10[%c0_87, %c0_88, %c0_89] : memref<5x64x64xf32, #tpu.memory_space<vmem>>, vector<1x64x64xf32>
    %84 = vector.shape_cast %83 : vector<1x64x64xf32> to vector<64x64xf32>
    %cst_90 = arith.constant dense<0.000000e+00> : vector<2x64xf32>
    %85 = tpu.matmul %82, %84, %cst_90 {dimension_numbers = #tpu.dot_dimension_numbers<[1], [0], [0], [1], [0, 0, 1, 1], [], []>} : vector<2x64xf32>, vector<64x64xf32>, vector<2x64xf32> -> vector<2x64xf32>
    %c1_91 = arith.constant 1 : index
    %c0_92 = arith.constant 0 : index
    %c0_93 = arith.constant 0 : index
    %86 = vector.load %arg9[%c1_91, %c0_92, %c0_93] : memref<5x2x4xf32, #tpu.memory_space<vmem>>, vector<1x2x4xf32>
    %87 = vector.shape_cast %86 : vector<1x2x4xf32> to vector<2x4xf32>
    %cst_94 = arith.constant dense<0.000000e+00> : vector<2x64xf32>
    %88 = tpu.matmul %87, %79, %cst_94 {dimension_numbers = #tpu.dot_dimension_numbers<[1], [0], [0], [1], [0, 0, 1, 1], [], []>} : vector<2x4xf32>, vector<4x64xf32>, vector<2x64xf32> -> vector<2x64xf32>
    %c1_95 = arith.constant 1 : index
    %c0_96 = arith.constant 0 : index
    %c0_97 = arith.constant 0 : index
    %89 = vector.load %arg10[%c1_95, %c0_96, %c0_97] : memref<5x64x64xf32, #tpu.memory_space<vmem>>, vector<1x64x64xf32>
    %90 = vector.shape_cast %89 : vector<1x64x64xf32> to vector<64x64xf32>
    %cst_98 = arith.constant dense<0.000000e+00> : vector<2x64xf32>
    %91 = tpu.matmul %88, %90, %cst_98 {dimension_numbers = #tpu.dot_dimension_numbers<[1], [0], [0], [1], [0, 0, 1, 1], [], []>} : vector<2x64xf32>, vector<64x64xf32>, vector<2x64xf32> -> vector<2x64xf32>
    %92 = arith.addf %85, %91 : vector<2x64xf32>
    %c2_99 = arith.constant 2 : index
    %c0_100 = arith.constant 0 : index
    %c0_101 = arith.constant 0 : index
    %93 = vector.load %arg9[%c2_99, %c0_100, %c0_101] : memref<5x2x4xf32, #tpu.memory_space<vmem>>, vector<1x2x4xf32>
    %94 = vector.shape_cast %93 : vector<1x2x4xf32> to vector<2x4xf32>
    %cst_102 = arith.constant dense<0.000000e+00> : vector<2x64xf32>
    %95 = tpu.matmul %94, %79, %cst_102 {dimension_numbers = #tpu.dot_dimension_numbers<[1], [0], [0], [1], [0, 0, 1, 1], [], []>} : vector<2x4xf32>, vector<4x64xf32>, vector<2x64xf32> -> vector<2x64xf32>
    %c2_103 = arith.constant 2 : index
    %c0_104 = arith.constant 0 : index
    %c0_105 = arith.constant 0 : index
    %96 = vector.load %arg10[%c2_103, %c0_104, %c0_105] : memref<5x64x64xf32, #tpu.memory_space<vmem>>, vector<1x64x64xf32>
    %97 = vector.shape_cast %96 : vector<1x64x64xf32> to vector<64x64xf32>
    %cst_106 = arith.constant dense<0.000000e+00> : vector<2x64xf32>
    %98 = tpu.matmul %95, %97, %cst_106 {dimension_numbers = #tpu.dot_dimension_numbers<[1], [0], [0], [1], [0, 0, 1, 1], [], []>} : vector<2x64xf32>, vector<64x64xf32>, vector<2x64xf32> -> vector<2x64xf32>
    %99 = arith.addf %92, %98 : vector<2x64xf32>
    %c3_107 = arith.constant 3 : index
    %c0_108 = arith.constant 0 : index
    %c0_109 = arith.constant 0 : index
    %100 = vector.load %arg9[%c3_107, %c0_108, %c0_109] : memref<5x2x4xf32, #tpu.memory_space<vmem>>, vector<1x2x4xf32>
    %101 = vector.shape_cast %100 : vector<1x2x4xf32> to vector<2x4xf32>
    %cst_110 = arith.constant dense<0.000000e+00> : vector<2x64xf32>
    %102 = tpu.matmul %101, %79, %cst_110 {dimension_numbers = #tpu.dot_dimension_numbers<[1], [0], [0], [1], [0, 0, 1, 1], [], []>} : vector<2x4xf32>, vector<4x64xf32>, vector<2x64xf32> -> vector<2x64xf32>
    %c3_111 = arith.constant 3 : index
    %c0_112 = arith.constant 0 : index
    %c0_113 = arith.constant 0 : index
    %103 = vector.load %arg10[%c3_111, %c0_112, %c0_113] : memref<5x64x64xf32, #tpu.memory_space<vmem>>, vector<1x64x64xf32>
    %104 = vector.shape_cast %103 : vector<1x64x64xf32> to vector<64x64xf32>
    %cst_114 = arith.constant dense<0.000000e+00> : vector<2x64xf32>
    %105 = tpu.matmul %102, %104, %cst_114 {dimension_numbers = #tpu.dot_dimension_numbers<[1], [0], [0], [1], [0, 0, 1, 1], [], []>} : vector<2x64xf32>, vector<64x64xf32>, vector<2x64xf32> -> vector<2x64xf32>
    %106 = arith.addf %99, %105 : vector<2x64xf32>
    %c4_115 = arith.constant 4 : index
    %c0_116 = arith.constant 0 : index
    %c0_117 = arith.constant 0 : index
    %107 = vector.load %arg9[%c4_115, %c0_116, %c0_117] : memref<5x2x4xf32, #tpu.memory_space<vmem>>, vector<1x2x4xf32>
    %108 = vector.shape_cast %107 : vector<1x2x4xf32> to vector<2x4xf32>
    %cst_118 = arith.constant dense<0.000000e+00> : vector<2x64xf32>
    %109 = tpu.matmul %108, %79, %cst_118 {dimension_numbers = #tpu.dot_dimension_numbers<[1], [0], [0], [1], [0, 0, 1, 1], [], []>} : vector<2x4xf32>, vector<4x64xf32>, vector<2x64xf32> -> vector<2x64xf32>
    %c4_119 = arith.constant 4 : index
    %c0_120 = arith.constant 0 : index
    %c0_121 = arith.constant 0 : index
    %110 = vector.load %arg10[%c4_119, %c0_120, %c0_121] : memref<5x64x64xf32, #tpu.memory_space<vmem>>, vector<1x64x64xf32>
    %111 = vector.shape_cast %110 : vector<1x64x64xf32> to vector<64x64xf32>
    %cst_122 = arith.constant dense<0.000000e+00> : vector<2x64xf32>
    %112 = tpu.matmul %109, %111, %cst_122 {dimension_numbers = #tpu.dot_dimension_numbers<[1], [0], [0], [1], [0, 0, 1, 1], [], []>} : vector<2x64xf32>, vector<64x64xf32>, vector<2x64xf32> -> vector<2x64xf32>
    %113 = arith.addf %106, %112 : vector<2x64xf32>
    %c0_123 = arith.constant 0 : index
    %c0_124 = arith.constant 0 : index
    %114 = vector.load %arg11[%c0_123, %c0_124] : memref<1x64xf32, #tpu.memory_space<vmem>>, vector<1x64xf32>
    %115 = vector.broadcast %114 : vector<1x64xf32> to vector<2x64xf32>
    %116 = arith.addf %113, %115 : vector<2x64xf32>
    %cst_125 = arith.constant 0.000000e+00 : f32
    %117 = vector.broadcast %cst_125 : f32 to vector<2x64xf32>
    %118 = arith.maximumf %116, %117 : vector<2x64xf32>
    %119 = vector.extract_strided_slice %118 {offsets = [0, 0], sizes = [1, 64], strides = [1, 1]} : vector<2x64xf32> to vector<1x64xf32>
    %c0_126 = arith.constant 0 : index
    %c0_127 = arith.constant 0 : index
    %c0_128 = arith.constant 0 : index
    %120 = vector.load %arg12[%c0_126, %c0_127, %c0_128] : memref<2x64x32xf32, #tpu.memory_space<vmem>>, vector<1x64x32xf32>
    %121 = vector.shape_cast %120 : vector<1x64x32xf32> to vector<64x32xf32>
    %cst_129 = arith.constant dense<0.000000e+00> : vector<1x32xf32>
    %122 = tpu.matmul %119, %121, %cst_129 {dimension_numbers = #tpu.dot_dimension_numbers<[1], [0], [0], [1], [0, 0, 1, 1], [], []>} : vector<1x64xf32>, vector<64x32xf32>, vector<1x32xf32> -> vector<1x32xf32>
    %123 = vector.extract_strided_slice %118 {offsets = [1, 0], sizes = [1, 64], strides = [1, 1]} : vector<2x64xf32> to vector<1x64xf32>
    %c1_130 = arith.constant 1 : index
    %c0_131 = arith.constant 0 : index
    %c0_132 = arith.constant 0 : index
    %124 = vector.load %arg12[%c1_130, %c0_131, %c0_132] : memref<2x64x32xf32, #tpu.memory_space<vmem>>, vector<1x64x32xf32>
    %125 = vector.shape_cast %124 : vector<1x64x32xf32> to vector<64x32xf32>
    %cst_133 = arith.constant dense<0.000000e+00> : vector<1x32xf32>
    %126 = tpu.matmul %123, %125, %cst_133 {dimension_numbers = #tpu.dot_dimension_numbers<[1], [0], [0], [1], [0, 0, 1, 1], [], []>} : vector<1x64xf32>, vector<64x32xf32>, vector<1x32xf32> -> vector<1x32xf32>
    %127 = arith.addf %122, %126 : vector<1x32xf32>
    %c0_134 = arith.constant 0 : index
    %c0_135 = arith.constant 0 : index
    %128 = vector.load %arg13[%c0_134, %c0_135] : memref<1x32xf32, #tpu.memory_space<vmem>>, vector<1x32xf32>
    %129 = arith.addf %127, %128 : vector<1x32xf32>
    %cst_136 = arith.constant 0.000000e+00 : f32
    %130 = vector.broadcast %cst_136 : f32 to vector<1x32xf32>
    %131 = arith.maximumf %129, %130 : vector<1x32xf32>
    %c0_137 = arith.constant 0 : index
    %c0_138 = arith.constant 0 : index
    %132 = vector.load %arg14[%c0_137, %c0_138] : memref<32x32xf32, #tpu.memory_space<vmem>>, vector<32x32xf32>
    %cst_139 = arith.constant dense<0.000000e+00> : vector<1x32xf32>
    %133 = tpu.matmul %131, %132, %cst_139 {dimension_numbers = #tpu.dot_dimension_numbers<[1], [0], [0], [1], [0, 0, 1, 1], [], []>} : vector<1x32xf32>, vector<32x32xf32>, vector<1x32xf32> -> vector<1x32xf32>
    %c0_140 = arith.constant 0 : index
    %c0_141 = arith.constant 0 : index
    %c0_142 = arith.constant 0 : index
    %134 = vector.load %arg2[%c0_140, %c0_141, %c0_142] : memref<1x1x10xf32, #tpu.memory_space<vmem>>, vector<1x1x10xf32>
    %135 = vector.shape_cast %134 : vector<1x1x10xf32> to vector<1x10xf32>
    %c0_143 = arith.constant 0 : index
    %c0_144 = arith.constant 0 : index
    %136 = vector.load %arg15[%c0_143, %c0_144] : memref<10x32xf32, #tpu.memory_space<vmem>>, vector<10x32xf32>
    %cst_145 = arith.constant dense<0.000000e+00> : vector<1x32xf32>
    %137 = tpu.matmul %135, %136, %cst_145 {dimension_numbers = #tpu.dot_dimension_numbers<[1], [0], [0], [1], [0, 0, 1, 1], [], []>} : vector<1x10xf32>, vector<10x32xf32>, vector<1x32xf32> -> vector<1x32xf32>
    %138 = arith.addf %133, %137 : vector<1x32xf32>
    %c0_146 = arith.constant 0 : index
    %c0_147 = arith.constant 0 : index
    %139 = vector.load %arg16[%c0_146, %c0_147] : memref<1x32xf32, #tpu.memory_space<vmem>>, vector<1x32xf32>
    %140 = arith.addf %138, %139 : vector<1x32xf32>
    %cst_148 = arith.constant 0.000000e+00 : f32
    %141 = vector.broadcast %cst_148 : f32 to vector<1x32xf32>
    %142 = arith.maximumf %140, %141 : vector<1x32xf32>
    %c0_149 = arith.constant 0 : index
    %c0_150 = arith.constant 0 : index
    %143 = vector.load %arg17[%c0_149, %c0_150] : memref<32x16xf32, #tpu.memory_space<vmem>>, vector<32x16xf32>
    %cst_151 = arith.constant dense<0.000000e+00> : vector<1x16xf32>
    %144 = tpu.matmul %142, %143, %cst_151 {dimension_numbers = #tpu.dot_dimension_numbers<[1], [0], [0], [1], [0, 0, 1, 1], [], []>} : vector<1x32xf32>, vector<32x16xf32>, vector<1x16xf32> -> vector<1x16xf32>
    %c0_152 = arith.constant 0 : index
    %c0_153 = arith.constant 0 : index
    %145 = vector.load %arg18[%c0_152, %c0_153] : memref<1x16xf32, #tpu.memory_space<vmem>>, vector<1x16xf32>
    %146 = arith.addf %144, %145 : vector<1x16xf32>
    %c0_154 = arith.constant 0 : index
    %c0_155 = arith.constant 0 : index
    %c0_156 = arith.constant 0 : index
    %147 = vector.load %arg19[%c0_154, %c0_155, %c0_156] : memref<1x1x16xf32, #tpu.memory_space<vmem>>, vector<1x1x16xf32>
    %148 = vector.shape_cast %147 : vector<1x1x16xf32> to vector<1x16xf32>
    %149 = vector.shape_cast %146 : vector<1x16xf32> to vector<1x1x16xf32>
    tpu.vector_store %arg19[%c0_154, %c0_155, %c0_156], %149 {strides = array<i32>} : memref<1x1x16xf32, #tpu.memory_space<vmem>>, vector<1x1x16xf32>,
    return
  }
  func.func @transform_0(%arg0: i32) -> (i32, i32, i32) {
    %c0_i32 = arith.constant 0 : i32
    %c0_i32_0 = arith.constant 0 : i32
    %c0_i32_1 = arith.constant 0 : i32
    return %arg0, %c0_i32, %c0_i32_0 : i32, i32, i32
  }
  func.func @transform_1(%arg0: i32) -> (i32, i32, i32) {
    %c0_i32 = arith.constant 0 : i32
    %c0_i32_0 = arith.constant 0 : i32
    %c0_i32_1 = arith.constant 0 : i32
    return %arg0, %c0_i32, %c0_i32_0 : i32, i32, i32
  }
  func.func @transform_2(%arg0: i32) -> (i32, i32, i32) {
    %c0_i32 = arith.constant 0 : i32
    %c0_i32_0 = arith.constant 0 : i32
    %c0_i32_1 = arith.constant 0 : i32
    %c0_i32_2 = arith.constant 0 : i32
    return %c0_i32, %c0_i32_0, %c0_i32_1 : i32, i32, i32
  }
  func.func @transform_3(%arg0: i32) -> (i32, i32, i32) {
    %c0_i32 = arith.constant 0 : i32
    %c0_i32_0 = arith.constant 0 : i32
    %c0_i32_1 = arith.constant 0 : i32
    %c0_i32_2 = arith.constant 0 : i32
    return %c0_i32, %c0_i32_0, %c0_i32_1 : i32, i32, i32
  }
  func.func @transform_4(%arg0: i32) -> (i32, i32) {
    %c0_i32 = arith.constant 0 : i32
    %c0_i32_0 = arith.constant 0 : i32
    %c0_i32_1 = arith.constant 0 : i32
    return %c0_i32, %c0_i32_0 : i32, i32
  }
  func.func @transform_5(%arg0: i32) -> (i32, i32, i32) {
    %c0_i32 = arith.constant 0 : i32
    %c0_i32_0 = arith.constant 0 : i32
    %c0_i32_1 = arith.constant 0 : i32
    %c0_i32_2 = arith.constant 0 : i32
    return %c0_i32, %c0_i32_0, %c0_i32_1 : i32, i32, i32
  }
  func.func @transform_6(%arg0: i32) -> (i32, i32, i32) {
    %c0_i32 = arith.constant 0 : i32
    %c0_i32_0 = arith.constant 0 : i32
    %c0_i32_1 = arith.constant 0 : i32
    %c0_i32_2 = arith.constant 0 : i32
    return %c0_i32, %c0_i32_0, %c0_i32_1 : i32, i32, i32
  }
  func.func @transform_7(%arg0: i32) -> (i32, i32) {
    %c0_i32 = arith.constant 0 : i32
    %c0_i32_0 = arith.constant 0 : i32
    %c0_i32_1 = arith.constant 0 : i32
    return %c0_i32, %c0_i32_0 : i32, i32
  }
  func.func @transform_8(%arg0: i32) -> (i32, i32, i32) {
    %c0_i32 = arith.constant 0 : i32
    %c0_i32_0 = arith.constant 0 : i32
    %c0_i32_1 = arith.constant 0 : i32
    %c0_i32_2 = arith.constant 0 : i32
    return %c0_i32, %c0_i32_0, %c0_i32_1 : i32, i32, i32
  }
  func.func @transform_9(%arg0: i32) -> (i32, i32, i32) {
    %c0_i32 = arith.constant 0 : i32
    %c0_i32_0 = arith.constant 0 : i32
    %c0_i32_1 = arith.constant 0 : i32
    %c0_i32_2 = arith.constant 0 : i32
    return %c0_i32, %c0_i32_0, %c0_i32_1 : i32, i32, i32
  }
  func.func @transform_10(%arg0: i32) -> (i32, i32) {
    %c0_i32 = arith.constant 0 : i32
    %c0_i32_0 = arith.constant 0 : i32
    %c0_i32_1 = arith.constant 0 : i32
    return %c0_i32, %c0_i32_0 : i32, i32
  }
  func.func @transform_11(%arg0: i32) -> (i32, i32, i32) {
    %c0_i32 = arith.constant 0 : i32
    %c0_i32_0 = arith.constant 0 : i32
    %c0_i32_1 = arith.constant 0 : i32
    %c0_i32_2 = arith.constant 0 : i32
    return %c0_i32, %c0_i32_0, %c0_i32_1 : i32, i32, i32
  }
  func.func @transform_12(%arg0: i32) -> (i32, i32) {
    %c0_i32 = arith.constant 0 : i32
    %c0_i32_0 = arith.constant 0 : i32
    %c0_i32_1 = arith.constant 0 : i32
    return %c0_i32, %c0_i32_0 : i32, i32
  }
  func.func @transform_13(%arg0: i32) -> (i32, i32) {
    %c0_i32 = arith.constant 0 : i32
    %c0_i32_0 = arith.constant 0 : i32
    %c0_i32_1 = arith.constant 0 : i32
    return %c0_i32, %c0_i32_0 : i32, i32
  }
  func.func @transform_14(%arg0: i32) -> (i32, i32) {
    %c0_i32 = arith.constant 0 : i32
    %c0_i32_0 = arith.constant 0 : i32
    %c0_i32_1 = arith.constant 0 : i32
    return %c0_i32, %c0_i32_0 : i32, i32
  }
  func.func @transform_15(%arg0: i32) -> (i32, i32) {
    %c0_i32 = arith.constant 0 : i32
    %c0_i32_0 = arith.constant 0 : i32
    %c0_i32_1 = arith.constant 0 : i32
    return %c0_i32, %c0_i32_0 : i32, i32
  }
  func.func @transform_16(%arg0: i32) -> (i32, i32) {
    %c0_i32 = arith.constant 0 : i32
    %c0_i32_0 = arith.constant 0 : i32
    %c0_i32_1 = arith.constant 0 : i32
    return %c0_i32, %c0_i32_0 : i32, i32
  }
  func.func @transform_17(%arg0: i32) -> (i32, i32) {
    %c0_i32 = arith.constant 0 : i32
    %c0_i32_0 = arith.constant 0 : i32
    %c0_i32_1 = arith.constant 0 : i32
    return %c0_i32, %c0_i32_0 : i32, i32
  }
  func.func @transform_18(%arg0: i32) -> (i32, i32, i32) {
    %c0_i32 = arith.constant 0 : i32
    %c0_i32_0 = arith.constant 0 : i32
    %c0_i32_1 = arith.constant 0 : i32
    return %arg0, %c0_i32, %c0_i32_0 : i32, i32, i32
  }
}

</mosaic_0001>

<llo_original>
// kernel: _forward.1
$region0: #{_forward.1}
  #allocation0 [shape = 'u32[]', space=smem, size = 0x4, offset = 0x4, fixed_abs, tag = 'smem constant byte address 0x4 - core index']
  #allocation1 [shape = 'u32[144,128]{1,0:T(1,128)}', space=vmem, size = 0x12000, scoped, tag = 'internal scratch']
  %s0 = inlined_call_operand.vmem [shape: f32[2,16,64], index: 0, kind: input, shape index: {}]
  %s1 = inlined_call_operand.vmem [shape: f32[2,1,10], index: 1, kind: input, shape index: {}]
  %s2 = inlined_call_operand.hbm [shape: f32[5,8,16], index: 2, kind: input, shape index: {}]
  %s3 = inlined_call_operand.vmem [shape: f32[5,64,64], index: 3, kind: input, shape index: {}]
  %s4 = inlined_call_operand.vmem [shape: f32[1,64], index: 4, kind: input, shape index: {}]
  %s5 = inlined_call_operand.hbm [shape: f32[5,4,8], index: 5, kind: input, shape index: {}]
  %s6 = inlined_call_operand.vmem [shape: f32[5,64,64], index: 6, kind: input, shape index: {}]
  %s7 = inlined_call_operand.vmem [shape: f32[1,64], index: 7, kind: input, shape index: {}]
  %s8 = inlined_call_operand.vmem [shape: f32[5,2,4], index: 8, kind: input, shape index: {}]
  %s9 = inlined_call_operand.hbm [shape: f32[5,64,64], index: 9, kind: input, shape index: {}]
  %s10 = inlined_call_operand.vmem [shape: f32[1,64], index: 10, kind: input, shape index: {}]
  %s11 = inlined_call_operand.vmem [shape: f32[2,64,32], index: 11, kind: input, shape index: {}]
  %s12 = inlined_call_operand.vmem [shape: f32[1,32], index: 12, kind: input, shape index: {}]
  %s13 = inlined_call_operand.hbm [shape: f32[32,32], index: 13, kind: input, shape index: {}]
  %s14 = inlined_call_operand.hbm [shape: f32[10,32], index: 14, kind: input, shape index: {}]
  %s15 = inlined_call_operand.hbm [shape: f32[1,32], index: 15, kind: input, shape index: {}]
  %s16 = inlined_call_operand.vmem [shape: f32[32,16], index: 16, kind: input, shape index: {}]
  %s17 = inlined_call_operand.hbm [shape: f32[1,16], index: 17, kind: input, shape index: {}]
  %s18 = inlined_call_operand.hbm [shape: f32[2,1,16], index: 18, kind: output, shape index: {}]
  %s19 = sld [smem:[#allocation0]]
  $region133: #{_forward.1} parent=0
    _
  %s21 = ssub.s32 1, %s19
  %s22 = scalar_select 0, %s21, %s19
  $region1: #{_forward.1} parent=0
    #allocation2 [shape = 'u8[20480]{0}', space=vmem, size = 0x5000, scoped, tag = 'input window, operand 2, single buffered']
    #allocation3 [shape = 's32[2]{0}', space=sflag, size = 0x8, scoped, tag = 'scoped memory for _forward.1']
    #allocation4 [shape = 's32[2]{0}', space=sflag, size = 0x8, scoped, tag = 'scoped memory for _forward.1']
    #allocation5 [shape = 'u8[10240]{0}', space=vmem, size = 0x2800, scoped, tag = 'input window, operand 5, single buffered']
    #allocation6 [shape = 's32[1]{0}', space=sflag, size = 0x4, scoped, tag = 'scoped memory for _forward.1']
    #allocation7 [shape = 'u8[163840]{0}', space=vmem, size = 0x28000, scoped, tag = 'input window, operand 9, single buffered']
    #allocation8 [shape = 'u8[16384]{0}', space=vmem, size = 0x4000, scoped, tag = 'input window, operand 13, single buffered']
    #allocation9 [shape = 's32[1]{0}', space=sflag, size = 0x4, scoped, tag = 'scoped memory for _forward.1']
    #allocation10 [shape = 'u8[8192]{0}', space=vmem, size = 0x2000, scoped, tag = 'input window, operand 14, single buffered']
    #allocation11 [shape = 'u8[512]{0}', space=vmem, size = 0x400, scoped, tag = 'input window, operand 15, single buffered']
    #allocation12 [shape = 's32[1]{0}', space=sflag, size = 0x4, scoped, tag = 'scoped memory for _forward.1']
    #allocation13 [shape = 'u8[512]{0}', space=vmem, size = 0x400, scoped, tag = 'input window, operand 17, single buffered']
    #allocation14 [shape = 'u8[1024]{0}', space=vmem, size = 0x400, scoped, tag = 'output window, operand 0']
    %23 = vsyncpa [#allocation3], 0
    %24 = vsyncpa [#allocation6], 0
    %25 = vsyncpa [#allocation9], 0
    %26 = vsyncpa [#allocation12], 0
    %27 = vsyncpa [#allocation4], 0
    %s28 = scalar_lea.sflag [#allocation4], 1
    %29 = vsyncpa %s28, 0
    loop: start=0, step=1, limit=4
    $region2: #{_forward.1} parent=1 // loop_pre_header
      _
    $region3: #{_forward.1} parent=1 // loop_header
      %s31 = sphi 0, %s35
      %p32 = scmp.ge.s32.totalorder %s31, 4
      %s41 = sphi 0, %s43
      %s44 = sphi 0, %s41
      %s45 = sphi 0, %s44
      %s61 = sphi 0, %s45
      %s67 = sphi 0, %s69
      %s70 = sphi 0, %s67
      %s71 = sphi 0, %s70
      %s87 = sphi 0, %s71
      %s91 = sphi 0, %s91
      %s93 = sphi 0, %s91
      %s94 = sphi 0, %s93
      %s108 = sphi 0, %s94
      %s112 = sphi 0, %s112
      %s114 = sphi 0, %s112
      %s115 = sphi 0, %s114
      %s129 = sphi 0, %s115
      %s133 = sphi 0, %s133
      %s135 = sphi 0, %s133
      %s136 = sphi 0, %s135
      %s150 = sphi 0, %s136
      %s154 = sphi 0, %s154
      %s156 = sphi 0, %s154
      %s157 = sphi 0, %s156
      %s171 = sphi 0, %s157
      %s175 = sphi 0, %s175
      %s177 = sphi 0, %s175
      %s178 = sphi 0, %s177
      %s192 = sphi 0, %s178
      %s196 = sphi 0, %s196
      %s198 = sphi 0, %s196
      %s199 = sphi 0, %s198
      %s213 = sphi 0, %s199
      %s217 = sphi 0, %s217
      %s219 = sphi 0, %s217
      %s220 = sphi 0, %s219
      %s234 = sphi 0, %s220
      %s238 = sphi 0, %s238
      %s240 = sphi 0, %s238
      %s241 = sphi 0, %s240
      %s255 = sphi 0, %s241
      %s259 = sphi 0, %s259
      %s261 = sphi 0, %s259
      %s262 = sphi 0, %s261
      %s276 = sphi 0, %s262
      %s280 = sphi 0, %s280
      %s282 = sphi 0, %s280
      %s283 = sphi 0, %s282
      %s297 = sphi 0, %s283
      %s301 = sphi 0, %s301
      %s303 = sphi 0, %s301
      %s304 = sphi 0, %s303
      %s318 = sphi 0, %s304
      %s322 = sphi 0, %s322
      %s324 = sphi 0, %s322
      %s325 = sphi 0, %s324
      %s339 = sphi 0, %s325
      %s343 = sphi 0, %s343
      %s345 = sphi 0, %s343
      %s346 = sphi 0, %s345
      %s360 = sphi 0, %s346
      %s364 = sphi 0, %s364
      %s366 = sphi 0, %s364
      %s367 = sphi 0, %s366
      %s381 = sphi 0, %s367
      %s385 = sphi 0, %s385
      %s387 = sphi 0, %s385
      %s388 = sphi 0, %s387
      %s402 = sphi 0, %s388
      %s406 = sphi 0, %s406
      %s408 = sphi 0, %s406
      %s409 = sphi 0, %s408
      %s423 = sphi 0, %s409
      %s429 = sphi 0, %s431
      %s432 = sphi 0, %s429
      %s433 = sphi 0, %s432
      %s449 = sphi 0, %s433
    $region4: #{_forward.1} parent=1 // loop_header_branch
      %34 = sbr.rel (%p32) target = $region8
    $region5: #{_forward.1} parent=1 // loop_body
      %s36 = ssub.s32 %s31, 1
      %s37 = ssub.s32 %s31, 2
      %s38 = sadd.s32 %s31, 1
      %s39 = ssub.s32 %s31, %s38
      %p40 = scmp.eq.s32.totalorder %s39, 0
      %s42 = sadd.s32 %s41, 1
      %s43 = scalar_select %p40, %s41, %s42
      %p46 = pneg %p40
      %p47 = scmp.eq.s32.totalorder %s31, 1
      %p48 = por %p46, %p47
      %p49 = scmp.ne.s32.totalorder %s41, %s44
      %p50 = scmp.eq.s32.totalorder %s31, 0
      %p51 = por %p49, %p50
      %p52 = scmp.ne.s32.totalorder %s41, %s44
      %p53 = scmp.eq.s32.totalorder %s36, 1
      %p54 = por %p52, %p53
      %p55 = scmp.ne.s32.totalorder %s44, %s45
      %p56 = scmp.eq.s32.totalorder %s36, 0
      %p57 = por %p55, %p56
      %p58 = scmp.ne.s32.totalorder %s44, %s45
      %p59 = scmp.eq.s32.totalorder %s37, 1
      %p60 = por %p58, %p59
      %p62 = scmp.ne.s32.totalorder %s45, %s61
      %p63 = scmp.eq.s32.totalorder %s37, 0
      %p64 = por %p62, %p63
      %s65 = ssub.s32 %s31, %s38
      %p66 = scmp.eq.s32.totalorder %s65, 0
      %s68 = sadd.s32 %s67, 1
      %s69 = scalar_select %p66, %s67, %s68
      %p72 = pneg %p66
      %p73 = scmp.eq.s32.totalorder %s31, 1
      %p74 = por %p72, %p73
      %p75 = scmp.ne.s32.totalorder %s67, %s70
      %p76 = scmp.eq.s32.totalorder %s31, 0
      %p77 = por %p75, %p76
      %p78 = scmp.ne.s32.totalorder %s67, %s70
      %p79 = scmp.eq.s32.totalorder %s36, 1
      %p80 = por %p78, %p79
      %p81 = scmp.ne.s32.totalorder %s70, %s71
      %p82 = scmp.eq.s32.totalorder %s36, 0
      %p83 = por %p81, %p82
      %p84 = scmp.ne.s32.totalorder %s70, %s71
      %p85 = scmp.eq.s32.totalorder %s37, 1
      %p86 = por %p84, %p85
      %p88 = scmp.ne.s32.totalorder %s71, %s87
      %p89 = scmp.eq.s32.totalorder %s37, 0
      %p90 = por %p88, %p89
      %s92 = sadd.s32 %s91, 1
      %p95 = scmp.eq.s32.totalorder %s31, 1
      %p96 = scmp.ne.s32.totalorder %s91, %s93
      %p97 = scmp.eq.s32.totalorder %s31, 0
      %p98 = por %p96, %p97
      %p99 = scmp.ne.s32.totalorder %s91, %s93
      %p100 = scmp.eq.s32.totalorder %s36, 1
      %p101 = por %p99, %p100
      %p102 = scmp.ne.s32.totalorder %s93, %s94
      %p103 = scmp.eq.s32.totalorder %s36, 0
      %p104 = por %p102, %p103
      %p105 = scmp.ne.s32.totalorder %s93, %s94
      %p106 = scmp.eq.s32.totalorder %s37, 1
      %p107 = por %p105, %p106
      %p109 = scmp.ne.s32.totalorder %s94, %s108
      %p110 = scmp.eq.s32.totalorder %s37, 0
      %p111 = por %p109, %p110
      %s113 = sadd.s32 %s112, 1
      %p116 = scmp.eq.s32.totalorder %s31, 1
      %p117 = scmp.ne.s32.totalorder %s112, %s114
      %p118 = scmp.eq.s32.totalorder %s31, 0
      %p119 = por %p117, %p118
      %p120 = scmp.ne.s32.totalorder %s112, %s114
      %p121 = scmp.eq.s32.totalorder %s36, 1
      %p122 = por %p120, %p121
      %p123 = scmp.ne.s32.totalorder %s114, %s115
      %p124 = scmp.eq.s32.totalorder %s36, 0
      %p125 = por %p123, %p124
      %p126 = scmp.ne.s32.totalorder %s114, %s115
      %p127 = scmp.eq.s32.totalorder %s37, 1
      %p128 = por %p126, %p127
      %p130 = scmp.ne.s32.totalorder %s115, %s129
      %p131 = scmp.eq.s32.totalorder %s37, 0
      %p132 = por %p130, %p131
      %s134 = sadd.s32 %s133, 1
      %p137 = scmp.eq.s32.totalorder %s31, 1
      %p138 = scmp.ne.s32.totalorder %s133, %s135
      %p139 = scmp.eq.s32.totalorder %s31, 0
      %p140 = por %p138, %p139
      %p141 = scmp.ne.s32.totalorder %s133, %s135
      %p142 = scmp.eq.s32.totalorder %s36, 1
      %p143 = por %p141, %p142
      %p144 = scmp.ne.s32.totalorder %s135, %s136
      %p145 = scmp.eq.s32.totalorder %s36, 0
      %p146 = por %p144, %p145
      %p147 = scmp.ne.s32.totalorder %s135, %s136
      %p148 = scmp.eq.s32.totalorder %s37, 1
      %p149 = por %p147, %p148
      %p151 = scmp.ne.s32.totalorder %s136, %s150
      %p152 = scmp.eq.s32.totalorder %s37, 0
      %p153 = por %p151, %p152
      %s155 = sadd.s32 %s154, 1
      %p158 = scmp.eq.s32.totalorder %s31, 1
      %p159 = scmp.ne.s32.totalorder %s154, %s156
      %p160 = scmp.eq.s32.totalorder %s31, 0
      %p161 = por %p159, %p160
      %p162 = scmp.ne.s32.totalorder %s154, %s156
      %p163 = scmp.eq.s32.totalorder %s36, 1
      %p164 = por %p162, %p163
      %p165 = scmp.ne.s32.totalorder %s156, %s157
      %p166 = scmp.eq.s32.totalorder %s36, 0
      %p167 = por %p165, %p166
      %p168 = scmp.ne.s32.totalorder %s156, %s157
      %p169 = scmp.eq.s32.totalorder %s37, 1
      %p170 = por %p168, %p169
      %p172 = scmp.ne.s32.totalorder %s157, %s171
      %p173 = scmp.eq.s32.totalorder %s37, 0
      %p174 = por %p172, %p173
      %s176 = sadd.s32 %s175, 1
      %p179 = scmp.eq.s32.totalorder %s31, 1
      %p180 = scmp.ne.s32.totalorder %s175, %s177
      %p181 = scmp.eq.s32.totalorder %s31, 0
      %p182 = por %p180, %p181
      %p183 = scmp.ne.s32.totalorder %s175, %s177
      %p184 = scmp.eq.s32.totalorder %s36, 1
      %p185 = por %p183, %p184
      %p186 = scmp.ne.s32.totalorder %s177, %s178
      %p187 = scmp.eq.s32.totalorder %s36, 0
      %p188 = por %p186, %p187
      %p189 = scmp.ne.s32.totalorder %s177, %s178
      %p190 = scmp.eq.s32.totalorder %s37, 1
      %p191 = por %p189, %p190
      %p193 = scmp.ne.s32.totalorder %s178, %s192
      %p194 = scmp.eq.s32.totalorder %s37, 0
      %p195 = por %p193, %p194
      %s197 = sadd.s32 %s196, 1
      %p200 = scmp.eq.s32.totalorder %s31, 1
      %p201 = scmp.ne.s32.totalorder %s196, %s198
      %p202 = scmp.eq.s32.totalorder %s31, 0
      %p203 = por %p201, %p202
      %p204 = scmp.ne.s32.totalorder %s196, %s198
      %p205 = scmp.eq.s32.totalorder %s36, 1
      %p206 = por %p204, %p205
      %p207 = scmp.ne.s32.totalorder %s198, %s199
      %p208 = scmp.eq.s32.totalorder %s36, 0
      %p209 = por %p207, %p208
      %p210 = scmp.ne.s32.totalorder %s198, %s199
      %p211 = scmp.eq.s32.totalorder %s37, 1
      %p212 = por %p210, %p211
      %p214 = scmp.ne.s32.totalorder %s199, %s213
      %p215 = scmp.eq.s32.totalorder %s37, 0
      %p216 = por %p214, %p215
      %s218 = sadd.s32 %s217, 1
      %p221 = scmp.eq.s32.totalorder %s31, 1
      %p222 = scmp.ne.s32.totalorder %s217, %s219
      %p223 = scmp.eq.s32.totalorder %s31, 0
      %p224 = por %p222, %p223
      %p225 = scmp.ne.s32.totalorder %s217, %s219
      %p226 = scmp.eq.s32.totalorder %s36, 1
      %p227 = por %p225, %p226
      %p228 = scmp.ne.s32.totalorder %s219, %s220
      %p229 = scmp.eq.s32.totalorder %s36, 0
      %p230 = por %p228, %p229
      %p231 = scmp.ne.s32.totalorder %s219, %s220
      %p232 = scmp.eq.s32.totalorder %s37, 1
      %p233 = por %p231, %p232
      %p235 = scmp.ne.s32.totalorder %s220, %s234
      %p236 = scmp.eq.s32.totalorder %s37, 0
      %p237 = por %p235, %p236
      %s239 = sadd.s32 %s238, 1
      %p242 = scmp.eq.s32.totalorder %s31, 1
      %p243 = scmp.ne.s32.totalorder %s238, %s240
      %p244 = scmp.eq.s32.totalorder %s31, 0
      %p245 = por %p243, %p244
      %p246 = scmp.ne.s32.totalorder %s238, %s240
      %p247 = scmp.eq.s32.totalorder %s36, 1
      %p248 = por %p246, %p247
      %p249 = scmp.ne.s32.totalorder %s240, %s241
      %p250 = scmp.eq.s32.totalorder %s36, 0
      %p251 = por %p249, %p250
      %p252 = scmp.ne.s32.totalorder %s240, %s241
      %p253 = scmp.eq.s32.totalorder %s37, 1
      %p254 = por %p252, %p253
      %p256 = scmp.ne.s32.totalorder %s241, %s255
      %p257 = scmp.eq.s32.totalorder %s37, 0
      %p258 = por %p256, %p257
      %s260 = sadd.s32 %s259, 1
      %p263 = scmp.eq.s32.totalorder %s31, 1
      %p264 = scmp.ne.s32.totalorder %s259, %s261
      %p265 = scmp.eq.s32.totalorder %s31, 0
      %p266 = por %p264, %p265
      %p267 = scmp.ne.s32.totalorder %s259, %s261
      %p268 = scmp.eq.s32.totalorder %s36, 1
      %p269 = por %p267, %p268
      %p270 = scmp.ne.s32.totalorder %s261, %s262
      %p271 = scmp.eq.s32.totalorder %s36, 0
      %p272 = por %p270, %p271
      %p273 = scmp.ne.s32.totalorder %s261, %s262
      %p274 = scmp.eq.s32.totalorder %s37, 1
      %p275 = por %p273, %p274
      %p277 = scmp.ne.s32.totalorder %s262, %s276
      %p278 = scmp.eq.s32.totalorder %s37, 0
      %p279 = por %p277, %p278
      %s281 = sadd.s32 %s280, 1
      %p284 = scmp.eq.s32.totalorder %s31, 1
      %p285 = scmp.ne.s32.totalorder %s280, %s282
      %p286 = scmp.eq.s32.totalorder %s31, 0
      %p287 = por %p285, %p286
      %p288 = scmp.ne.s32.totalorder %s280, %s282
      %p289 = scmp.eq.s32.totalorder %s36, 1
      %p290 = por %p288, %p289
      %p291 = scmp.ne.s32.totalorder %s282, %s283
      %p292 = scmp.eq.s32.totalorder %s36, 0
      %p293 = por %p291, %p292
      %p294 = scmp.ne.s32.totalorder %s282, %s283
      %p295 = scmp.eq.s32.totalorder %s37, 1
      %p296 = por %p294, %p295
      %p298 = scmp.ne.s32.totalorder %s283, %s297
      %p299 = scmp.eq.s32.totalorder %s37, 0
      %p300 = por %p298, %p299
      %s302 = sadd.s32 %s301, 1
      %p305 = scmp.eq.s32.totalorder %s31, 1
      %p306 = scmp.ne.s32.totalorder %s301, %s303
      %p307 = scmp.eq.s32.totalorder %s31, 0
      %p308 = por %p306, %p307
      %p309 = scmp.ne.s32.totalorder %s301, %s303
      %p310 = scmp.eq.s32.totalorder %s36, 1
      %p311 = por %p309, %p310
      %p312 = scmp.ne.s32.totalorder %s303, %s304
      %p313 = scmp.eq.s32.totalorder %s36, 0
      %p314 = por %p312, %p313
      %p315 = scmp.ne.s32.totalorder %s303, %s304
      %p316 = scmp.eq.s32.totalorder %s37, 1
      %p317 = por %p315, %p316
      %p319 = scmp.ne.s32.totalorder %s304, %s318
      %p320 = scmp.eq.s32.totalorder %s37, 0
      %p321 = por %p319, %p320
      %s323 = sadd.s32 %s322, 1
      %p326 = scmp.eq.s32.totalorder %s31, 1
      %p327 = scmp.ne.s32.totalorder %s322, %s324
      %p328 = scmp.eq.s32.totalorder %s31, 0
      %p329 = por %p327, %p328
      %p330 = scmp.ne.s32.totalorder %s322, %s324
      %p331 = scmp.eq.s32.totalorder %s36, 1
      %p332 = por %p330, %p331
      %p333 = scmp.ne.s32.totalorder %s324, %s325
      %p334 = scmp.eq.s32.totalorder %s36, 0
      %p335 = por %p333, %p334
      %p336 = scmp.ne.s32.totalorder %s324, %s325
      %p337 = scmp.eq.s32.totalorder %s37, 1
      %p338 = por %p336, %p337
      %p340 = scmp.ne.s32.totalorder %s325, %s339
      %p341 = scmp.eq.s32.totalorder %s37, 0
      %p342 = por %p340, %p341
      %s344 = sadd.s32 %s343, 1
      %p347 = scmp.eq.s32.totalorder %s31, 1
      %p348 = scmp.ne.s32.totalorder %s343, %s345
      %p349 = scmp.eq.s32.totalorder %s31, 0
      %p350 = por %p348, %p349
      %p351 = scmp.ne.s32.totalorder %s343, %s345
      %p352 = scmp.eq.s32.totalorder %s36, 1
      %p353 = por %p351, %p352
      %p354 = scmp.ne.s32.totalorder %s345, %s346
      %p355 = scmp.eq.s32.totalorder %s36, 0
      %p356 = por %p354, %p355
      %p357 = scmp.ne.s32.totalorder %s345, %s346
      %p358 = scmp.eq.s32.totalorder %s37, 1
      %p359 = por %p357, %p358
      %p361 = scmp.ne.s32.totalorder %s346, %s360
      %p362 = scmp.eq.s32.totalorder %s37, 0
      %p363 = por %p361, %p362
      %s365 = sadd.s32 %s364, 1
      %p368 = scmp.eq.s32.totalorder %s31, 1
      %p369 = scmp.ne.s32.totalorder %s364, %s366
      %p370 = scmp.eq.s32.totalorder %s31, 0
      %p371 = por %p369, %p370
      %p372 = scmp.ne.s32.totalorder %s364, %s366
      %p373 = scmp.eq.s32.totalorder %s36, 1
      %p374 = por %p372, %p373
      %p375 = scmp.ne.s32.totalorder %s366, %s367
      %p376 = scmp.eq.s32.totalorder %s36, 0
      %p377 = por %p375, %p376
      %p378 = scmp.ne.s32.totalorder %s366, %s367
      %p379 = scmp.eq.s32.totalorder %s37, 1
      %p380 = por %p378, %p379
      %p382 = scmp.ne.s32.totalorder %s367, %s381
      %p383 = scmp.eq.s32.totalorder %s37, 0
      %p384 = por %p382, %p383
      %s386 = sadd.s32 %s385, 1
      %p389 = scmp.eq.s32.totalorder %s31, 1
      %p390 = scmp.ne.s32.totalorder %s385, %s387
      %p391 = scmp.eq.s32.totalorder %s31, 0
      %p392 = por %p390, %p391
      %p393 = scmp.ne.s32.totalorder %s385, %s387
      %p394 = scmp.eq.s32.totalorder %s36, 1
      %p395 = por %p393, %p394
      %p396 = scmp.ne.s32.totalorder %s387, %s388
      %p397 = scmp.eq.s32.totalorder %s36, 0
      %p398 = por %p396, %p397
      %p399 = scmp.ne.s32.totalorder %s387, %s388
      %p400 = scmp.eq.s32.totalorder %s37, 1
      %p401 = por %p399, %p400
      %p403 = scmp.ne.s32.totalorder %s388, %s402
      %p404 = scmp.eq.s32.totalorder %s37, 0
      %p405 = por %p403, %p404
      %s407 = sadd.s32 %s406, 1
      %p410 = scmp.eq.s32.totalorder %s31, 1
      %p411 = scmp.ne.s32.totalorder %s406, %s408
      %p412 = scmp.eq.s32.totalorder %s31, 0
      %p413 = por %p411, %p412
      %p414 = scmp.ne.s32.totalorder %s406, %s408
      %p415 = scmp.eq.s32.totalorder %s36, 1
      %p416 = por %p414, %p415
      %p417 = scmp.ne.s32.totalorder %s408, %s409
      %p418 = scmp.eq.s32.totalorder %s36, 0
      %p419 = por %p417, %p418
      %p420 = scmp.ne.s32.totalorder %s408, %s409
      %p421 = scmp.eq.s32.totalorder %s37, 1
      %p422 = por %p420, %p421
      %p424 = scmp.ne.s32.totalorder %s409, %s423
      %p425 = scmp.eq.s32.totalorder %s37, 0
      %p426 = por %p424, %p425
      %s427 = ssub.s32 %s31, %s38
      %p428 = scmp.eq.s32.totalorder %s427, 0
      %s430 = sadd.s32 %s429, 1
      %s431 = scalar_select %p428, %s429, %s430
      %p434 = pneg %p428
      %p435 = scmp.eq.s32.totalorder %s31, 1
      %p436 = por %p434, %p435
      %p437 = scmp.ne.s32.totalorder %s429, %s432
      %p438 = scmp.eq.s32.totalorder %s31, 0
      %p439 = por %p437, %p438
      %p440 = scmp.ne.s32.totalorder %s429, %s432
      %p441 = scmp.eq.s32.totalorder %s36, 1
      %p442 = por %p440, %p441
      %p443 = scmp.ne.s32.totalorder %s432, %s433
      %p444 = scmp.eq.s32.totalorder %s36, 0
      %p445 = por %p443, %p444
      %p446 = scmp.ne.s32.totalorder %s432, %s433
      %p447 = scmp.eq.s32.totalorder %s37, 1
      %p448 = por %p446, %p447
      %p450 = scmp.ne.s32.totalorder %s433, %s449
      %p451 = scmp.eq.s32.totalorder %s37, 0
      %p452 = por %p450, %p451
      %p453 = scmp.le.s32.totalorder 1, %s31
      %p454 = scmp.lt.s32.totalorder %s31, 3
      %p455 = pnand %p453, %p454
      %p456 = pneg %p455
      // Predicated region
      $region9: #{_forward.1} parent=5 // pred_check
        _
      $region10: #{_forward.1} parent=5 // pred_check_branch
        %458 = sbr.rel (%p455) target = $region12
      $region11: #{_forward.1} parent=5 // pred_region
        %s459 = ssub.s32 %s31, 1
        // Predicated region
        $region13: #{_forward.1} parent=11 // pred_check
          %p460 = pneg %p104
        $region14: #{_forward.1} parent=11 // pred_check_branch
          %462 = sbr.rel (%p460) target = $region16
        $region15: #{_forward.1} parent=11 // pred_region
          %s464 = ssub.s32 640, 640
          %465 = vsyncadd [#allocation3], %s464
          %s466 = sshll.u32 [#allocation2], 4
          %s467 = int_to_ptr.vmem [resolvable:$true] %s466
          %472 = dma.hbm_to_vmem [thread:$0]  %s2, 640, %s467, [#allocation3], 128, 128, 8
        $region16: #{_forward.1} parent=11 // pred_fallthru
          _
        // Predicated region
        $region17: #{_forward.1} parent=11 // pred_check
          %p473 = pneg %p125
        $region18: #{_forward.1} parent=11 // pred_check_branch
          %475 = sbr.rel (%p473) target = $region20
        $region19: #{_forward.1} parent=11 // pred_region
          _
        $region20: #{_forward.1} parent=11 // pred_fallthru
          _
        // Predicated region
        $region21: #{_forward.1} parent=11 // pred_check
          %p476 = pneg %p146
        $region22: #{_forward.1} parent=11 // pred_check_branch
          %478 = sbr.rel (%p476) target = $region24
        $region23: #{_forward.1} parent=11 // pred_region
          _
        $region24: #{_forward.1} parent=11 // pred_fallthru
          _
        // Predicated region
        $region25: #{_forward.1} parent=11 // pred_check
          %p479 = pneg %p167
        $region26: #{_forward.1} parent=11 // pred_check_branch
          %481 = sbr.rel (%p479) target = $region28
        $region27: #{_forward.1} parent=11 // pred_region
          %s483 = ssub.s32 320, 320
          %484 = vsyncadd [#allocation6], %s483
          %s485 = sshll.u32 [#allocation5], 4
          %s486 = int_to_ptr.vmem [resolvable:$true] %s485
          %491 = dma.hbm_to_vmem [thread:$0]  %s5, 320, %s486, [#allocation6], 64, 64, 4
        $region28: #{_forward.1} parent=11 // pred_fallthru
          _
        // Predicated region
        $region29: #{_forward.1} parent=11 // pred_check
          %p492 = pneg %p188
        $region30: #{_forward.1} parent=11 // pred_check_branch
          %494 = sbr.rel (%p492) target = $region32
        $region31: #{_forward.1} parent=11 // pred_region
          _
        $region32: #{_forward.1} parent=11 // pred_fallthru
          _
        // Predicated region
        $region33: #{_forward.1} parent=11 // pred_check
          %p495 = pneg %p209
        $region34: #{_forward.1} parent=11 // pred_check_branch
          %497 = sbr.rel (%p495) target = $region36
        $region35: #{_forward.1} parent=11 // pred_region
          _
        $region36: #{_forward.1} parent=11 // pred_fallthru
          _
        // Predicated region
        $region37: #{_forward.1} parent=11 // pred_check
          %p498 = pneg %p230
        $region38: #{_forward.1} parent=11 // pred_check_branch
          %500 = sbr.rel (%p498) target = $region40
        $region39: #{_forward.1} parent=11 // pred_region
          _
        $region40: #{_forward.1} parent=11 // pred_fallthru
          _
        // Predicated region
        $region41: #{_forward.1} parent=11 // pred_check
          %p501 = pneg %p251
        $region42: #{_forward.1} parent=11 // pred_check_branch
          %503 = sbr.rel (%p501) target = $region44
        $region43: #{_forward.1} parent=11 // pred_region
          %s505 = ssub.s32 5120, 5120
          %506 = vsyncadd [#allocation6], %s505
          %s507 = sshll.u32 [#allocation7], 4
          %s508 = int_to_ptr.vmem [resolvable:$true] %s507
          %513 = dma.hbm_to_vmem [thread:$0]  %s9, 5120, %s508, [#allocation6], 128, 128, 8
        $region44: #{_forward.1} parent=11 // pred_fallthru
          _
        // Predicated region
        $region45: #{_forward.1} parent=11 // pred_check
          %p514 = pneg %p272
        $region46: #{_forward.1} parent=11 // pred_check_branch
          %516 = sbr.rel (%p514) target = $region48
        $region47: #{_forward.1} parent=11 // pred_region
          _
        $region48: #{_forward.1} parent=11 // pred_fallthru
          _
        // Predicated region
        $region49: #{_forward.1} parent=11 // pred_check
          %p517 = pneg %p293
        $region50: #{_forward.1} parent=11 // pred_check_branch
          %519 = sbr.rel (%p517) target = $region52
        $region51: #{_forward.1} parent=11 // pred_region
          _
        $region52: #{_forward.1} parent=11 // pred_fallthru
          _
        // Predicated region
        $region53: #{_forward.1} parent=11 // pred_check
          %p520 = pneg %p314
        $region54: #{_forward.1} parent=11 // pred_check_branch
          %522 = sbr.rel (%p520) target = $region56
        $region55: #{_forward.1} parent=11 // pred_region
          _
        $region56: #{_forward.1} parent=11 // pred_fallthru
          _
        // Predicated region
        $region57: #{_forward.1} parent=11 // pred_check
          %p523 = pneg %p335
        $region58: #{_forward.1} parent=11 // pred_check_branch
          %525 = sbr.rel (%p523) target = $region60
        $region59: #{_forward.1} parent=11 // pred_region
          %s527 = ssub.s32 512, 512
          %528 = vsyncadd [#allocation9], %s527
          %s529 = sshll.u32 [#allocation8], 4
          %s530 = int_to_ptr.vmem [resolvable:$true] %s529
          %535 = dma.hbm_to_vmem [thread:$0]  %s13, 512, %s530, [#allocation9], 128, 128, 8
        $region60: #{_forward.1} parent=11 // pred_fallthru
          _
        // Predicated region
        $region61: #{_forward.1} parent=11 // pred_check
          %p536 = pneg %p356
        $region62: #{_forward.1} parent=11 // pred_check_branch
          %538 = sbr.rel (%p536) target = $region64
        $region63: #{_forward.1} parent=11 // pred_region
          %s540 = ssub.s32 256, 256
          %541 = vsyncadd [#allocation9], %s540
          %s542 = sshll.u32 [#allocation10], 4
          %s543 = int_to_ptr.vmem [resolvable:$true] %s542
          %548 = dma.hbm_to_vmem [thread:$0]  %s14, 256, %s543, [#allocation9], 128, 128, 8
        $region64: #{_forward.1} parent=11 // pred_fallthru
          _
        // Predicated region
        $region65: #{_forward.1} parent=11 // pred_check
          %p549 = pneg %p377
        $region66: #{_forward.1} parent=11 // pred_check_branch
          %551 = sbr.rel (%p549) target = $region68
        $region67: #{_forward.1} parent=11 // pred_region
          %s553 = ssub.s32 16, 16
          %554 = vsyncadd [#allocation12], %s553
          %s556 = sshll.u32 [#allocation11], 4
          %s557 = int_to_ptr.vmem [resolvable:$true] %s556
          %559 = dma.hbm_to_vmem [thread:$0]  %s15, 16, %s557, [#allocation12]
        $region68: #{_forward.1} parent=11 // pred_fallthru
          _
        // Predicated region
        $region69: #{_forward.1} parent=11 // pred_check
          %p560 = pneg %p398
        $region70: #{_forward.1} parent=11 // pred_check_branch
          %562 = sbr.rel (%p560) target = $region72
        $region71: #{_forward.1} parent=11 // pred_region
          _
        $region72: #{_forward.1} parent=11 // pred_fallthru
          _
        // Predicated region
        $region73: #{_forward.1} parent=11 // pred_check
          %p563 = pneg %p419
        $region74: #{_forward.1} parent=11 // pred_check_branch
          %565 = sbr.rel (%p563) target = $region76
        $region75: #{_forward.1} parent=11 // pred_region
          %s567 = ssub.s32 16, 16
          %568 = vsyncadd [#allocation12], %s567
          %s570 = sshll.u32 [#allocation13], 4
          %s571 = int_to_ptr.vmem [resolvable:$true] %s570
          %573 = dma.hbm_to_vmem [thread:$0]  %s17, 16, %s571, [#allocation12]
        $region76: #{_forward.1} parent=11 // pred_fallthru
          _
      $region12: #{_forward.1} parent=5 // pred_fallthru
        _
      %p574 = scmp.lt.s32.totalorder %s31, 2
      // Predicated region
      $region77: #{_forward.1} parent=5 // pred_check
        %p575 = pneg %p574
      $region78: #{_forward.1} parent=5 // pred_check_branch
        %577 = sbr.rel (%p575) target = $region80
      $region79: #{_forward.1} parent=5 // pred_region
        // Predicated region
        $region81: #{_forward.1} parent=79 // pred_check
          %p578 = pneg %p51
        $region82: #{_forward.1} parent=79 // pred_check_branch
          %580 = sbr.rel (%p578) target = $region84
        $region83: #{_forward.1} parent=79 // pred_region
          %p581 = scmp.lt.s32.totalorder %s31, 1
          %s582 = scalar_select %p581, %s31, 1
          %s583 = smul.addr %s582, 2
          %s584 = smul.addr %s583, 8
          %s585 = scalar_lea.vmem %s0, %s584
        $region84: #{_forward.1} parent=79 // pred_fallthru
          _
        // Predicated region
        $region85: #{_forward.1} parent=79 // pred_check
          %p586 = pneg %p77
        $region86: #{_forward.1} parent=79 // pred_check_branch
          %588 = sbr.rel (%p586) target = $region88
        $region87: #{_forward.1} parent=79 // pred_region
          %p589 = scmp.lt.s32.totalorder %s31, 1
          %s590 = scalar_select %p589, %s31, 1
          %s591 = scalar_lea.vmem %s1, %s590
        $region88: #{_forward.1} parent=79 // pred_fallthru
          _
      $region80: #{_forward.1} parent=5 // pred_fallthru
        _
      %p592 = scmp.le.s32.totalorder 1, %s31
      %p593 = scmp.lt.s32.totalorder %s31, 3
      %p594 = pnand %p592, %p593
      %p595 = pneg %p594
      // Predicated region
      $region89: #{_forward.1} parent=5 // pred_check
        _
      $region90: #{_forward.1} parent=5 // pred_check_branch
        %597 = sbr.rel (%p594) target = $region92
      $region91: #{_forward.1} parent=5 // pred_region
        %s598 = ssub.s32 %s31, 1
        // Predicated region
        $region93: #{_forward.1} parent=91 // pred_check
          %p599 = pneg %p104
        $region94: #{_forward.1} parent=91 // pred_check_branch
          %601 = sbr.rel (%p599) target = $region96
        $region95: #{_forward.1} parent=91 // pred_region
          %602 = dma.done [#allocation3], 640
        $region96: #{_forward.1} parent=91 // pred_fallthru
          _
        // Predicated region
        $region97: #{_forward.1} parent=91 // pred_check
          %p603 = pneg %p167
        $region98: #{_forward.1} parent=91 // pred_check_branch
          %605 = sbr.rel (%p603) target = $region100
        $region99: #{_forward.1} parent=91 // pred_region
          %606 = dma.done [#allocation6], 320
        $region100: #{_forward.1} parent=91 // pred_fallthru
          _
        // Predicated region
        $region101: #{_forward.1} parent=91 // pred_check
          %p607 = pneg %p251
        $region102: #{_forward.1} parent=91 // pred_check_branch
          %609 = sbr.rel (%p607) target = $region104
        $region103: #{_forward.1} parent=91 // pred_region
          %610 = dma.done [#allocation6], 5120
        $region104: #{_forward.1} parent=91 // pred_fallthru
          _
        // Predicated region
        $region105: #{_forward.1} parent=91 // pred_check
          %p611 = pneg %p335
        $region106: #{_forward.1} parent=91 // pred_check_branch
          %613 = sbr.rel (%p611) target = $region108
        $region107: #{_forward.1} parent=91 // pred_region
          %614 = dma.done [#allocation9], 512
        $region108: #{_forward.1} parent=91 // pred_fallthru
          _
        // Predicated region
        $region109: #{_forward.1} parent=91 // pred_check
          %p615 = pneg %p356
        $region110: #{_forward.1} parent=91 // pred_check_branch
          %617 = sbr.rel (%p615) target = $region112
        $region111: #{_forward.1} parent=91 // pred_region
          %618 = dma.done [#allocation9], 256
        $region112: #{_forward.1} parent=91 // pred_fallthru
          _
        // Predicated region
        $region113: #{_forward.1} parent=91 // pred_check
          %p619 = pneg %p377
        $region114: #{_forward.1} parent=91 // pred_check_branch
          %621 = sbr.rel (%p619) target = $region116
        $region115: #{_forward.1} parent=91 // pred_region
          %622 = dma.done [#allocation12], 16
        $region116: #{_forward.1} parent=91 // pred_fallthru
          _
        // Predicated region
        $region117: #{_forward.1} parent=91 // pred_check
          %p623 = pneg %p419
        $region118: #{_forward.1} parent=91 // pred_check_branch
          %625 = sbr.rel (%p623) target = $region120
        $region119: #{_forward.1} parent=91 // pred_region
          %626 = dma.done [#allocation12], 16
        $region120: #{_forward.1} parent=91 // pred_fallthru
          _
        %p627 = scmp.lt.s32.totalorder %s36, 1
        %s628 = scalar_select %p627, %s36, 1
        %s629 = smul.addr %s628, 2
        %s630 = smul.addr %s629, 8
        %s631 = scalar_lea.vmem %s0, %s630
        %p632 = pneg %p57
        %p633 = pneg %p54
        %p634 = scmp.lt.s32.totalorder %s36, 1
        %s635 = scalar_select %p634, %s36, 1
        %s636 = scalar_lea.vmem %s1, %s635
        %p637 = pneg %p83
        %p638 = pneg %p80
        %p639 = pneg %p104
        %p640 = pneg %p101
        %p641 = pneg %p125
        %p642 = pneg %p122
        %p643 = pneg %p146
        %p644 = pneg %p143
        %p645 = pneg %p167
        %p646 = pneg %p164
        %p647 = pneg %p188
        %p648 = pneg %p185
        %p649 = pneg %p209
        %p650 = pneg %p206
        %p651 = pneg %p230
        %p652 = pneg %p227
        %p653 = pneg %p251
        %p654 = pneg %p248
        %p655 = pneg %p272
        %p656 = pneg %p269
        %p657 = pneg %p293
        %p658 = pneg %p290
        %p659 = pneg %p314
        %p660 = pneg %p311
        %p661 = pneg %p335
        %p662 = pneg %p332
        %p663 = pneg %p356
        %p664 = pneg %p353
        %p665 = pneg %p377
        %p666 = pneg %p374
        %p667 = pneg %p398
        %p668 = pneg %p395
        %p669 = pneg %p419
        %p670 = pneg %p416
        %p671 = pneg %p445
        %p672 = pneg %p442
        %s673 = sand.u32 %s432, 1
        %s674 = scalar_lea.sflag [#allocation4], %s673
        %s675 = sand.u32 %s432, 1
        %s676 = scalar_lea.vmem [#allocation14], %s675
        %p677 = scmp.lt.s32.totalorder %s36, 1
        %s678 = scalar_select %p677, %s36, 1
        %s679 = smul.addr %s678, 2
        %s680 = smul.addr %s679, 8
        %s681 = scalar_lea.vmem %s0, %s680
        %p682 = scmp.lt.s32.totalorder %s36, 1
        %s683 = scalar_select %p682, %s36, 1
        %s684 = scalar_lea.vmem %s1, %s683
        %v685 = vld [vmem:[%s681] sm:$0xff]
        %v686 = vld [vmem:[%s681 + $0x8] sm:$0xff]
        %v687 = vld [vmem:[#allocation2] sm:$0xff]
        %vm688 = vcmask 130048
        %v690 = vsel %vm688, %v687, 0
        %692 = vmatprep.subr.mxu0 0.0
        %693 = vmatpush1.msra.mxu0 %v685
        %694 = vmatprep.subr.mxu0 0.0
        %695 = vmatpush1.msra.mxu0 %v686
        %696 = vmatprep.subr.mxu0 0.0
        %697 = vmatpush1.msra.mxu0 0.0
        %698 = vmatprep.subr.mxu0 0.0
        %699 = vmatpush1.msra.mxu0 0.0
        %700 = vmatprep.subr.mxu0 0.0
        %701 = vmatpush1.msra.mxu0 0.0
        %702 = vmatprep.subr.mxu0 0.0
        %703 = vmatpush1.msra.mxu0 0.0
        %704 = vmatprep.subr.mxu0 0.0
        %705 = vmatpush1.msra.mxu0 0.0
        %706 = vmatprep.subr.mxu0 0.0
        %707 = vmatpush1.msra.mxu0 0.0
        %708 = vmatprep.subr.mxu0 0.0
        %709 = vmatpush1.msra.mxu0 0.0
        %710 = vmatprep.subr.mxu0 0.0
        %711 = vmatpush1.msra.mxu0 0.0
        %712 = vmatprep.subr.mxu0 0.0
        %713 = vmatpush1.msra.mxu0 0.0
        %714 = vmatprep.subr.mxu0 0.0
        %715 = vmatpush1.msra.mxu0 0.0
        %716 = vmatprep.subr.mxu0 0.0
        %717 = vmatpush1.msra.mxu0 0.0
        %718 = vmatprep.subr.mxu0 0.0
        %719 = vmatpush1.msra.mxu0 0.0
        %720 = vmatprep.subr.mxu0 0.0
        %721 = vmatpush1.msra.mxu0 0.0
        %722 = vmatprep.subr.mxu0 0.0
        %723 = vmatpush1.msra.mxu0 0.0
        %724 = vmatprep.subr.mxu0 0.0
        %725 = vmatpush1.msra.mxu0 0.0
        %726 = vmatprep.subr.mxu0 0.0
        %727 = vmatpush1.msra.mxu0 0.0
        %728 = vmatprep.subr.mxu0 0.0
        %729 = vmatpush1.msra.mxu0 0.0
        %730 = vmatprep.subr.mxu0 0.0
        %731 = vmatpush1.msra.mxu0 0.0
        %732 = vmatprep.subr.mxu0 0.0
        %733 = vmatpush1.msra.mxu0 0.0
        %734 = vmatprep.subr.mxu0 0.0
        %735 = vmatpush1.msra.mxu0 0.0
        %736 = vmatprep.subr.mxu0 0.0
        %737 = vmatpush1.msra.mxu0 0.0
        %738 = vmatprep.subr.mxu0 0.0
        %739 = vmatpush1.msra.mxu0 0.0
        %740 = vmatprep.subr.mxu0 0.0
        %741 = vmatpush1.msra.mxu0 0.0
        %742 = vmatprep.subr.mxu0 0.0
        %743 = vmatpush1.msra.mxu0 0.0
        %744 = vmatprep.subr.mxu0 0.0
        %745 = vmatpush1.msra.mxu0 0.0
        %746 = vmatprep.subr.mxu0 0.0
        %747 = vmatpush1.msra.mxu0 0.0
        %748 = vmatprep.subr.mxu0 0.0
        %749 = vmatpush1.msra.mxu0 0.0
        %750 = vmatprep.subr.mxu0 0.0
        %751 = vmatpush1.msra.mxu0 0.0
        %752 = vmatprep.subr.mxu0 0.0
        %753 = vmatpush1.msra.mxu0 0.0
        %754 = vmatprep.subr.mxu0 0.0
        %755 = vmatpush1.msra.mxu0 0.0
        %756 = vmatprep.mubr.f32.mxu0 0.0
        %757 = vmatmul.mubr.f32.gmra.mrb[0].mxu0 %v690
        %v758 = vpop.f32.mrb[0].mxu0
        %v759 = vadd.f32 0.0, %v758
        %v760 = vpop.f32.mrb[0].mxu0
        %761 = vdwg.mxu0
        %v762 = vld [vmem:[%s3] sm:$0xff]
        %v763 = vld [vmem:[%s3 + $0x8] sm:$0xff]
        %v764 = vld [vmem:[%s3 + $0x10] sm:$0xff]
        %v765 = vld [vmem:[%s3 + $0x18] sm:$0xff]
        %v766 = vld [vmem:[%s3 + $0x20] sm:$0xff]
        %v767 = vld [vmem:[%s3 + $0x28] sm:$0xff]
        %v768 = vld [vmem:[%s3 + $0x30] sm:$0xff]
        %v769 = vld [vmem:[%s3 + $0x38] sm:$0xff]
        %s770 = scalar_lea.vmem [#allocation2], 8
        %v771 = vld [vmem:[%s770] sm:$0xff]
        %v773 = vsel %vm688, %v771, 0
        %775 = vmatprep.subr.mxu0 0.0
        %776 = vmatpush1.msra.mxu0 %v685
        %777 = vmatprep.subr.mxu0 0.0
        %778 = vmatpush1.msra.mxu0 %v686
        %779 = vmatprep.subr.mxu0 0.0
        %780 = vmatpush1.msra.mxu0 0.0
        %781 = vmatprep.subr.mxu0 0.0
        %782 = vmatpush1.msra.mxu0 0.0
        %783 = vmatprep.subr.mxu0 0.0
        %784 = vmatpush1.msra.mxu0 0.0
        %785 = vmatprep.subr.mxu0 0.0
        %786 = vmatpush1.msra.mxu0 0.0
        %787 = vmatprep.subr.mxu0 0.0
        %788 = vmatpush1.msra.mxu0 0.0
        %789 = vmatprep.subr.mxu0 0.0
        %790 = vmatpush1.msra.mxu0 0.0
        %791 = vmatprep.subr.mxu0 0.0
        %792 = vmatpush1.msra.mxu0 0.0
        %793 = vmatprep.subr.mxu0 0.0
        %794 = vmatpush1.msra.mxu0 0.0
        %795 = vmatprep.subr.mxu0 0.0
        %796 = vmatpush1.msra.mxu0 0.0
        %797 = vmatprep.subr.mxu0 0.0
        %798 = vmatpush1.msra.mxu0 0.0
        %799 = vmatprep.subr.mxu0 0.0
        %800 = vmatpush1.msra.mxu0 0.0
        %801 = vmatprep.subr.mxu0 0.0
        %802 = vmatpush1.msra.mxu0 0.0
        %803 = vmatprep.subr.mxu0 0.0
        %804 = vmatpush1.msra.mxu0 0.0
        %805 = vmatprep.subr.mxu0 0.0
        %806 = vmatpush1.msra.mxu0 0.0
        %807 = vmatprep.subr.mxu0 0.0
        %808 = vmatpush1.msra.mxu0 0.0
        %809 = vmatprep.subr.mxu0 0.0
        %810 = vmatpush1.msra.mxu0 0.0
        %811 = vmatprep.subr.mxu0 0.0
        %812 = vmatpush1.msra.mxu0 0.0
        %813 = vmatprep.subr.mxu0 0.0
        %814 = vmatpush1.msra.mxu0 0.0
        %815 = vmatprep.subr.mxu0 0.0
        %816 = vmatpush1.msra.mxu0 0.0
        %817 = vmatprep.subr.mxu0 0.0
        %818 = vmatpush1.msra.mxu0 0.0
        %819 = vmatprep.subr.mxu0 0.0
        %820 = vmatpush1.msra.mxu0 0.0
        %821 = vmatprep.subr.mxu0 0.0
        %822 = vmatpush1.msra.mxu0 0.0
        %823 = vmatprep.subr.mxu0 0.0
        %824 = vmatpush1.msra.mxu0 0.0
        %825 = vmatprep.subr.mxu0 0.0
        %826 = vmatpush1.msra.mxu0 0.0
        %827 = vmatprep.subr.mxu0 0.0
        %828 = vmatpush1.msra.mxu0 0.0
        %829 = vmatprep.subr.mxu0 0.0
        %830 = vmatpush1.msra.mxu0 0.0
        %831 = vmatprep.subr.mxu0 0.0
        %832 = vmatpush1.msra.mxu0 0.0
        %833 = vmatprep.subr.mxu0 0.0
        %834 = vmatpush1.msra.mxu0 0.0
        %835 = vmatprep.subr.mxu0 0.0
        %836 = vmatpush1.msra.mxu0 0.0
        %837 = vmatprep.subr.mxu0 0.0
        %838 = vmatpush1.msra.mxu0 0.0
        %839 = vmatprep.mubr.f32.mxu0 0.0
        %840 = vmatmul.mubr.f32.gmra.mrb[0].mxu0 %v773
        %v841 = vpop.f32.mrb[0].mxu0
        %v842 = vadd.f32 0.0, %v841
        %v843 = vpop.f32.mrb[0].mxu0
        %844 = vdwg.mxu0
        %s845 = scalar_lea.vmem %s3, 64
        %v846 = vld [vmem:[%s845] sm:$0xff]
        %v847 = vld [vmem:[%s845 + $0x8] sm:$0xff]
        %v848 = vld [vmem:[%s845 + $0x10] sm:$0xff]
        %v849 = vld [vmem:[%s845 + $0x18] sm:$0xff]
        %v850 = vld [vmem:[%s845 + $0x20] sm:$0xff]
        %v851 = vld [vmem:[%s845 + $0x28] sm:$0xff]
        %v852 = vld [vmem:[%s845 + $0x30] sm:$0xff]
        %v853 = vld [vmem:[%s845 + $0x38] sm:$0xff]
        %vm854 = vcmask 523264
        %v856 = vsel %vm854, %v842, 0
        %858 = vmatprep.subr.mxu0 0.0
        %859 = vmatpush1.msra.mxu0 %v846
        %860 = vmatprep.subr.mxu0 0.0
        %861 = vmatpush1.msra.mxu0 %v847
        %862 = vmatprep.subr.mxu0 0.0
        %863 = vmatpush1.msra.mxu0 %v848
        %864 = vmatprep.subr.mxu0 0.0
        %865 = vmatpush1.msra.mxu0 %v849
        %866 = vmatprep.subr.mxu0 0.0
        %867 = vmatpush1.msra.mxu0 %v850
        %868 = vmatprep.subr.mxu0 0.0
        %869 = vmatpush1.msra.mxu0 %v851
        %870 = vmatprep.subr.mxu0 0.0
        %871 = vmatpush1.msra.mxu0 %v852
        %872 = vmatprep.subr.mxu0 0.0
        %873 = vmatpush1.msra.mxu0 %v853
        %874 = vmatprep.subr.mxu0 0.0
        %875 = vmatpush1.msra.mxu0 0.0
        %876 = vmatprep.subr.mxu0 0.0
        %877 = vmatpush1.msra.mxu0 0.0
        %878 = vmatprep.subr.mxu0 0.0
        %879 = vmatpush1.msra.mxu0 0.0
        %880 = vmatprep.subr.mxu0 0.0
        %881 = vmatpush1.msra.mxu0 0.0
        %882 = vmatprep.subr.mxu0 0.0
        %883 = vmatpush1.msra.mxu0 0.0
        %884 = vmatprep.subr.mxu0 0.0
        %885 = vmatpush1.msra.mxu0 0.0
        %886 = vmatprep.subr.mxu0 0.0
        %887 = vmatpush1.msra.mxu0 0.0
        %888 = vmatprep.subr.mxu0 0.0
        %889 = vmatpush1.msra.mxu0 0.0
        %890 = vmatprep.subr.mxu0 0.0
        %891 = vmatpush1.msra.mxu0 0.0
        %892 = vmatprep.subr.mxu0 0.0
        %893 = vmatpush1.msra.mxu0 0.0
        %894 = vmatprep.subr.mxu0 0.0
        %895 = vmatpush1.msra.mxu0 0.0
        %896 = vmatprep.subr.mxu0 0.0
        %897 = vmatpush1.msra.mxu0 0.0
        %898 = vmatprep.subr.mxu0 0.0
        %899 = vmatpush1.msra.mxu0 0.0
        %900 = vmatprep.subr.mxu0 0.0
        %901 = vmatpush1.msra.mxu0 0.0
        %902 = vmatprep.subr.mxu0 0.0
        %903 = vmatpush1.msra.mxu0 0.0
        %904 = vmatprep.subr.mxu0 0.0
        %905 = vmatpush1.msra.mxu0 0.0
        %906 = vmatprep.subr.mxu0 0.0
        %907 = vmatpush1.msra.mxu0 0.0
        %908 = vmatprep.subr.mxu0 0.0
        %909 = vmatpush1.msra.mxu0 0.0
        %910 = vmatprep.subr.mxu0 0.0
        %911 = vmatpush1.msra.mxu0 0.0
        %912 = vmatprep.subr.mxu0 0.0
        %913 = vmatpush1.msra.mxu0 0.0
        %914 = vmatprep.subr.mxu0 0.0
        %915 = vmatpush1.msra.mxu0 0.0
        %916 = vmatprep.subr.mxu0 0.0
        %917 = vmatpush1.msra.mxu0 0.0
        %918 = vmatprep.subr.mxu0 0.0
        %919 = vmatpush1.msra.mxu0 0.0
        %920 = vmatprep.subr.mxu0 0.0
        %921 = vmatpush1.msra.mxu0 0.0
        %922 = vmatprep.mubr.f32.mxu0 0.0
        %923 = vmatmul.mubr.f32.gmra.mrb[0].mxu0 %v856
        %v924 = vpop.f32.mrb[0].mxu0
        %v925 = vadd.f32 0.0, %v924
        %v926 = vpop.f32.mrb[0].mxu0
        %927 = vdwg.mxu0
        %v929 = vsel %vm854, %v759, 0
        %931 = vmatprep.subr.mxu0 0.0
        %932 = vmatpush1.msra.mxu0 %v762
        %933 = vmatprep.subr.mxu0 0.0
        %934 = vmatpush1.msra.mxu0 %v763
        %935 = vmatprep.subr.mxu0 0.0
        %936 = vmatpush1.msra.mxu0 %v764
        %937 = vmatprep.subr.mxu0 0.0
        %938 = vmatpush1.msra.mxu0 %v765
        %939 = vmatprep.subr.mxu0 0.0
        %940 = vmatpush1.msra.mxu0 %v766
        %941 = vmatprep.subr.mxu0 0.0
        %942 = vmatpush1.msra.mxu0 %v767
        %943 = vmatprep.subr.mxu0 0.0
        %944 = vmatpush1.msra.mxu0 %v768
        %945 = vmatprep.subr.mxu0 0.0
        %946 = vmatpush1.msra.mxu0 %v769
        %947 = vmatprep.subr.mxu0 0.0
        %948 = vmatpush1.msra.mxu0 0.0
        %949 = vmatprep.subr.mxu0 0.0
        %950 = vmatpush1.msra.mxu0 0.0
        %951 = vmatprep.subr.mxu0 0.0
        %952 = vmatpush1.msra.mxu0 0.0
        %953 = vmatprep.subr.mxu0 0.0
        %954 = vmatpush1.msra.mxu0 0.0
        %955 = vmatprep.subr.mxu0 0.0
        %956 = vmatpush1.msra.mxu0 0.0
        %957 = vmatprep.subr.mxu0 0.0
        %958 = vmatpush1.msra.mxu0 0.0
        %959 = vmatprep.subr.mxu0 0.0
        %960 = vmatpush1.msra.mxu0 0.0
        %961 = vmatprep.subr.mxu0 0.0
        %962 = vmatpush1.msra.mxu0 0.0
        %963 = vmatprep.subr.mxu0 0.0
        %964 = vmatpush1.msra.mxu0 0.0
        %965 = vmatprep.subr.mxu0 0.0
        %966 = vmatpush1.msra.mxu0 0.0
        %967 = vmatprep.subr.mxu0 0.0
        %968 = vmatpush1.msra.mxu0 0.0
        %969 = vmatprep.subr.mxu0 0.0
        %970 = vmatpush1.msra.mxu0 0.0
        %971 = vmatprep.subr.mxu0 0.0
        %972 = vmatpush1.msra.mxu0 0.0
        %973 = vmatprep.subr.mxu0 0.0
        %974 = vmatpush1.msra.mxu0 0.0
        %975 = vmatprep.subr.mxu0 0.0
        %976 = vmatpush1.msra.mxu0 0.0
        %977 = vmatprep.subr.mxu0 0.0
        %978 = vmatpush1.msra.mxu0 0.0
        %979 = vmatprep.subr.mxu0 0.0
        %980 = vmatpush1.msra.mxu0 0.0
        %981 = vmatprep.subr.mxu0 0.0
        %982 = vmatpush1.msra.mxu0 0.0
        %983 = vmatprep.subr.mxu0 0.0
        %984 = vmatpush1.msra.mxu0 0.0
        %985 = vmatprep.subr.mxu0 0.0
        %986 = vmatpush1.msra.mxu0 0.0
        %987 = vmatprep.subr.mxu0 0.0
        %988 = vmatpush1.msra.mxu0 0.0
        %989 = vmatprep.subr.mxu0 0.0
        %990 = vmatpush1.msra.mxu0 0.0
        %991 = vmatprep.subr.mxu0 0.0
        %992 = vmatpush1.msra.mxu0 0.0
        %993 = vmatprep.subr.mxu0 0.0
        %994 = vmatpush1.msra.mxu0 0.0
        %995 = vmatprep.mubr.f32.mxu0 0.0
        %996 = vmatmul.mubr.f32.gmra.mrb[0].mxu0 %v929
        %v997 = vpop.f32.mrb[0].mxu0
        %v998 = vadd.f32 %v925, %v997
        %v999 = vpop.f32.mrb[0].mxu0
        %1000 = vdwg.mxu0
        %s1001 = scalar_lea.vmem [#allocation2], 16
        %v1002 = vld [vmem:[%s1001] sm:$0xff]
        %v1004 = vsel %vm688, %v1002, 0
        %1006 = vmatprep.subr.mxu0 0.0
        %1007 = vmatpush1.msra.mxu0 %v685
        %1008 = vmatprep.subr.mxu0 0.0
        %1009 = vmatpush1.msra.mxu0 %v686
        %1010 = vmatprep.subr.mxu0 0.0
        %1011 = vmatpush1.msra.mxu0 0.0
        %1012 = vmatprep.subr.mxu0 0.0
        %1013 = vmatpush1.msra.mxu0 0.0
        %1014 = vmatprep.subr.mxu0 0.0
        %1015 = vmatpush1.msra.mxu0 0.0
        %1016 = vmatprep.subr.mxu0 0.0
        %1017 = vmatpush1.msra.mxu0 0.0
        %1018 = vmatprep.subr.mxu0 0.0
        %1019 = vmatpush1.msra.mxu0 0.0
        %1020 = vmatprep.subr.mxu0 0.0
        %1021 = vmatpush1.msra.mxu0 0.0
        %1022 = vmatprep.subr.mxu0 0.0
        %1023 = vmatpush1.msra.mxu0 0.0
        %1024 = vmatprep.subr.mxu0 0.0
        %1025 = vmatpush1.msra.mxu0 0.0
        %1026 = vmatprep.subr.mxu0 0.0
        %1027 = vmatpush1.msra.mxu0 0.0
        %1028 = vmatprep.subr.mxu0 0.0
        %1029 = vmatpush1.msra.mxu0 0.0
        %1030 = vmatprep.subr.mxu0 0.0
        %1031 = vmatpush1.msra.mxu0 0.0
        %1032 = vmatprep.subr.mxu0 0.0
        %1033 = vmatpush1.msra.mxu0 0.0
        %1034 = vmatprep.subr.mxu0 0.0
        %1035 = vmatpush1.msra.mxu0 0.0
        %1036 = vmatprep.subr.mxu0 0.0
        %1037 = vmatpush1.msra.mxu0 0.0
        %1038 = vmatprep.subr.mxu0 0.0
        %1039 = vmatpush1.msra.mxu0 0.0
        %1040 = vmatprep.subr.mxu0 0.0
        %1041 = vmatpush1.msra.mxu0 0.0
        %1042 = vmatprep.subr.mxu0 0.0
        %1043 = vmatpush1.msra.mxu0 0.0
        %1044 = vmatprep.subr.mxu0 0.0
        %1045 = vmatpush1.msra.mxu0 0.0
        %1046 = vmatprep.subr.mxu0 0.0
        %1047 = vmatpush1.msra.mxu0 0.0
        %1048 = vmatprep.subr.mxu0 0.0
        %1049 = vmatpush1.msra.mxu0 0.0
        %1050 = vmatprep.subr.mxu0 0.0
        %1051 = vmatpush1.msra.mxu0 0.0
        %1052 = vmatprep.subr.mxu0 0.0
        %1053 = vmatpush1.msra.mxu0 0.0
        %1054 = vmatprep.subr.mxu0 0.0
        %1055 = vmatpush1.msra.mxu0 0.0
        %1056 = vmatprep.subr.mxu0 0.0
        %1057 = vmatpush1.msra.mxu0 0.0
        %1058 = vmatprep.subr.mxu0 0.0
        %1059 = vmatpush1.msra.mxu0 0.0
        %1060 = vmatprep.subr.mxu0 0.0
        %1061 = vmatpush1.msra.mxu0 0.0
        %1062 = vmatprep.subr.mxu0 0.0
        %1063 = vmatpush1.msra.mxu0 0.0
        %1064 = vmatprep.subr.mxu0 0.0
        %1065 = vmatpush1.msra.mxu0 0.0
        %1066 = vmatprep.subr.mxu0 0.0
        %1067 = vmatpush1.msra.mxu0 0.0
        %1068 = vmatprep.subr.mxu0 0.0
        %1069 = vmatpush1.msra.mxu0 0.0
        %1070 = vmatprep.mubr.f32.mxu0 0.0
        %1071 = vmatmul.mubr.f32.gmra.mrb[0].mxu0 %v1004
        %v1072 = vpop.f32.mrb[0].mxu0
        %v1073 = vadd.f32 0.0, %v1072
        %v1074 = vpop.f32.mrb[0].mxu0
        %1075 = vdwg.mxu0
        %s1076 = scalar_lea.vmem %s3, 128
        %v1077 = vld [vmem:[%s1076] sm:$0xff]
        %v1078 = vld [vmem:[%s1076 + $0x8] sm:$0xff]
        %v1079 = vld [vmem:[%s1076 + $0x10] sm:$0xff]
        %v1080 = vld [vmem:[%s1076 + $0x18] sm:$0xff]
        %v1081 = vld [vmem:[%s1076 + $0x20] sm:$0xff]
        %v1082 = vld [vmem:[%s1076 + $0x28] sm:$0xff]
        %v1083 = vld [vmem:[%s1076 + $0x30] sm:$0xff]
        %v1084 = vld [vmem:[%s1076 + $0x38] sm:$0xff]
        %v1086 = vsel %vm854, %v1073, 0
        %1088 = vmatprep.subr.mxu0 0.0
        %1089 = vmatpush1.msra.mxu0 %v1077
        %1090 = vmatprep.subr.mxu0 0.0
        %1091 = vmatpush1.msra.mxu0 %v1078
        %1092 = vmatprep.subr.mxu0 0.0
        %1093 = vmatpush1.msra.mxu0 %v1079
        %1094 = vmatprep.subr.mxu0 0.0
        %1095 = vmatpush1.msra.mxu0 %v1080
        %1096 = vmatprep.subr.mxu0 0.0
        %1097 = vmatpush1.msra.mxu0 %v1081
        %1098 = vmatprep.subr.mxu0 0.0
        %1099 = vmatpush1.msra.mxu0 %v1082
        %1100 = vmatprep.subr.mxu0 0.0
        %1101 = vmatpush1.msra.mxu0 %v1083
        %1102 = vmatprep.subr.mxu0 0.0
        %1103 = vmatpush1.msra.mxu0 %v1084
        %1104 = vmatprep.subr.mxu0 0.0
        %1105 = vmatpush1.msra.mxu0 0.0
        %1106 = vmatprep.subr.mxu0 0.0
        %1107 = vmatpush1.msra.mxu0 0.0
        %1108 = vmatprep.subr.mxu0 0.0
        %1109 = vmatpush1.msra.mxu0 0.0
        %1110 = vmatprep.subr.mxu0 0.0
        %1111 = vmatpush1.msra.mxu0 0.0
        %1112 = vmatprep.subr.mxu0 0.0
        %1113 = vmatpush1.msra.mxu0 0.0
        %1114 = vmatprep.subr.mxu0 0.0
        %1115 = vmatpush1.msra.mxu0 0.0
        %1116 = vmatprep.subr.mxu0 0.0
        %1117 = vmatpush1.msra.mxu0 0.0
        %1118 = vmatprep.subr.mxu0 0.0
        %1119 = vmatpush1.msra.mxu0 0.0
        %1120 = vmatprep.subr.mxu0 0.0
        %1121 = vmatpush1.msra.mxu0 0.0
        %1122 = vmatprep.subr.mxu0 0.0
        %1123 = vmatpush1.msra.mxu0 0.0
        %1124 = vmatprep.subr.mxu0 0.0
        %1125 = vmatpush1.msra.mxu0 0.0
        %1126 = vmatprep.subr.mxu0 0.0
        %1127 = vmatpush1.msra.mxu0 0.0
        %1128 = vmatprep.subr.mxu0 0.0
        %1129 = vmatpush1.msra.mxu0 0.0
        %1130 = vmatprep.subr.mxu0 0.0
        %1131 = vmatpush1.msra.mxu0 0.0
        %1132 = vmatprep.subr.mxu0 0.0
        %1133 = vmatpush1.msra.mxu0 0.0
        %1134 = vmatprep.subr.mxu0 0.0
        %1135 = vmatpush1.msra.mxu0 0.0
        %1136 = vmatprep.subr.mxu0 0.0
        %1137 = vmatpush1.msra.mxu0 0.0
        %1138 = vmatprep.subr.mxu0 0.0
        %1139 = vmatpush1.msra.mxu0 0.0
        %1140 = vmatprep.subr.mxu0 0.0
        %1141 = vmatpush1.msra.mxu0 0.0
        %1142 = vmatprep.subr.mxu0 0.0
        %1143 = vmatpush1.msra.mxu0 0.0
        %1144 = vmatprep.subr.mxu0 0.0
        %1145 = vmatpush1.msra.mxu0 0.0
        %1146 = vmatprep.subr.mxu0 0.0
        %1147 = vmatpush1.msra.mxu0 0.0
        %1148 = vmatprep.subr.mxu0 0.0
        %1149 = vmatpush1.msra.mxu0 0.0
        %1150 = vmatprep.subr.mxu0 0.0
        %1151 = vmatpush1.msra.mxu0 0.0
        %1152 = vmatprep.mubr.f32.mxu0 0.0
        %1153 = vmatmul.mubr.f32.gmra.mrb[0].mxu0 %v1086
        %v1154 = vpop.f32.mrb[0].mxu0
        %v1155 = vadd.f32 0.0, %v1154
        %v1156 = vpop.f32.mrb[0].mxu0
        %1157 = vdwg.mxu0
        %v1158 = vadd.f32 %v998, %v1155
        %s1159 = scalar_lea.vmem [#allocation2], 24
        %v1160 = vld [vmem:[%s1159] sm:$0xff]
        %v1162 = vsel %vm688, %v1160, 0
        %1164 = vmatprep.subr.mxu0 0.0
        %1165 = vmatpush1.msra.mxu0 %v685
        %1166 = vmatprep.subr.mxu0 0.0
        %1167 = vmatpush1.msra.mxu0 %v686
        %1168 = vmatprep.subr.mxu0 0.0
        %1169 = vmatpush1.msra.mxu0 0.0
        %1170 = vmatprep.subr.mxu0 0.0
        %1171 = vmatpush1.msra.mxu0 0.0
        %1172 = vmatprep.subr.mxu0 0.0
        %1173 = vmatpush1.msra.mxu0 0.0
        %1174 = vmatprep.subr.mxu0 0.0
        %1175 = vmatpush1.msra.mxu0 0.0
        %1176 = vmatprep.subr.mxu0 0.0
        %1177 = vmatpush1.msra.mxu0 0.0
        %1178 = vmatprep.subr.mxu0 0.0
        %1179 = vmatpush1.msra.mxu0 0.0
        %1180 = vmatprep.subr.mxu0 0.0
        %1181 = vmatpush1.msra.mxu0 0.0
        %1182 = vmatprep.subr.mxu0 0.0
        %1183 = vmatpush1.msra.mxu0 0.0
        %1184 = vmatprep.subr.mxu0 0.0
        %1185 = vmatpush1.msra.mxu0 0.0
        %1186 = vmatprep.subr.mxu0 0.0
        %1187 = vmatpush1.msra.mxu0 0.0
        %1188 = vmatprep.subr.mxu0 0.0
        %1189 = vmatpush1.msra.mxu0 0.0
        %1190 = vmatprep.subr.mxu0 0.0
        %1191 = vmatpush1.msra.mxu0 0.0
        %1192 = vmatprep.subr.mxu0 0.0
        %1193 = vmatpush1.msra.mxu0 0.0
        %1194 = vmatprep.subr.mxu0 0.0
        %1195 = vmatpush1.msra.mxu0 0.0
        %1196 = vmatprep.subr.mxu0 0.0
        %1197 = vmatpush1.msra.mxu0 0.0
        %1198 = vmatprep.subr.mxu0 0.0
        %1199 = vmatpush1.msra.mxu0 0.0
        %1200 = vmatprep.subr.mxu0 0.0
        %1201 = vmatpush1.msra.mxu0 0.0
        %1202 = vmatprep.subr.mxu0 0.0
        %1203 = vmatpush1.msra.mxu0 0.0
        %1204 = vmatprep.subr.mxu0 0.0
        %1205 = vmatpush1.msra.mxu0 0.0
        %1206 = vmatprep.subr.mxu0 0.0
        %1207 = vmatpush1.msra.mxu0 0.0
        %1208 = vmatprep.subr.mxu0 0.0
        %1209 = vmatpush1.msra.mxu0 0.0
        %1210 = vmatprep.subr.mxu0 0.0
        %1211 = vmatpush1.msra.mxu0 0.0
        %1212 = vmatprep.subr.mxu0 0.0
        %1213 = vmatpush1.msra.mxu0 0.0
        %1214 = vmatprep.subr.mxu0 0.0
        %1215 = vmatpush1.msra.mxu0 0.0
        %1216 = vmatprep.subr.mxu0 0.0
        %1217 = vmatpush1.msra.mxu0 0.0
        %1218 = vmatprep.subr.mxu0 0.0
        %1219 = vmatpush1.msra.mxu0 0.0
        %1220 = vmatprep.subr.mxu0 0.0
        %1221 = vmatpush1.msra.mxu0 0.0
        %1222 = vmatprep.subr.mxu0 0.0
        %1223 = vmatpush1.msra.mxu0 0.0
        %1224 = vmatprep.subr.mxu0 0.0
        %1225 = vmatpush1.msra.mxu0 0.0
        %1226 = vmatprep.subr.mxu0 0.0
        %1227 = vmatpush1.msra.mxu0 0.0
        %1228 = vmatprep.mubr.f32.mxu0 0.0
        %1229 = vmatmul.mubr.f32.gmra.mrb[0].mxu0 %v1162
        %v1230 = vpop.f32.mrb[0].mxu0
        %v1231 = vadd.f32 0.0, %v1230
        %v1232 = vpop.f32.mrb[0].mxu0
        %1233 = vdwg.mxu0
        %s1234 = scalar_lea.vmem %s3, 192
        %v1235 = vld [vmem:[%s1234] sm:$0xff]
        %v1236 = vld [vmem:[%s1234 + $0x8] sm:$0xff]
        %v1237 = vld [vmem:[%s1234 + $0x10] sm:$0xff]
        %v1238 = vld [vmem:[%s1234 + $0x18] sm:$0xff]
        %v1239 = vld [vmem:[%s1234 + $0x20] sm:$0xff]
        %v1240 = vld [vmem:[%s1234 + $0x28] sm:$0xff]
        %v1241 = vld [vmem:[%s1234 + $0x30] sm:$0xff]
        %v1242 = vld [vmem:[%s1234 + $0x38] sm:$0xff]
        %v1244 = vsel %vm854, %v1231, 0
        %1246 = vmatprep.subr.mxu0 0.0
        %1247 = vmatpush1.msra.mxu0 %v1235
        %1248 = vmatprep.subr.mxu0 0.0
        %1249 = vmatpush1.msra.mxu0 %v1236
        %1250 = vmatprep.subr.mxu0 0.0
        %1251 = vmatpush1.msra.mxu0 %v1237
        %1252 = vmatprep.subr.mxu0 0.0
        %1253 = vmatpush1.msra.mxu0 %v1238
        %1254 = vmatprep.subr.mxu0 0.0
        %1255 = vmatpush1.msra.mxu0 %v1239
        %1256 = vmatprep.subr.mxu0 0.0
        %1257 = vmatpush1.msra.mxu0 %v1240
        %1258 = vmatprep.subr.mxu0 0.0
        %1259 = vmatpush1.msra.mxu0 %v1241
        %1260 = vmatprep.subr.mxu0 0.0
        %1261 = vmatpush1.msra.mxu0 %v1242
        %1262 = vmatprep.subr.mxu0 0.0
        %1263 = vmatpush1.msra.mxu0 0.0
        %1264 = vmatprep.subr.mxu0 0.0
        %1265 = vmatpush1.msra.mxu0 0.0
        %1266 = vmatprep.subr.mxu0 0.0
        %1267 = vmatpush1.msra.mxu0 0.0
        %1268 = vmatprep.subr.mxu0 0.0
        %1269 = vmatpush1.msra.mxu0 0.0
        %1270 = vmatprep.subr.mxu0 0.0
        %1271 = vmatpush1.msra.mxu0 0.0
        %1272 = vmatprep.subr.mxu0 0.0
        %1273 = vmatpush1.msra.mxu0 0.0
        %1274 = vmatprep.subr.mxu0 0.0
        %1275 = vmatpush1.msra.mxu0 0.0
        %1276 = vmatprep.subr.mxu0 0.0
        %1277 = vmatpush1.msra.mxu0 0.0
        %1278 = vmatprep.subr.mxu0 0.0
        %1279 = vmatpush1.msra.mxu0 0.0
        %1280 = vmatprep.subr.mxu0 0.0
        %1281 = vmatpush1.msra.mxu0 0.0
        %1282 = vmatprep.subr.mxu0 0.0
        %1283 = vmatpush1.msra.mxu0 0.0
        %1284 = vmatprep.subr.mxu0 0.0
        %1285 = vmatpush1.msra.mxu0 0.0
        %1286 = vmatprep.subr.mxu0 0.0
        %1287 = vmatpush1.msra.mxu0 0.0
        %1288 = vmatprep.subr.mxu0 0.0
        %1289 = vmatpush1.msra.mxu0 0.0
        %1290 = vmatprep.subr.mxu0 0.0
        %1291 = vmatpush1.msra.mxu0 0.0
        %1292 = vmatprep.subr.mxu0 0.0
        %1293 = vmatpush1.msra.mxu0 0.0
        %1294 = vmatprep.subr.mxu0 0.0
        %1295 = vmatpush1.msra.mxu0 0.0
        %1296 = vmatprep.subr.mxu0 0.0
        %1297 = vmatpush1.msra.mxu0 0.0
        %1298 = vmatprep.subr.mxu0 0.0
        %1299 = vmatpush1.msra.mxu0 0.0
        %1300 = vmatprep.subr.mxu0 0.0
        %1301 = vmatpush1.msra.mxu0 0.0
        %1302 = vmatprep.subr.mxu0 0.0
        %1303 = vmatpush1.msra.mxu0 0.0
        %1304 = vmatprep.subr.mxu0 0.0
        %1305 = vmatpush1.msra.mxu0 0.0
        %1306 = vmatprep.subr.mxu0 0.0
        %1307 = vmatpush1.msra.mxu0 0.0
        %1308 = vmatprep.subr.mxu0 0.0
        %1309 = vmatpush1.msra.mxu0 0.0
        %1310 = vmatprep.mubr.f32.mxu0 0.0
        %1311 = vmatmul.mubr.f32.gmra.mrb[0].mxu0 %v1244
        %v1312 = vpop.f32.mrb[0].mxu0
        %v1313 = vadd.f32 0.0, %v1312
        %v1314 = vpop.f32.mrb[0].mxu0
        %1315 = vdwg.mxu0
        %v1316 = vadd.f32 %v1158, %v1313
        %s1317 = scalar_lea.vmem [#allocation2], 32
        %v1318 = vld [vmem:[%s1317] sm:$0xff]
        %v1320 = vsel %vm688, %v1318, 0
        %1322 = vmatprep.subr.mxu0 0.0
        %1323 = vmatpush1.msra.mxu0 %v685
        %1324 = vmatprep.subr.mxu0 0.0
        %1325 = vmatpush1.msra.mxu0 %v686
        %1326 = vmatprep.subr.mxu0 0.0
        %1327 = vmatpush1.msra.mxu0 0.0
        %1328 = vmatprep.subr.mxu0 0.0
        %1329 = vmatpush1.msra.mxu0 0.0
        %1330 = vmatprep.subr.mxu0 0.0
        %1331 = vmatpush1.msra.mxu0 0.0
        %1332 = vmatprep.subr.mxu0 0.0
        %1333 = vmatpush1.msra.mxu0 0.0
        %1334 = vmatprep.subr.mxu0 0.0
        %1335 = vmatpush1.msra.mxu0 0.0
        %1336 = vmatprep.subr.mxu0 0.0
        %1337 = vmatpush1.msra.mxu0 0.0
        %1338 = vmatprep.subr.mxu0 0.0
        %1339 = vmatpush1.msra.mxu0 0.0
        %1340 = vmatprep.subr.mxu0 0.0
        %1341 = vmatpush1.msra.mxu0 0.0
        %1342 = vmatprep.subr.mxu0 0.0
        %1343 = vmatpush1.msra.mxu0 0.0
        %1344 = vmatprep.subr.mxu0 0.0
        %1345 = vmatpush1.msra.mxu0 0.0
        %1346 = vmatprep.subr.mxu0 0.0
        %1347 = vmatpush1.msra.mxu0 0.0
        %1348 = vmatprep.subr.mxu0 0.0
        %1349 = vmatpush1.msra.mxu0 0.0
        %1350 = vmatprep.subr.mxu0 0.0
        %1351 = vmatpush1.msra.mxu0 0.0
        %1352 = vmatprep.subr.mxu0 0.0
        %1353 = vmatpush1.msra.mxu0 0.0
        %1354 = vmatprep.subr.mxu0 0.0
        %1355 = vmatpush1.msra.mxu0 0.0
        %1356 = vmatprep.subr.mxu0 0.0
        %1357 = vmatpush1.msra.mxu0 0.0
        %1358 = vmatprep.subr.mxu0 0.0
        %1359 = vmatpush1.msra.mxu0 0.0
        %1360 = vmatprep.subr.mxu0 0.0
        %1361 = vmatpush1.msra.mxu0 0.0
        %1362 = vmatprep.subr.mxu0 0.0
        %1363 = vmatpush1.msra.mxu0 0.0
        %1364 = vmatprep.subr.mxu0 0.0
        %1365 = vmatpush1.msra.mxu0 0.0
        %1366 = vmatprep.subr.mxu0 0.0
        %1367 = vmatpush1.msra.mxu0 0.0
        %1368 = vmatprep.subr.mxu0 0.0
        %1369 = vmatpush1.msra.mxu0 0.0
        %1370 = vmatprep.subr.mxu0 0.0
        %1371 = vmatpush1.msra.mxu0 0.0
        %1372 = vmatprep.subr.mxu0 0.0
        %1373 = vmatpush1.msra.mxu0 0.0
        %1374 = vmatprep.subr.mxu0 0.0
        %1375 = vmatpush1.msra.mxu0 0.0
        %1376 = vmatprep.subr.mxu0 0.0
        %1377 = vmatpush1.msra.mxu0 0.0
        %1378 = vmatprep.subr.mxu0 0.0
        %1379 = vmatpush1.msra.mxu0 0.0
        %1380 = vmatprep.subr.mxu0 0.0
        %1381 = vmatpush1.msra.mxu0 0.0
        %1382 = vmatprep.subr.mxu0 0.0
        %1383 = vmatpush1.msra.mxu0 0.0
        %1384 = vmatprep.subr.mxu0 0.0
        %1385 = vmatpush1.msra.mxu0 0.0
        %1386 = vmatprep.mubr.f32.mxu0 0.0
        %1387 = vmatmul.mubr.f32.gmra.mrb[0].mxu0 %v1320
        %v1388 = vpop.f32.mrb[0].mxu0
        %v1389 = vadd.f32 0.0, %v1388
        %v1390 = vpop.f32.mrb[0].mxu0
        %1391 = vdwg.mxu0
        %s1392 = scalar_lea.vmem %s3, 256
        %v1393 = vld [vmem:[%s1392] sm:$0xff]
        %v1394 = vld [vmem:[%s1392 + $0x8] sm:$0xff]
        %v1395 = vld [vmem:[%s1392 + $0x10] sm:$0xff]
        %v1396 = vld [vmem:[%s1392 + $0x18] sm:$0xff]
        %v1397 = vld [vmem:[%s1392 + $0x20] sm:$0xff]
        %v1398 = vld [vmem:[%s1392 + $0x28] sm:$0xff]
        %v1399 = vld [vmem:[%s1392 + $0x30] sm:$0xff]
        %v1400 = vld [vmem:[%s1392 + $0x38] sm:$0xff]
        %v1402 = vsel %vm854, %v1389, 0
        %1404 = vmatprep.subr.mxu0 0.0
        %1405 = vmatpush1.msra.mxu0 %v1393
        %1406 = vmatprep.subr.mxu0 0.0
        %1407 = vmatpush1.msra.mxu0 %v1394
        %1408 = vmatprep.subr.mxu0 0.0
        %1409 = vmatpush1.msra.mxu0 %v1395
        %1410 = vmatprep.subr.mxu0 0.0
        %1411 = vmatpush1.msra.mxu0 %v1396
        %1412 = vmatprep.subr.mxu0 0.0
        %1413 = vmatpush1.msra.mxu0 %v1397
        %1414 = vmatprep.subr.mxu0 0.0
        %1415 = vmatpush1.msra.mxu0 %v1398
        %1416 = vmatprep.subr.mxu0 0.0
        %1417 = vmatpush1.msra.mxu0 %v1399
        %1418 = vmatprep.subr.mxu0 0.0
        %1419 = vmatpush1.msra.mxu0 %v1400
        %1420 = vmatprep.subr.mxu0 0.0
        %1421 = vmatpush1.msra.mxu0 0.0
        %1422 = vmatprep.subr.mxu0 0.0
        %1423 = vmatpush1.msra.mxu0 0.0
        %1424 = vmatprep.subr.mxu0 0.0
        %1425 = vmatpush1.msra.mxu0 0.0
        %1426 = vmatprep.subr.mxu0 0.0
        %1427 = vmatpush1.msra.mxu0 0.0
        %1428 = vmatprep.subr.mxu0 0.0
        %1429 = vmatpush1.msra.mxu0 0.0
        %1430 = vmatprep.subr.mxu0 0.0
        %1431 = vmatpush1.msra.mxu0 0.0
        %1432 = vmatprep.subr.mxu0 0.0
        %1433 = vmatpush1.msra.mxu0 0.0
        %1434 = vmatprep.subr.mxu0 0.0
        %1435 = vmatpush1.msra.mxu0 0.0
        %1436 = vmatprep.subr.mxu0 0.0
        %1437 = vmatpush1.msra.mxu0 0.0
        %1438 = vmatprep.subr.mxu0 0.0
        %1439 = vmatpush1.msra.mxu0 0.0
        %1440 = vmatprep.subr.mxu0 0.0
        %1441 = vmatpush1.msra.mxu0 0.0
        %1442 = vmatprep.subr.mxu0 0.0
        %1443 = vmatpush1.msra.mxu0 0.0
        %1444 = vmatprep.subr.mxu0 0.0
        %1445 = vmatpush1.msra.mxu0 0.0
        %1446 = vmatprep.subr.mxu0 0.0
        %1447 = vmatpush1.msra.mxu0 0.0
        %1448 = vmatprep.subr.mxu0 0.0
        %1449 = vmatpush1.msra.mxu0 0.0
        %1450 = vmatprep.subr.mxu0 0.0
        %1451 = vmatpush1.msra.mxu0 0.0
        %1452 = vmatprep.subr.mxu0 0.0
        %1453 = vmatpush1.msra.mxu0 0.0
        %1454 = vmatprep.subr.mxu0 0.0
        %1455 = vmatpush1.msra.mxu0 0.0
        %1456 = vmatprep.subr.mxu0 0.0
        %1457 = vmatpush1.msra.mxu0 0.0
        %1458 = vmatprep.subr.mxu0 0.0
        %1459 = vmatpush1.msra.mxu0 0.0
        %1460 = vmatprep.subr.mxu0 0.0
        %1461 = vmatpush1.msra.mxu0 0.0
        %1462 = vmatprep.subr.mxu0 0.0
        %1463 = vmatpush1.msra.mxu0 0.0
        %1464 = vmatprep.subr.mxu0 0.0
        %1465 = vmatpush1.msra.mxu0 0.0
        %1466 = vmatprep.subr.mxu0 0.0
        %1467 = vmatpush1.msra.mxu0 0.0
        %1468 = vmatprep.mubr.f32.mxu0 0.0
        %1469 = vmatmul.mubr.f32.gmra.mrb[0].mxu0 %v1402
        %v1470 = vpop.f32.mrb[0].mxu0
        %v1471 = vadd.f32 0.0, %v1470
        %v1472 = vpop.f32.mrb[0].mxu0
        %1473 = vdwg.mxu0
        %v1474 = vadd.f32 %v1316, %v1471
        %v1475 = vld [vmem:[%s4] sm:$0x1]
        %v1477 = vlaneseq
        %v1478 = vshrl.u32 %v1477, 7
        %v1479 = vsub.s32 0, %v1478
        %v1480 = vrot.slane %v1475, %v1479
        %v1482 = vadd.f32 %v1474, %v1480
        %v1483 = vmax.f32 %v1482, 0.0
        %v1484 = vld [vmem:[#allocation5] sm:$0xf]
        %vm1485 = vcmask 64512
        %v1487 = vsel %vm1485, %v1484, 0
        %1489 = vmatprep.subr.mxu0 0.0
        %1490 = vmatpush1.msra.mxu0 %v1483
        %1491 = vmatprep.subr.mxu0 0.0
        %1492 = vmatpush1.msra.mxu0 0.0
        %1493 = vmatprep.subr.mxu0 0.0
        %1494 = vmatpush1.msra.mxu0 0.0
        %1495 = vmatprep.subr.mxu0 0.0
        %1496 = vmatpush1.msra.mxu0 0.0
        %1497 = vmatprep.subr.mxu0 0.0
        %1498 = vmatpush1.msra.mxu0 0.0
        %1499 = vmatprep.subr.mxu0 0.0
        %1500 = vmatpush1.msra.mxu0 0.0
        %1501 = vmatprep.subr.mxu0 0.0
        %1502 = vmatpush1.msra.mxu0 0.0
        %1503 = vmatprep.subr.mxu0 0.0
        %1504 = vmatpush1.msra.mxu0 0.0
        %1505 = vmatprep.subr.mxu0 0.0
        %1506 = vmatpush1.msra.mxu0 0.0
        %1507 = vmatprep.subr.mxu0 0.0
        %1508 = vmatpush1.msra.mxu0 0.0
        %1509 = vmatprep.subr.mxu0 0.0
        %1510 = vmatpush1.msra.mxu0 0.0
        %1511 = vmatprep.subr.mxu0 0.0
        %1512 = vmatpush1.msra.mxu0 0.0
        %1513 = vmatprep.subr.mxu0 0.0
        %1514 = vmatpush1.msra.mxu0 0.0
        %1515 = vmatprep.subr.mxu0 0.0
        %1516 = vmatpush1.msra.mxu0 0.0
        %1517 = vmatprep.subr.mxu0 0.0
        %1518 = vmatpush1.msra.mxu0 0.0
        %1519 = vmatprep.subr.mxu0 0.0
        %1520 = vmatpush1.msra.mxu0 0.0
        %1521 = vmatprep.subr.mxu0 0.0
        %1522 = vmatpush1.msra.mxu0 0.0
        %1523 = vmatprep.subr.mxu0 0.0
        %1524 = vmatpush1.msra.mxu0 0.0
        %1525 = vmatprep.subr.mxu0 0.0
        %1526 = vmatpush1.msra.mxu0 0.0
        %1527 = vmatprep.subr.mxu0 0.0
        %1528 = vmatpush1.msra.mxu0 0.0
        %1529 = vmatprep.subr.mxu0 0.0
        %1530 = vmatpush1.msra.mxu0 0.0
        %1531 = vmatprep.subr.mxu0 0.0
        %1532 = vmatpush1.msra.mxu0 0.0
        %1533 = vmatprep.subr.mxu0 0.0
        %1534 = vmatpush1.msra.mxu0 0.0
        %1535 = vmatprep.subr.mxu0 0.0
        %1536 = vmatpush1.msra.mxu0 0.0
        %1537 = vmatprep.subr.mxu0 0.0
        %1538 = vmatpush1.msra.mxu0 0.0
        %1539 = vmatprep.subr.mxu0 0.0
        %1540 = vmatpush1.msra.mxu0 0.0
        %1541 = vmatprep.subr.mxu0 0.0
        %1542 = vmatpush1.msra.mxu0 0.0
        %1543 = vmatprep.subr.mxu0 0.0
        %1544 = vmatpush1.msra.mxu0 0.0
        %1545 = vmatprep.subr.mxu0 0.0
        %1546 = vmatpush1.msra.mxu0 0.0
        %1547 = vmatprep.subr.mxu0 0.0
        %1548 = vmatpush1.msra.mxu0 0.0
        %1549 = vmatprep.subr.mxu0 0.0
        %1550 = vmatpush1.msra.mxu0 0.0
        %1551 = vmatprep.subr.mxu0 0.0
        %1552 = vmatpush1.msra.mxu0 0.0
        %1553 = vmatprep.mubr.f32.mxu0 0.0
        %1554 = vmatmul.mubr.f32.gmra.mrb[0].mxu0 %v1487
        %v1555 = vpop.f32.mrb[0].mxu0
        %v1556 = vadd.f32 0.0, %v1555
        %v1557 = vpop.f32.mrb[0].mxu0
        %1558 = vdwg.mxu0
        %v1559 = vld [vmem:[%s6] sm:$0xff]
        %v1560 = vld [vmem:[%s6 + $0x8] sm:$0xff]
        %v1561 = vld [vmem:[%s6 + $0x10] sm:$0xff]
        %v1562 = vld [vmem:[%s6 + $0x18] sm:$0xff]
        %v1563 = vld [vmem:[%s6 + $0x20] sm:$0xff]
        %v1564 = vld [vmem:[%s6 + $0x28] sm:$0xff]
        %v1565 = vld [vmem:[%s6 + $0x30] sm:$0xff]
        %v1566 = vld [vmem:[%s6 + $0x38] sm:$0xff]
        %s1567 = scalar_lea.vmem [#allocation5], 4
        %v1568 = vld [vmem:[%s1567] sm:$0xf]
        %v1570 = vsel %vm1485, %v1568, 0
        %1572 = vmatprep.subr.mxu0 0.0
        %1573 = vmatpush1.msra.mxu0 %v1483
        %1574 = vmatprep.subr.mxu0 0.0
        %1575 = vmatpush1.msra.mxu0 0.0
        %1576 = vmatprep.subr.mxu0 0.0
        %1577 = vmatpush1.msra.mxu0 0.0
        %1578 = vmatprep.subr.mxu0 0.0
        %1579 = vmatpush1.msra.mxu0 0.0
        %1580 = vmatprep.subr.mxu0 0.0
        %1581 = vmatpush1.msra.mxu0 0.0
        %1582 = vmatprep.subr.mxu0 0.0
        %1583 = vmatpush1.msra.mxu0 0.0
        %1584 = vmatprep.subr.mxu0 0.0
        %1585 = vmatpush1.msra.mxu0 0.0
        %1586 = vmatprep.subr.mxu0 0.0
        %1587 = vmatpush1.msra.mxu0 0.0
        %1588 = vmatprep.subr.mxu0 0.0
        %1589 = vmatpush1.msra.mxu0 0.0
        %1590 = vmatprep.subr.mxu0 0.0
        %1591 = vmatpush1.msra.mxu0 0.0
        %1592 = vmatprep.subr.mxu0 0.0
        %1593 = vmatpush1.msra.mxu0 0.0
        %1594 = vmatprep.subr.mxu0 0.0
        %1595 = vmatpush1.msra.mxu0 0.0
        %1596 = vmatprep.subr.mxu0 0.0
        %1597 = vmatpush1.msra.mxu0 0.0
        %1598 = vmatprep.subr.mxu0 0.0
        %1599 = vmatpush1.msra.mxu0 0.0
        %1600 = vmatprep.subr.mxu0 0.0
        %1601 = vmatpush1.msra.mxu0 0.0
        %1602 = vmatprep.subr.mxu0 0.0
        %1603 = vmatpush1.msra.mxu0 0.0
        %1604 = vmatprep.subr.mxu0 0.0
        %1605 = vmatpush1.msra.mxu0 0.0
        %1606 = vmatprep.subr.mxu0 0.0
        %1607 = vmatpush1.msra.mxu0 0.0
        %1608 = vmatprep.subr.mxu0 0.0
        %1609 = vmatpush1.msra.mxu0 0.0
        %1610 = vmatprep.subr.mxu0 0.0
        %1611 = vmatpush1.msra.mxu0 0.0
        %1612 = vmatprep.subr.mxu0 0.0
        %1613 = vmatpush1.msra.mxu0 0.0
        %1614 = vmatprep.subr.mxu0 0.0
        %1615 = vmatpush1.msra.mxu0 0.0
        %1616 = vmatprep.subr.mxu0 0.0
        %1617 = vmatpush1.msra.mxu0 0.0
        %1618 = vmatprep.subr.mxu0 0.0
        %1619 = vmatpush1.msra.mxu0 0.0
        %1620 = vmatprep.subr.mxu0 0.0
        %1621 = vmatpush1.msra.mxu0 0.0
        %1622 = vmatprep.subr.mxu0 0.0
        %1623 = vmatpush1.msra.mxu0 0.0
        %1624 = vmatprep.subr.mxu0 0.0
        %1625 = vmatpush1.msra.mxu0 0.0
        %1626 = vmatprep.subr.mxu0 0.0
        %1627 = vmatpush1.msra.mxu0 0.0
        %1628 = vmatprep.subr.mxu0 0.0
        %1629 = vmatpush1.msra.mxu0 0.0
        %1630 = vmatprep.subr.mxu0 0.0
        %1631 = vmatpush1.msra.mxu0 0.0
        %1632 = vmatprep.subr.mxu0 0.0
        %1633 = vmatpush1.msra.mxu0 0.0
        %1634 = vmatprep.subr.mxu0 0.0
        %1635 = vmatpush1.msra.mxu0 0.0
        %1636 = vmatprep.mubr.f32.mxu0 0.0
        %1637 = vmatmul.mubr.f32.gmra.mrb[0].mxu0 %v1570
        %v1638 = vpop.f32.mrb[0].mxu0
        %v1639 = vadd.f32 0.0, %v1638
        %v1640 = vpop.f32.mrb[0].mxu0
        %1641 = vdwg.mxu0
        %s1642 = scalar_lea.vmem %s6, 64
        %v1643 = vld [vmem:[%s1642] sm:$0xff]
        %v1644 = vld [vmem:[%s1642 + $0x8] sm:$0xff]
        %v1645 = vld [vmem:[%s1642 + $0x10] sm:$0xff]
        %v1646 = vld [vmem:[%s1642 + $0x18] sm:$0xff]
        %v1647 = vld [vmem:[%s1642 + $0x20] sm:$0xff]
        %v1648 = vld [vmem:[%s1642 + $0x28] sm:$0xff]
        %v1649 = vld [vmem:[%s1642 + $0x30] sm:$0xff]
        %v1650 = vld [vmem:[%s1642 + $0x38] sm:$0xff]
        %v1652 = vsel %vm854, %v1639, 0
        %1654 = vmatprep.subr.mxu0 0.0
        %1655 = vmatpush1.msra.mxu0 %v1643
        %1656 = vmatprep.subr.mxu0 0.0
        %1657 = vmatpush1.msra.mxu0 %v1644
        %1658 = vmatprep.subr.mxu0 0.0
        %1659 = vmatpush1.msra.mxu0 %v1645
        %1660 = vmatprep.subr.mxu0 0.0
        %1661 = vmatpush1.msra.mxu0 %v1646
        %1662 = vmatprep.subr.mxu0 0.0
        %1663 = vmatpush1.msra.mxu0 %v1647
        %1664 = vmatprep.subr.mxu0 0.0
        %1665 = vmatpush1.msra.mxu0 %v1648
        %1666 = vmatprep.subr.mxu0 0.0
        %1667 = vmatpush1.msra.mxu0 %v1649
        %1668 = vmatprep.subr.mxu0 0.0
        %1669 = vmatpush1.msra.mxu0 %v1650
        %1670 = vmatprep.subr.mxu0 0.0
        %1671 = vmatpush1.msra.mxu0 0.0
        %1672 = vmatprep.subr.mxu0 0.0
        %1673 = vmatpush1.msra.mxu0 0.0
        %1674 = vmatprep.subr.mxu0 0.0
        %1675 = vmatpush1.msra.mxu0 0.0
        %1676 = vmatprep.subr.mxu0 0.0
        %1677 = vmatpush1.msra.mxu0 0.0
        %1678 = vmatprep.subr.mxu0 0.0
        %1679 = vmatpush1.msra.mxu0 0.0
        %1680 = vmatprep.subr.mxu0 0.0
        %1681 = vmatpush1.msra.mxu0 0.0
        %1682 = vmatprep.subr.mxu0 0.0
        %1683 = vmatpush1.msra.mxu0 0.0
        %1684 = vmatprep.subr.mxu0 0.0
        %1685 = vmatpush1.msra.mxu0 0.0
        %1686 = vmatprep.subr.mxu0 0.0
        %1687 = vmatpush1.msra.mxu0 0.0
        %1688 = vmatprep.subr.mxu0 0.0
        %1689 = vmatpush1.msra.mxu0 0.0
        %1690 = vmatprep.subr.mxu0 0.0
        %1691 = vmatpush1.msra.mxu0 0.0
        %1692 = vmatprep.subr.mxu0 0.0
        %1693 = vmatpush1.msra.mxu0 0.0
        %1694 = vmatprep.subr.mxu0 0.0
        %1695 = vmatpush1.msra.mxu0 0.0
        %1696 = vmatprep.subr.mxu0 0.0
        %1697 = vmatpush1.msra.mxu0 0.0
        %1698 = vmatprep.subr.mxu0 0.0
        %1699 = vmatpush1.msra.mxu0 0.0
        %1700 = vmatprep.subr.mxu0 0.0
        %1701 = vmatpush1.msra.mxu0 0.0
        %1702 = vmatprep.subr.mxu0 0.0
        %1703 = vmatpush1.msra.mxu0 0.0
        %1704 = vmatprep.subr.mxu0 0.0
        %1705 = vmatpush1.msra.mxu0 0.0
        %1706 = vmatprep.subr.mxu0 0.0
        %1707 = vmatpush1.msra.mxu0 0.0
        %1708 = vmatprep.subr.mxu0 0.0
        %1709 = vmatpush1.msra.mxu0 0.0
        %1710 = vmatprep.subr.mxu0 0.0
        %1711 = vmatpush1.msra.mxu0 0.0
        %1712 = vmatprep.subr.mxu0 0.0
        %1713 = vmatpush1.msra.mxu0 0.0
        %1714 = vmatprep.subr.mxu0 0.0
        %1715 = vmatpush1.msra.mxu0 0.0
        %1716 = vmatprep.subr.mxu0 0.0
        %1717 = vmatpush1.msra.mxu0 0.0
        %1718 = vmatprep.mubr.f32.mxu0 0.0
        %1719 = vmatmul.mubr.f32.gmra.mrb[0].mxu0 %v1652
        %v1720 = vpop.f32.mrb[0].mxu0
        %v1721 = vadd.f32 0.0, %v1720
        %v1722 = vpop.f32.mrb[0].mxu0
        %1723 = vdwg.mxu0
        %v1725 = vsel %vm854, %v1556, 0
        %1727 = vmatprep.subr.mxu0 0.0
        %1728 = vmatpush1.msra.mxu0 %v1559
        %1729 = vmatprep.subr.mxu0 0.0
        %1730 = vmatpush1.msra.mxu0 %v1560
        %1731 = vmatprep.subr.mxu0 0.0
        %1732 = vmatpush1.msra.mxu0 %v1561
        %1733 = vmatprep.subr.mxu0 0.0
        %1734 = vmatpush1.msra.mxu0 %v1562
        %1735 = vmatprep.subr.mxu0 0.0
        %1736 = vmatpush1.msra.mxu0 %v1563
        %1737 = vmatprep.subr.mxu0 0.0
        %1738 = vmatpush1.msra.mxu0 %v1564
        %1739 = vmatprep.subr.mxu0 0.0
        %1740 = vmatpush1.msra.mxu0 %v1565
        %1741 = vmatprep.subr.mxu0 0.0
        %1742 = vmatpush1.msra.mxu0 %v1566
        %1743 = vmatprep.subr.mxu0 0.0
        %1744 = vmatpush1.msra.mxu0 0.0
        %1745 = vmatprep.subr.mxu0 0.0
        %1746 = vmatpush1.msra.mxu0 0.0
        %1747 = vmatprep.subr.mxu0 0.0
        %1748 = vmatpush1.msra.mxu0 0.0
        %1749 = vmatprep.subr.mxu0 0.0
        %1750 = vmatpush1.msra.mxu0 0.0
        %1751 = vmatprep.subr.mxu0 0.0
        %1752 = vmatpush1.msra.mxu0 0.0
        %1753 = vmatprep.subr.mxu0 0.0
        %1754 = vmatpush1.msra.mxu0 0.0
        %1755 = vmatprep.subr.mxu0 0.0
        %1756 = vmatpush1.msra.mxu0 0.0
        %1757 = vmatprep.subr.mxu0 0.0
        %1758 = vmatpush1.msra.mxu0 0.0
        %1759 = vmatprep.subr.mxu0 0.0
        %1760 = vmatpush1.msra.mxu0 0.0
        %1761 = vmatprep.subr.mxu0 0.0
        %1762 = vmatpush1.msra.mxu0 0.0
        %1763 = vmatprep.subr.mxu0 0.0
        %1764 = vmatpush1.msra.mxu0 0.0
        %1765 = vmatprep.subr.mxu0 0.0
        %1766 = vmatpush1.msra.mxu0 0.0
        %1767 = vmatprep.subr.mxu0 0.0
        %1768 = vmatpush1.msra.mxu0 0.0
        %1769 = vmatprep.subr.mxu0 0.0
        %1770 = vmatpush1.msra.mxu0 0.0
        %1771 = vmatprep.subr.mxu0 0.0
        %1772 = vmatpush1.msra.mxu0 0.0
        %1773 = vmatprep.subr.mxu0 0.0
        %1774 = vmatpush1.msra.mxu0 0.0
        %1775 = vmatprep.subr.mxu0 0.0
        %1776 = vmatpush1.msra.mxu0 0.0
        %1777 = vmatprep.subr.mxu0 0.0
        %1778 = vmatpush1.msra.mxu0 0.0
        %1779 = vmatprep.subr.mxu0 0.0
        %1780 = vmatpush1.msra.mxu0 0.0
        %1781 = vmatprep.subr.mxu0 0.0
        %1782 = vmatpush1.msra.mxu0 0.0
        %1783 = vmatprep.subr.mxu0 0.0
        %1784 = vmatpush1.msra.mxu0 0.0
        %1785 = vmatprep.subr.mxu0 0.0
        %1786 = vmatpush1.msra.mxu0 0.0
        %1787 = vmatprep.subr.mxu0 0.0
        %1788 = vmatpush1.msra.mxu0 0.0
        %1789 = vmatprep.subr.mxu0 0.0
        %1790 = vmatpush1.msra.mxu0 0.0
        %1791 = vmatprep.mubr.f32.mxu0 0.0
        %1792 = vmatmul.mubr.f32.gmra.mrb[0].mxu0 %v1725
        %v1793 = vpop.f32.mrb[0].mxu0
        %v1794 = vadd.f32 %v1721, %v1793
        %v1795 = vpop.f32.mrb[0].mxu0
        %1796 = vdwg.mxu0
        %s1797 = scalar_lea.vmem [#allocation5], 8
        %v1798 = vld [vmem:[%s1797] sm:$0xf]
        %v1800 = vsel %vm1485, %v1798, 0
        %1802 = vmatprep.subr.mxu0 0.0
        %1803 = vmatpush1.msra.mxu0 %v1483
        %1804 = vmatprep.subr.mxu0 0.0
        %1805 = vmatpush1.msra.mxu0 0.0
        %1806 = vmatprep.subr.mxu0 0.0
        %1807 = vmatpush1.msra.mxu0 0.0
        %1808 = vmatprep.subr.mxu0 0.0
        %1809 = vmatpush1.msra.mxu0 0.0
        %1810 = vmatprep.subr.mxu0 0.0
        %1811 = vmatpush1.msra.mxu0 0.0
        %1812 = vmatprep.subr.mxu0 0.0
        %1813 = vmatpush1.msra.mxu0 0.0
        %1814 = vmatprep.subr.mxu0 0.0
        %1815 = vmatpush1.msra.mxu0 0.0
        %1816 = vmatprep.subr.mxu0 0.0
        %1817 = vmatpush1.msra.mxu0 0.0
        %1818 = vmatprep.subr.mxu0 0.0
        %1819 = vmatpush1.msra.mxu0 0.0
        %1820 = vmatprep.subr.mxu0 0.0
        %1821 = vmatpush1.msra.mxu0 0.0
        %1822 = vmatprep.subr.mxu0 0.0
        %1823 = vmatpush1.msra.mxu0 0.0
        %1824 = vmatprep.subr.mxu0 0.0
        %1825 = vmatpush1.msra.mxu0 0.0
        %1826 = vmatprep.subr.mxu0 0.0
        %1827 = vmatpush1.msra.mxu0 0.0
        %1828 = vmatprep.subr.mxu0 0.0
        %1829 = vmatpush1.msra.mxu0 0.0
        %1830 = vmatprep.subr.mxu0 0.0
        %1831 = vmatpush1.msra.mxu0 0.0
        %1832 = vmatprep.subr.mxu0 0.0
        %1833 = vmatpush1.msra.mxu0 0.0
        %1834 = vmatprep.subr.mxu0 0.0
        %1835 = vmatpush1.msra.mxu0 0.0
        %1836 = vmatprep.subr.mxu0 0.0
        %1837 = vmatpush1.msra.mxu0 0.0
        %1838 = vmatprep.subr.mxu0 0.0
        %1839 = vmatpush1.msra.mxu0 0.0
        %1840 = vmatprep.subr.mxu0 0.0
        %1841 = vmatpush1.msra.mxu0 0.0
        %1842 = vmatprep.subr.mxu0 0.0
        %1843 = vmatpush1.msra.mxu0 0.0
        %1844 = vmatprep.subr.mxu0 0.0
        %1845 = vmatpush1.msra.mxu0 0.0
        %1846 = vmatprep.subr.mxu0 0.0
        %1847 = vmatpush1.msra.mxu0 0.0
        %1848 = vmatprep.subr.mxu0 0.0
        %1849 = vmatpush1.msra.mxu0 0.0
        %1850 = vmatprep.subr.mxu0 0.0
        %1851 = vmatpush1.msra.mxu0 0.0
        %1852 = vmatprep.subr.mxu0 0.0
        %1853 = vmatpush1.msra.mxu0 0.0
        %1854 = vmatprep.subr.mxu0 0.0
        %1855 = vmatpush1.msra.mxu0 0.0
        %1856 = vmatprep.subr.mxu0 0.0
        %1857 = vmatpush1.msra.mxu0 0.0
        %1858 = vmatprep.subr.mxu0 0.0
        %1859 = vmatpush1.msra.mxu0 0.0
        %1860 = vmatprep.subr.mxu0 0.0
        %1861 = vmatpush1.msra.mxu0 0.0
        %1862 = vmatprep.subr.mxu0 0.0
        %1863 = vmatpush1.msra.mxu0 0.0
        %1864 = vmatprep.subr.mxu0 0.0
        %1865 = vmatpush1.msra.mxu0 0.0
        %1866 = vmatprep.mubr.f32.mxu0 0.0
        %1867 = vmatmul.mubr.f32.gmra.mrb[0].mxu0 %v1800
        %v1868 = vpop.f32.mrb[0].mxu0
        %v1869 = vadd.f32 0.0, %v1868
        %v1870 = vpop.f32.mrb[0].mxu0
        %1871 = vdwg.mxu0
        %s1872 = scalar_lea.vmem %s6, 128
        %v1873 = vld [vmem:[%s1872] sm:$0xff]
        %v1874 = vld [vmem:[%s1872 + $0x8] sm:$0xff]
        %v1875 = vld [vmem:[%s1872 + $0x10] sm:$0xff]
        %v1876 = vld [vmem:[%s1872 + $0x18] sm:$0xff]
        %v1877 = vld [vmem:[%s1872 + $0x20] sm:$0xff]
        %v1878 = vld [vmem:[%s1872 + $0x28] sm:$0xff]
        %v1879 = vld [vmem:[%s1872 + $0x30] sm:$0xff]
        %v1880 = vld [vmem:[%s1872 + $0x38] sm:$0xff]
        %v1882 = vsel %vm854, %v1869, 0
        %1884 = vmatprep.subr.mxu0 0.0
        %1885 = vmatpush1.msra.mxu0 %v1873
        %1886 = vmatprep.subr.mxu0 0.0
        %1887 = vmatpush1.msra.mxu0 %v1874
        %1888 = vmatprep.subr.mxu0 0.0
        %1889 = vmatpush1.msra.mxu0 %v1875
        %1890 = vmatprep.subr.mxu0 0.0
        %1891 = vmatpush1.msra.mxu0 %v1876
        %1892 = vmatprep.subr.mxu0 0.0
        %1893 = vmatpush1.msra.mxu0 %v1877
        %1894 = vmatprep.subr.mxu0 0.0
        %1895 = vmatpush1.msra.mxu0 %v1878
        %1896 = vmatprep.subr.mxu0 0.0
        %1897 = vmatpush1.msra.mxu0 %v1879
        %1898 = vmatprep.subr.mxu0 0.0
        %1899 = vmatpush1.msra.mxu0 %v1880
        %1900 = vmatprep.subr.mxu0 0.0
        %1901 = vmatpush1.msra.mxu0 0.0
        %1902 = vmatprep.subr.mxu0 0.0
        %1903 = vmatpush1.msra.mxu0 0.0
        %1904 = vmatprep.subr.mxu0 0.0
        %1905 = vmatpush1.msra.mxu0 0.0
        %1906 = vmatprep.subr.mxu0 0.0
        %1907 = vmatpush1.msra.mxu0 0.0
        %1908 = vmatprep.subr.mxu0 0.0
        %1909 = vmatpush1.msra.mxu0 0.0
        %1910 = vmatprep.subr.mxu0 0.0
        %1911 = vmatpush1.msra.mxu0 0.0
        %1912 = vmatprep.subr.mxu0 0.0
        %1913 = vmatpush1.msra.mxu0 0.0
        %1914 = vmatprep.subr.mxu0 0.0
        %1915 = vmatpush1.msra.mxu0 0.0
        %1916 = vmatprep.subr.mxu0 0.0
        %1917 = vmatpush1.msra.mxu0 0.0
        %1918 = vmatprep.subr.mxu0 0.0
        %1919 = vmatpush1.msra.mxu0 0.0
        %1920 = vmatprep.subr.mxu0 0.0
        %1921 = vmatpush1.msra.mxu0 0.0
        %1922 = vmatprep.subr.mxu0 0.0
        %1923 = vmatpush1.msra.mxu0 0.0
        %1924 = vmatprep.subr.mxu0 0.0
        %1925 = vmatpush1.msra.mxu0 0.0
        %1926 = vmatprep.subr.mxu0 0.0
        %1927 = vmatpush1.msra.mxu0 0.0
        %1928 = vmatprep.subr.mxu0 0.0
        %1929 = vmatpush1.msra.mxu0 0.0
        %1930 = vmatprep.subr.mxu0 0.0
        %1931 = vmatpush1.msra.mxu0 0.0
        %1932 = vmatprep.subr.mxu0 0.0
        %1933 = vmatpush1.msra.mxu0 0.0
        %1934 = vmatprep.subr.mxu0 0.0
        %1935 = vmatpush1.msra.mxu0 0.0
        %1936 = vmatprep.subr.mxu0 0.0
        %1937 = vmatpush1.msra.mxu0 0.0
        %1938 = vmatprep.subr.mxu0 0.0
        %1939 = vmatpush1.msra.mxu0 0.0
        %1940 = vmatprep.subr.mxu0 0.0
        %1941 = vmatpush1.msra.mxu0 0.0
        %1942 = vmatprep.subr.mxu0 0.0
        %1943 = vmatpush1.msra.mxu0 0.0
        %1944 = vmatprep.subr.mxu0 0.0
        %1945 = vmatpush1.msra.mxu0 0.0
        %1946 = vmatprep.subr.mxu0 0.0
        %1947 = vmatpush1.msra.mxu0 0.0
        %1948 = vmatprep.mubr.f32.mxu0 0.0
        %1949 = vmatmul.mubr.f32.gmra.mrb[0].mxu0 %v1882
        %v1950 = vpop.f32.mrb[0].mxu0
        %v1951 = vadd.f32 0.0, %v1950
        %v1952 = vpop.f32.mrb[0].mxu0
        %1953 = vdwg.mxu0
        %v1954 = vadd.f32 %v1794, %v1951
        %s1955 = scalar_lea.vmem [#allocation5], 12
        %v1956 = vld [vmem:[%s1955] sm:$0xf]
        %v1958 = vsel %vm1485, %v1956, 0
        %1960 = vmatprep.subr.mxu0 0.0
        %1961 = vmatpush1.msra.mxu0 %v1483
        %1962 = vmatprep.subr.mxu0 0.0
        %1963 = vmatpush1.msra.mxu0 0.0
        %1964 = vmatprep.subr.mxu0 0.0
        %1965 = vmatpush1.msra.mxu0 0.0
        %1966 = vmatprep.subr.mxu0 0.0
        %1967 = vmatpush1.msra.mxu0 0.0
        %1968 = vmatprep.subr.mxu0 0.0
        %1969 = vmatpush1.msra.mxu0 0.0
        %1970 = vmatprep.subr.mxu0 0.0
        %1971 = vmatpush1.msra.mxu0 0.0
        %1972 = vmatprep.subr.mxu0 0.0
        %1973 = vmatpush1.msra.mxu0 0.0
        %1974 = vmatprep.subr.mxu0 0.0
        %1975 = vmatpush1.msra.mxu0 0.0
        %1976 = vmatprep.subr.mxu0 0.0
        %1977 = vmatpush1.msra.mxu0 0.0
        %1978 = vmatprep.subr.mxu0 0.0
        %1979 = vmatpush1.msra.mxu0 0.0
        %1980 = vmatprep.subr.mxu0 0.0
        %1981 = vmatpush1.msra.mxu0 0.0
        %1982 = vmatprep.subr.mxu0 0.0
        %1983 = vmatpush1.msra.mxu0 0.0
        %1984 = vmatprep.subr.mxu0 0.0
        %1985 = vmatpush1.msra.mxu0 0.0
        %1986 = vmatprep.subr.mxu0 0.0
        %1987 = vmatpush1.msra.mxu0 0.0
        %1988 = vmatprep.subr.mxu0 0.0
        %1989 = vmatpush1.msra.mxu0 0.0
        %1990 = vmatprep.subr.mxu0 0.0
        %1991 = vmatpush1.msra.mxu0 0.0
        %1992 = vmatprep.subr.mxu0 0.0
        %1993 = vmatpush1.msra.mxu0 0.0
        %1994 = vmatprep.subr.mxu0 0.0
        %1995 = vmatpush1.msra.mxu0 0.0
        %1996 = vmatprep.subr.mxu0 0.0
        %1997 = vmatpush1.msra.mxu0 0.0
        %1998 = vmatprep.subr.mxu0 0.0
        %1999 = vmatpush1.msra.mxu0 0.0
        %2000 = vmatprep.subr.mxu0 0.0
        %2001 = vmatpush1.msra.mxu0 0.0
        %2002 = vmatprep.subr.mxu0 0.0
        %2003 = vmatpush1.msra.mxu0 0.0
        %2004 = vmatprep.subr.mxu0 0.0
        %2005 = vmatpush1.msra.mxu0 0.0
        %2006 = vmatprep.subr.mxu0 0.0
        %2007 = vmatpush1.msra.mxu0 0.0
        %2008 = vmatprep.subr.mxu0 0.0
        %2009 = vmatpush1.msra.mxu0 0.0
        %2010 = vmatprep.subr.mxu0 0.0
        %2011 = vmatpush1.msra.mxu0 0.0
        %2012 = vmatprep.subr.mxu0 0.0
        %2013 = vmatpush1.msra.mxu0 0.0
        %2014 = vmatprep.subr.mxu0 0.0
        %2015 = vmatpush1.msra.mxu0 0.0
        %2016 = vmatprep.subr.mxu0 0.0
        %2017 = vmatpush1.msra.mxu0 0.0
        %2018 = vmatprep.subr.mxu0 0.0
        %2019 = vmatpush1.msra.mxu0 0.0
        %2020 = vmatprep.subr.mxu0 0.0
        %2021 = vmatpush1.msra.mxu0 0.0
        %2022 = vmatprep.subr.mxu0 0.0
        %2023 = vmatpush1.msra.mxu0 0.0
        %2024 = vmatprep.mubr.f32.mxu0 0.0
        %2025 = vmatmul.mubr.f32.gmra.mrb[0].mxu0 %v1958
        %v2026 = vpop.f32.mrb[0].mxu0
        %v2027 = vadd.f32 0.0, %v2026
        %v2028 = vpop.f32.mrb[0].mxu0
        %2029 = vdwg.mxu0
        %s2030 = scalar_lea.vmem %s6, 192
        %v2031 = vld [vmem:[%s2030] sm:$0xff]
        %v2032 = vld [vmem:[%s2030 + $0x8] sm:$0xff]
        %v2033 = vld [vmem:[%s2030 + $0x10] sm:$0xff]
        %v2034 = vld [vmem:[%s2030 + $0x18] sm:$0xff]
        %v2035 = vld [vmem:[%s2030 + $0x20] sm:$0xff]
        %v2036 = vld [vmem:[%s2030 + $0x28] sm:$0xff]
        %v2037 = vld [vmem:[%s2030 + $0x30] sm:$0xff]
        %v2038 = vld [vmem:[%s2030 + $0x38] sm:$0xff]
        %v2040 = vsel %vm854, %v2027, 0
        %2042 = vmatprep.subr.mxu0 0.0
        %2043 = vmatpush1.msra.mxu0 %v2031
        %2044 = vmatprep.subr.mxu0 0.0
        %2045 = vmatpush1.msra.mxu0 %v2032
        %2046 = vmatprep.subr.mxu0 0.0
        %2047 = vmatpush1.msra.mxu0 %v2033
        %2048 = vmatprep.subr.mxu0 0.0
        %2049 = vmatpush1.msra.mxu0 %v2034
        %2050 = vmatprep.subr.mxu0 0.0
        %2051 = vmatpush1.msra.mxu0 %v2035
        %2052 = vmatprep.subr.mxu0 0.0
        %2053 = vmatpush1.msra.mxu0 %v2036
        %2054 = vmatprep.subr.mxu0 0.0
        %2055 = vmatpush1.msra.mxu0 %v2037
        %2056 = vmatprep.subr.mxu0 0.0
        %2057 = vmatpush1.msra.mxu0 %v2038
        %2058 = vmatprep.subr.mxu0 0.0
        %2059 = vmatpush1.msra.mxu0 0.0
        %2060 = vmatprep.subr.mxu0 0.0
        %2061 = vmatpush1.msra.mxu0 0.0
        %2062 = vmatprep.subr.mxu0 0.0
        %2063 = vmatpush1.msra.mxu0 0.0
        %2064 = vmatprep.subr.mxu0 0.0
        %2065 = vmatpush1.msra.mxu0 0.0
        %2066 = vmatprep.subr.mxu0 0.0
        %2067 = vmatpush1.msra.mxu0 0.0
        %2068 = vmatprep.subr.mxu0 0.0
        %2069 = vmatpush1.msra.mxu0 0.0
        %2070 = vmatprep.subr.mxu0 0.0
        %2071 = vmatpush1.msra.mxu0 0.0
        %2072 = vmatprep.subr.mxu0 0.0
        %2073 = vmatpush1.msra.mxu0 0.0
        %2074 = vmatprep.subr.mxu0 0.0
        %2075 = vmatpush1.msra.mxu0 0.0
        %2076 = vmatprep.subr.mxu0 0.0
        %2077 = vmatpush1.msra.mxu0 0.0
        %2078 = vmatprep.subr.mxu0 0.0
        %2079 = vmatpush1.msra.mxu0 0.0
        %2080 = vmatprep.subr.mxu0 0.0
        %2081 = vmatpush1.msra.mxu0 0.0
        %2082 = vmatprep.subr.mxu0 0.0
        %2083 = vmatpush1.msra.mxu0 0.0
        %2084 = vmatprep.subr.mxu0 0.0
        %2085 = vmatpush1.msra.mxu0 0.0
        %2086 = vmatprep.subr.mxu0 0.0
        %2087 = vmatpush1.msra.mxu0 0.0
        %2088 = vmatprep.subr.mxu0 0.0
        %2089 = vmatpush1.msra.mxu0 0.0
        %2090 = vmatprep.subr.mxu0 0.0
        %2091 = vmatpush1.msra.mxu0 0.0
        %2092 = vmatprep.subr.mxu0 0.0
        %2093 = vmatpush1.msra.mxu0 0.0
        %2094 = vmatprep.subr.mxu0 0.0
        %2095 = vmatpush1.msra.mxu0 0.0
        %2096 = vmatprep.subr.mxu0 0.0
        %2097 = vmatpush1.msra.mxu0 0.0
        %2098 = vmatprep.subr.mxu0 0.0
        %2099 = vmatpush1.msra.mxu0 0.0
        %2100 = vmatprep.subr.mxu0 0.0
        %2101 = vmatpush1.msra.mxu0 0.0
        %2102 = vmatprep.subr.mxu0 0.0
        %2103 = vmatpush1.msra.mxu0 0.0
        %2104 = vmatprep.subr.mxu0 0.0
        %2105 = vmatpush1.msra.mxu0 0.0
        %2106 = vmatprep.mubr.f32.mxu0 0.0
        %2107 = vmatmul.mubr.f32.gmra.mrb[0].mxu0 %v2040
        %v2108 = vpop.f32.mrb[0].mxu0
        %v2109 = vadd.f32 0.0, %v2108
        %v2110 = vpop.f32.mrb[0].mxu0
        %2111 = vdwg.mxu0
        %v2112 = vadd.f32 %v1954, %v2109
        %s2113 = scalar_lea.vmem [#allocation5], 16
        %v2114 = vld [vmem:[%s2113] sm:$0xf]
        %v2116 = vsel %vm1485, %v2114, 0
        %2118 = vmatprep.subr.mxu0 0.0
        %2119 = vmatpush1.msra.mxu0 %v1483
        %2120 = vmatprep.subr.mxu0 0.0
        %2121 = vmatpush1.msra.mxu0 0.0
        %2122 = vmatprep.subr.mxu0 0.0
        %2123 = vmatpush1.msra.mxu0 0.0
        %2124 = vmatprep.subr.mxu0 0.0
        %2125 = vmatpush1.msra.mxu0 0.0
        %2126 = vmatprep.subr.mxu0 0.0
        %2127 = vmatpush1.msra.mxu0 0.0
        %2128 = vmatprep.subr.mxu0 0.0
        %2129 = vmatpush1.msra.mxu0 0.0
        %2130 = vmatprep.subr.mxu0 0.0
        %2131 = vmatpush1.msra.mxu0 0.0
        %2132 = vmatprep.subr.mxu0 0.0
        %2133 = vmatpush1.msra.mxu0 0.0
        %2134 = vmatprep.subr.mxu0 0.0
        %2135 = vmatpush1.msra.mxu0 0.0
        %2136 = vmatprep.subr.mxu0 0.0
        %2137 = vmatpush1.msra.mxu0 0.0
        %2138 = vmatprep.subr.mxu0 0.0
        %2139 = vmatpush1.msra.mxu0 0.0
        %2140 = vmatprep.subr.mxu0 0.0
        %2141 = vmatpush1.msra.mxu0 0.0
        %2142 = vmatprep.subr.mxu0 0.0
        %2143 = vmatpush1.msra.mxu0 0.0
        %2144 = vmatprep.subr.mxu0 0.0
        %2145 = vmatpush1.msra.mxu0 0.0
        %2146 = vmatprep.subr.mxu0 0.0
        %2147 = vmatpush1.msra.mxu0 0.0
        %2148 = vmatprep.subr.mxu0 0.0
        %2149 = vmatpush1.msra.mxu0 0.0
        %2150 = vmatprep.subr.mxu0 0.0
        %2151 = vmatpush1.msra.mxu0 0.0
        %2152 = vmatprep.subr.mxu0 0.0
        %2153 = vmatpush1.msra.mxu0 0.0
        %2154 = vmatprep.subr.mxu0 0.0
        %2155 = vmatpush1.msra.mxu0 0.0
        %2156 = vmatprep.subr.mxu0 0.0
        %2157 = vmatpush1.msra.mxu0 0.0
        %2158 = vmatprep.subr.mxu0 0.0
        %2159 = vmatpush1.msra.mxu0 0.0
        %2160 = vmatprep.subr.mxu0 0.0
        %2161 = vmatpush1.msra.mxu0 0.0
        %2162 = vmatprep.subr.mxu0 0.0
        %2163 = vmatpush1.msra.mxu0 0.0
        %2164 = vmatprep.subr.mxu0 0.0
        %2165 = vmatpush1.msra.mxu0 0.0
        %2166 = vmatprep.subr.mxu0 0.0
        %2167 = vmatpush1.msra.mxu0 0.0
        %2168 = vmatprep.subr.mxu0 0.0
        %2169 = vmatpush1.msra.mxu0 0.0
        %2170 = vmatprep.subr.mxu0 0.0
        %2171 = vmatpush1.msra.mxu0 0.0
        %2172 = vmatprep.subr.mxu0 0.0
        %2173 = vmatpush1.msra.mxu0 0.0
        %2174 = vmatprep.subr.mxu0 0.0
        %2175 = vmatpush1.msra.mxu0 0.0
        %2176 = vmatprep.subr.mxu0 0.0
        %2177 = vmatpush1.msra.mxu0 0.0
        %2178 = vmatprep.subr.mxu0 0.0
        %2179 = vmatpush1.msra.mxu0 0.0
        %2180 = vmatprep.subr.mxu0 0.0
        %2181 = vmatpush1.msra.mxu0 0.0
        %2182 = vmatprep.mubr.f32.mxu0 0.0
        %2183 = vmatmul.mubr.f32.gmra.mrb[0].mxu0 %v2116
        %v2184 = vpop.f32.mrb[0].mxu0
        %v2185 = vadd.f32 0.0, %v2184
        %v2186 = vpop.f32.mrb[0].mxu0
        %2187 = vdwg.mxu0
        %s2188 = scalar_lea.vmem %s6, 256
        %v2189 = vld [vmem:[%s2188] sm:$0xff]
        %v2190 = vld [vmem:[%s2188 + $0x8] sm:$0xff]
        %v2191 = vld [vmem:[%s2188 + $0x10] sm:$0xff]
        %v2192 = vld [vmem:[%s2188 + $0x18] sm:$0xff]
        %v2193 = vld [vmem:[%s2188 + $0x20] sm:$0xff]
        %v2194 = vld [vmem:[%s2188 + $0x28] sm:$0xff]
        %v2195 = vld [vmem:[%s2188 + $0x30] sm:$0xff]
        %v2196 = vld [vmem:[%s2188 + $0x38] sm:$0xff]
        %v2198 = vsel %vm854, %v2185, 0
        %2200 = vmatprep.subr.mxu0 0.0
        %2201 = vmatpush1.msra.mxu0 %v2189
        %2202 = vmatprep.subr.mxu0 0.0
        %2203 = vmatpush1.msra.mxu0 %v2190
        %2204 = vmatprep.subr.mxu0 0.0
        %2205 = vmatpush1.msra.mxu0 %v2191
        %2206 = vmatprep.subr.mxu0 0.0
        %2207 = vmatpush1.msra.mxu0 %v2192
        %2208 = vmatprep.subr.mxu0 0.0
        %2209 = vmatpush1.msra.mxu0 %v2193
        %2210 = vmatprep.subr.mxu0 0.0
        %2211 = vmatpush1.msra.mxu0 %v2194
        %2212 = vmatprep.subr.mxu0 0.0
        %2213 = vmatpush1.msra.mxu0 %v2195
        %2214 = vmatprep.subr.mxu0 0.0
        %2215 = vmatpush1.msra.mxu0 %v2196
        %2216 = vmatprep.subr.mxu0 0.0
        %2217 = vmatpush1.msra.mxu0 0.0
        %2218 = vmatprep.subr.mxu0 0.0
        %2219 = vmatpush1.msra.mxu0 0.0
        %2220 = vmatprep.subr.mxu0 0.0
        %2221 = vmatpush1.msra.mxu0 0.0
        %2222 = vmatprep.subr.mxu0 0.0
        %2223 = vmatpush1.msra.mxu0 0.0
        %2224 = vmatprep.subr.mxu0 0.0
        %2225 = vmatpush1.msra.mxu0 0.0
        %2226 = vmatprep.subr.mxu0 0.0
        %2227 = vmatpush1.msra.mxu0 0.0
        %2228 = vmatprep.subr.mxu0 0.0
        %2229 = vmatpush1.msra.mxu0 0.0
        %2230 = vmatprep.subr.mxu0 0.0
        %2231 = vmatpush1.msra.mxu0 0.0
        %2232 = vmatprep.subr.mxu0 0.0
        %2233 = vmatpush1.msra.mxu0 0.0
        %2234 = vmatprep.subr.mxu0 0.0
        %2235 = vmatpush1.msra.mxu0 0.0
        %2236 = vmatprep.subr.mxu0 0.0
        %2237 = vmatpush1.msra.mxu0 0.0
        %2238 = vmatprep.subr.mxu0 0.0
        %2239 = vmatpush1.msra.mxu0 0.0
        %2240 = vmatprep.subr.mxu0 0.0
        %2241 = vmatpush1.msra.mxu0 0.0
        %2242 = vmatprep.subr.mxu0 0.0
        %2243 = vmatpush1.msra.mxu0 0.0
        %2244 = vmatprep.subr.mxu0 0.0
        %2245 = vmatpush1.msra.mxu0 0.0
        %2246 = vmatprep.subr.mxu0 0.0
        %2247 = vmatpush1.msra.mxu0 0.0
        %2248 = vmatprep.subr.mxu0 0.0
        %2249 = vmatpush1.msra.mxu0 0.0
        %2250 = vmatprep.subr.mxu0 0.0
        %2251 = vmatpush1.msra.mxu0 0.0
        %2252 = vmatprep.subr.mxu0 0.0
        %2253 = vmatpush1.msra.mxu0 0.0
        %2254 = vmatprep.subr.mxu0 0.0
        %2255 = vmatpush1.msra.mxu0 0.0
        %2256 = vmatprep.subr.mxu0 0.0
        %2257 = vmatpush1.msra.mxu0 0.0
        %2258 = vmatprep.subr.mxu0 0.0
        %2259 = vmatpush1.msra.mxu0 0.0
        %2260 = vmatprep.subr.mxu0 0.0
        %2261 = vmatpush1.msra.mxu0 0.0
        %2262 = vmatprep.subr.mxu0 0.0
        %2263 = vmatpush1.msra.mxu0 0.0
        %2264 = vmatprep.mubr.f32.mxu0 0.0
        %2265 = vmatmul.mubr.f32.gmra.mrb[0].mxu0 %v2198
        %v2266 = vpop.f32.mrb[0].mxu0
        %v2267 = vadd.f32 0.0, %v2266
        %v2268 = vpop.f32.mrb[0].mxu0
        %2269 = vdwg.mxu0
        %v2270 = vadd.f32 %v2112, %v2267
        %v2271 = vld [vmem:[%s7] sm:$0x1]
        %v2273 = vlaneseq
        %v2274 = vshrl.u32 %v2273, 7
        %v2275 = vsub.s32 0, %v2274
        %v2276 = vrot.slane %v2271, %v2275
        %v2278 = vadd.f32 %v2270, %v2276
        %v2279 = vmax.f32 %v2278, 0.0
        %v2280 = vld [vmem:[%s8] sm:$0x3]
        %vm2281 = vcmask 31744
        %v2283 = vsel %vm2281, %v2280, 0
        %vm2285 = vcmask 1043456
        %v2287 = vsel %vm2285, %v2279, 0
        %2289 = vmatprep.subr.mxu0 0.0
        %2290 = vmatpush1.msra.mxu0 %v2287
        %2291 = vmatprep.subr.mxu0 0.0
        %2292 = vmatpush1.msra.mxu0 0.0
        %2293 = vmatprep.subr.mxu0 0.0
        %2294 = vmatpush1.msra.mxu0 0.0
        %2295 = vmatprep.subr.mxu0 0.0
        %2296 = vmatpush1.msra.mxu0 0.0
        %2297 = vmatprep.subr.mxu0 0.0
        %2298 = vmatpush1.msra.mxu0 0.0
        %2299 = vmatprep.subr.mxu0 0.0
        %2300 = vmatpush1.msra.mxu0 0.0
        %2301 = vmatprep.subr.mxu0 0.0
        %2302 = vmatpush1.msra.mxu0 0.0
        %2303 = vmatprep.subr.mxu0 0.0
        %2304 = vmatpush1.msra.mxu0 0.0
        %2305 = vmatprep.subr.mxu0 0.0
        %2306 = vmatpush1.msra.mxu0 0.0
        %2307 = vmatprep.subr.mxu0 0.0
        %2308 = vmatpush1.msra.mxu0 0.0
        %2309 = vmatprep.subr.mxu0 0.0
        %2310 = vmatpush1.msra.mxu0 0.0
        %2311 = vmatprep.subr.mxu0 0.0
        %2312 = vmatpush1.msra.mxu0 0.0
        %2313 = vmatprep.subr.mxu0 0.0
        %2314 = vmatpush1.msra.mxu0 0.0
        %2315 = vmatprep.subr.mxu0 0.0
        %2316 = vmatpush1.msra.mxu0 0.0
        %2317 = vmatprep.subr.mxu0 0.0
        %2318 = vmatpush1.msra.mxu0 0.0
        %2319 = vmatprep.subr.mxu0 0.0
        %2320 = vmatpush1.msra.mxu0 0.0
        %2321 = vmatprep.subr.mxu0 0.0
        %2322 = vmatpush1.msra.mxu0 0.0
        %2323 = vmatprep.subr.mxu0 0.0
        %2324 = vmatpush1.msra.mxu0 0.0
        %2325 = vmatprep.subr.mxu0 0.0
        %2326 = vmatpush1.msra.mxu0 0.0
        %2327 = vmatprep.subr.mxu0 0.0
        %2328 = vmatpush1.msra.mxu0 0.0
        %2329 = vmatprep.subr.mxu0 0.0
        %2330 = vmatpush1.msra.mxu0 0.0
        %2331 = vmatprep.subr.mxu0 0.0
        %2332 = vmatpush1.msra.mxu0 0.0
        %2333 = vmatprep.subr.mxu0 0.0
        %2334 = vmatpush1.msra.mxu0 0.0
        %2335 = vmatprep.subr.mxu0 0.0
        %2336 = vmatpush1.msra.mxu0 0.0
        %2337 = vmatprep.subr.mxu0 0.0
        %2338 = vmatpush1.msra.mxu0 0.0
        %2339 = vmatprep.subr.mxu0 0.0
        %2340 = vmatpush1.msra.mxu0 0.0
        %2341 = vmatprep.subr.mxu0 0.0
        %2342 = vmatpush1.msra.mxu0 0.0
        %2343 = vmatprep.subr.mxu0 0.0
        %2344 = vmatpush1.msra.mxu0 0.0
        %2345 = vmatprep.subr.mxu0 0.0
        %2346 = vmatpush1.msra.mxu0 0.0
        %2347 = vmatprep.subr.mxu0 0.0
        %2348 = vmatpush1.msra.mxu0 0.0
        %2349 = vmatprep.subr.mxu0 0.0
        %2350 = vmatpush1.msra.mxu0 0.0
        %2351 = vmatprep.subr.mxu0 0.0
        %2352 = vmatpush1.msra.mxu0 0.0
        %2353 = vmatprep.mubr.f32.mxu0 0.0
        %2354 = vmatmul.mubr.f32.gmra.mrb[0].mxu0 %v2283
        %v2355 = vpop.f32.mrb[0].mxu0
        %v2356 = vadd.f32 0.0, %v2355
        %v2357 = vpop.f32.mrb[0].mxu0
        %2358 = vdwg.mxu0
        %v2359 = vld [vmem:[#allocation7] sm:$0xff]
        %v2360 = vld [vmem:[#allocation7 + $0x8] sm:$0xff]
        %v2361 = vld [vmem:[#allocation7 + $0x10] sm:$0xff]
        %v2362 = vld [vmem:[#allocation7 + $0x18] sm:$0xff]
        %v2363 = vld [vmem:[#allocation7 + $0x20] sm:$0xff]
        %v2364 = vld [vmem:[#allocation7 + $0x28] sm:$0xff]
        %v2365 = vld [vmem:[#allocation7 + $0x30] sm:$0xff]
        %v2366 = vld [vmem:[#allocation7 + $0x38] sm:$0xff]
        %s2367 = scalar_lea.vmem %s8, 2
        %v2368 = vld [vmem:[%s2367] sm:$0x3]
        %v2370 = vsel %vm2281, %v2368, 0
        %2372 = vmatprep.subr.mxu0 0.0
        %2373 = vmatpush1.msra.mxu0 %v2287
        %2374 = vmatprep.subr.mxu0 0.0
        %2375 = vmatpush1.msra.mxu0 0.0
        %2376 = vmatprep.subr.mxu0 0.0
        %2377 = vmatpush1.msra.mxu0 0.0
        %2378 = vmatprep.subr.mxu0 0.0
        %2379 = vmatpush1.msra.mxu0 0.0
        %2380 = vmatprep.subr.mxu0 0.0
        %2381 = vmatpush1.msra.mxu0 0.0
        %2382 = vmatprep.subr.mxu0 0.0
        %2383 = vmatpush1.msra.mxu0 0.0
        %2384 = vmatprep.subr.mxu0 0.0
        %2385 = vmatpush1.msra.mxu0 0.0
        %2386 = vmatprep.subr.mxu0 0.0
        %2387 = vmatpush1.msra.mxu0 0.0
        %2388 = vmatprep.subr.mxu0 0.0
        %2389 = vmatpush1.msra.mxu0 0.0
        %2390 = vmatprep.subr.mxu0 0.0
        %2391 = vmatpush1.msra.mxu0 0.0
        %2392 = vmatprep.subr.mxu0 0.0
        %2393 = vmatpush1.msra.mxu0 0.0
        %2394 = vmatprep.subr.mxu0 0.0
        %2395 = vmatpush1.msra.mxu0 0.0
        %2396 = vmatprep.subr.mxu0 0.0
        %2397 = vmatpush1.msra.mxu0 0.0
        %2398 = vmatprep.subr.mxu0 0.0
        %2399 = vmatpush1.msra.mxu0 0.0
        %2400 = vmatprep.subr.mxu0 0.0
        %2401 = vmatpush1.msra.mxu0 0.0
        %2402 = vmatprep.subr.mxu0 0.0
        %2403 = vmatpush1.msra.mxu0 0.0
        %2404 = vmatprep.subr.mxu0 0.0
        %2405 = vmatpush1.msra.mxu0 0.0
        %2406 = vmatprep.subr.mxu0 0.0
        %2407 = vmatpush1.msra.mxu0 0.0
        %2408 = vmatprep.subr.mxu0 0.0
        %2409 = vmatpush1.msra.mxu0 0.0
        %2410 = vmatprep.subr.mxu0 0.0
        %2411 = vmatpush1.msra.mxu0 0.0
        %2412 = vmatprep.subr.mxu0 0.0
        %2413 = vmatpush1.msra.mxu0 0.0
        %2414 = vmatprep.subr.mxu0 0.0
        %2415 = vmatpush1.msra.mxu0 0.0
        %2416 = vmatprep.subr.mxu0 0.0
        %2417 = vmatpush1.msra.mxu0 0.0
        %2418 = vmatprep.subr.mxu0 0.0
        %2419 = vmatpush1.msra.mxu0 0.0
        %2420 = vmatprep.subr.mxu0 0.0
        %2421 = vmatpush1.msra.mxu0 0.0
        %2422 = vmatprep.subr.mxu0 0.0
        %2423 = vmatpush1.msra.mxu0 0.0
        %2424 = vmatprep.subr.mxu0 0.0
        %2425 = vmatpush1.msra.mxu0 0.0
        %2426 = vmatprep.subr.mxu0 0.0
        %2427 = vmatpush1.msra.mxu0 0.0
        %2428 = vmatprep.subr.mxu0 0.0
        %2429 = vmatpush1.msra.mxu0 0.0
        %2430 = vmatprep.subr.mxu0 0.0
        %2431 = vmatpush1.msra.mxu0 0.0
        %2432 = vmatprep.subr.mxu0 0.0
        %2433 = vmatpush1.msra.mxu0 0.0
        %2434 = vmatprep.subr.mxu0 0.0
        %2435 = vmatpush1.msra.mxu0 0.0
        %2436 = vmatprep.mubr.f32.mxu0 0.0
        %2437 = vmatmul.mubr.f32.gmra.mrb[0].mxu0 %v2370
        %v2438 = vpop.f32.mrb[0].mxu0
        %v2439 = vadd.f32 0.0, %v2438
        %v2440 = vpop.f32.mrb[0].mxu0
        %2441 = vdwg.mxu0
        %s2442 = scalar_lea.vmem [#allocation7], 64
        %v2443 = vld [vmem:[%s2442] sm:$0xff]
        %v2444 = vld [vmem:[%s2442 + $0x8] sm:$0xff]
        %v2445 = vld [vmem:[%s2442 + $0x10] sm:$0xff]
        %v2446 = vld [vmem:[%s2442 + $0x18] sm:$0xff]
        %v2447 = vld [vmem:[%s2442 + $0x20] sm:$0xff]
        %v2448 = vld [vmem:[%s2442 + $0x28] sm:$0xff]
        %v2449 = vld [vmem:[%s2442 + $0x30] sm:$0xff]
        %v2450 = vld [vmem:[%s2442 + $0x38] sm:$0xff]
        %v2452 = vsel %vm854, %v2439, 0
        %2454 = vmatprep.subr.mxu0 0.0
        %2455 = vmatpush1.msra.mxu0 %v2443
        %2456 = vmatprep.subr.mxu0 0.0
        %2457 = vmatpush1.msra.mxu0 %v2444
        %2458 = vmatprep.subr.mxu0 0.0
        %2459 = vmatpush1.msra.mxu0 %v2445
        %2460 = vmatprep.subr.mxu0 0.0
        %2461 = vmatpush1.msra.mxu0 %v2446
        %2462 = vmatprep.subr.mxu0 0.0
        %2463 = vmatpush1.msra.mxu0 %v2447
        %2464 = vmatprep.subr.mxu0 0.0
        %2465 = vmatpush1.msra.mxu0 %v2448
        %2466 = vmatprep.subr.mxu0 0.0
        %2467 = vmatpush1.msra.mxu0 %v2449
        %2468 = vmatprep.subr.mxu0 0.0
        %2469 = vmatpush1.msra.mxu0 %v2450
        %2470 = vmatprep.subr.mxu0 0.0
        %2471 = vmatpush1.msra.mxu0 0.0
        %2472 = vmatprep.subr.mxu0 0.0
        %2473 = vmatpush1.msra.mxu0 0.0
        %2474 = vmatprep.subr.mxu0 0.0
        %2475 = vmatpush1.msra.mxu0 0.0
        %2476 = vmatprep.subr.mxu0 0.0
        %2477 = vmatpush1.msra.mxu0 0.0
        %2478 = vmatprep.subr.mxu0 0.0
        %2479 = vmatpush1.msra.mxu0 0.0
        %2480 = vmatprep.subr.mxu0 0.0
        %2481 = vmatpush1.msra.mxu0 0.0
        %2482 = vmatprep.subr.mxu0 0.0
        %2483 = vmatpush1.msra.mxu0 0.0
        %2484 = vmatprep.subr.mxu0 0.0
        %2485 = vmatpush1.msra.mxu0 0.0
        %2486 = vmatprep.subr.mxu0 0.0
        %2487 = vmatpush1.msra.mxu0 0.0
        %2488 = vmatprep.subr.mxu0 0.0
        %2489 = vmatpush1.msra.mxu0 0.0
        %2490 = vmatprep.subr.mxu0 0.0
        %2491 = vmatpush1.msra.mxu0 0.0
        %2492 = vmatprep.subr.mxu0 0.0
        %2493 = vmatpush1.msra.mxu0 0.0
        %2494 = vmatprep.subr.mxu0 0.0
        %2495 = vmatpush1.msra.mxu0 0.0
        %2496 = vmatprep.subr.mxu0 0.0
        %2497 = vmatpush1.msra.mxu0 0.0
        %2498 = vmatprep.subr.mxu0 0.0
        %2499 = vmatpush1.msra.mxu0 0.0
        %2500 = vmatprep.subr.mxu0 0.0
        %2501 = vmatpush1.msra.mxu0 0.0
        %2502 = vmatprep.subr.mxu0 0.0
        %2503 = vmatpush1.msra.mxu0 0.0
        %2504 = vmatprep.subr.mxu0 0.0
        %2505 = vmatpush1.msra.mxu0 0.0
        %2506 = vmatprep.subr.mxu0 0.0
        %2507 = vmatpush1.msra.mxu0 0.0
        %2508 = vmatprep.subr.mxu0 0.0
        %2509 = vmatpush1.msra.mxu0 0.0
        %2510 = vmatprep.subr.mxu0 0.0
        %2511 = vmatpush1.msra.mxu0 0.0
        %2512 = vmatprep.subr.mxu0 0.0
        %2513 = vmatpush1.msra.mxu0 0.0
        %2514 = vmatprep.subr.mxu0 0.0
        %2515 = vmatpush1.msra.mxu0 0.0
        %2516 = vmatprep.subr.mxu0 0.0
        %2517 = vmatpush1.msra.mxu0 0.0
        %2518 = vmatprep.mubr.f32.mxu0 0.0
        %2519 = vmatmul.mubr.f32.gmra.mrb[0].mxu0 %v2452
        %v2520 = vpop.f32.mrb[0].mxu0
        %v2521 = vadd.f32 0.0, %v2520
        %v2522 = vpop.f32.mrb[0].mxu0
        %2523 = vdwg.mxu0
        %v2525 = vsel %vm854, %v2356, 0
        %2527 = vmatprep.subr.mxu0 0.0
        %2528 = vmatpush1.msra.mxu0 %v2359
        %2529 = vmatprep.subr.mxu0 0.0
        %2530 = vmatpush1.msra.mxu0 %v2360
        %2531 = vmatprep.subr.mxu0 0.0
        %2532 = vmatpush1.msra.mxu0 %v2361
        %2533 = vmatprep.subr.mxu0 0.0
        %2534 = vmatpush1.msra.mxu0 %v2362
        %2535 = vmatprep.subr.mxu0 0.0
        %2536 = vmatpush1.msra.mxu0 %v2363
        %2537 = vmatprep.subr.mxu0 0.0
        %2538 = vmatpush1.msra.mxu0 %v2364
        %2539 = vmatprep.subr.mxu0 0.0
        %2540 = vmatpush1.msra.mxu0 %v2365
        %2541 = vmatprep.subr.mxu0 0.0
        %2542 = vmatpush1.msra.mxu0 %v2366
        %2543 = vmatprep.subr.mxu0 0.0
        %2544 = vmatpush1.msra.mxu0 0.0
        %2545 = vmatprep.subr.mxu0 0.0
        %2546 = vmatpush1.msra.mxu0 0.0
        %2547 = vmatprep.subr.mxu0 0.0
        %2548 = vmatpush1.msra.mxu0 0.0
        %2549 = vmatprep.subr.mxu0 0.0
        %2550 = vmatpush1.msra.mxu0 0.0
        %2551 = vmatprep.subr.mxu0 0.0
        %2552 = vmatpush1.msra.mxu0 0.0
        %2553 = vmatprep.subr.mxu0 0.0
        %2554 = vmatpush1.msra.mxu0 0.0
        %2555 = vmatprep.subr.mxu0 0.0
        %2556 = vmatpush1.msra.mxu0 0.0
        %2557 = vmatprep.subr.mxu0 0.0
        %2558 = vmatpush1.msra.mxu0 0.0
        %2559 = vmatprep.subr.mxu0 0.0
        %2560 = vmatpush1.msra.mxu0 0.0
        %2561 = vmatprep.subr.mxu0 0.0
        %2562 = vmatpush1.msra.mxu0 0.0
        %2563 = vmatprep.subr.mxu0 0.0
        %2564 = vmatpush1.msra.mxu0 0.0
        %2565 = vmatprep.subr.mxu0 0.0
        %2566 = vmatpush1.msra.mxu0 0.0
        %2567 = vmatprep.subr.mxu0 0.0
        %2568 = vmatpush1.msra.mxu0 0.0
        %2569 = vmatprep.subr.mxu0 0.0
        %2570 = vmatpush1.msra.mxu0 0.0
        %2571 = vmatprep.subr.mxu0 0.0
        %2572 = vmatpush1.msra.mxu0 0.0
        %2573 = vmatprep.subr.mxu0 0.0
        %2574 = vmatpush1.msra.mxu0 0.0
        %2575 = vmatprep.subr.mxu0 0.0
        %2576 = vmatpush1.msra.mxu0 0.0
        %2577 = vmatprep.subr.mxu0 0.0
        %2578 = vmatpush1.msra.mxu0 0.0
        %2579 = vmatprep.subr.mxu0 0.0
        %2580 = vmatpush1.msra.mxu0 0.0
        %2581 = vmatprep.subr.mxu0 0.0
        %2582 = vmatpush1.msra.mxu0 0.0
        %2583 = vmatprep.subr.mxu0 0.0
        %2584 = vmatpush1.msra.mxu0 0.0
        %2585 = vmatprep.subr.mxu0 0.0
        %2586 = vmatpush1.msra.mxu0 0.0
        %2587 = vmatprep.subr.mxu0 0.0
        %2588 = vmatpush1.msra.mxu0 0.0
        %2589 = vmatprep.subr.mxu0 0.0
        %2590 = vmatpush1.msra.mxu0 0.0
        %2591 = vmatprep.mubr.f32.mxu0 0.0
        %2592 = vmatmul.mubr.f32.gmra.mrb[0].mxu0 %v2525
        %v2593 = vpop.f32.mrb[0].mxu0
        %v2594 = vadd.f32 %v2521, %v2593
        %v2595 = vpop.f32.mrb[0].mxu0
        %2596 = vdwg.mxu0
        %s2597 = scalar_lea.vmem %s8, 4
        %v2598 = vld [vmem:[%s2597] sm:$0x3]
        %v2600 = vsel %vm2281, %v2598, 0
        %2602 = vmatprep.subr.mxu0 0.0
        %2603 = vmatpush1.msra.mxu0 %v2287
        %2604 = vmatprep.subr.mxu0 0.0
        %2605 = vmatpush1.msra.mxu0 0.0
        %2606 = vmatprep.subr.mxu0 0.0
        %2607 = vmatpush1.msra.mxu0 0.0
        %2608 = vmatprep.subr.mxu0 0.0
        %2609 = vmatpush1.msra.mxu0 0.0
        %2610 = vmatprep.subr.mxu0 0.0
        %2611 = vmatpush1.msra.mxu0 0.0
        %2612 = vmatprep.subr.mxu0 0.0
        %2613 = vmatpush1.msra.mxu0 0.0
        %2614 = vmatprep.subr.mxu0 0.0
        %2615 = vmatpush1.msra.mxu0 0.0
        %2616 = vmatprep.subr.mxu0 0.0
        %2617 = vmatpush1.msra.mxu0 0.0
        %2618 = vmatprep.subr.mxu0 0.0
        %2619 = vmatpush1.msra.mxu0 0.0
        %2620 = vmatprep.subr.mxu0 0.0
        %2621 = vmatpush1.msra.mxu0 0.0
        %2622 = vmatprep.subr.mxu0 0.0
        %2623 = vmatpush1.msra.mxu0 0.0
        %2624 = vmatprep.subr.mxu0 0.0
        %2625 = vmatpush1.msra.mxu0 0.0
        %2626 = vmatprep.subr.mxu0 0.0
        %2627 = vmatpush1.msra.mxu0 0.0
        %2628 = vmatprep.subr.mxu0 0.0
        %2629 = vmatpush1.msra.mxu0 0.0
        %2630 = vmatprep.subr.mxu0 0.0
        %2631 = vmatpush1.msra.mxu0 0.0
        %2632 = vmatprep.subr.mxu0 0.0
        %2633 = vmatpush1.msra.mxu0 0.0
        %2634 = vmatprep.subr.mxu0 0.0
        %2635 = vmatpush1.msra.mxu0 0.0
        %2636 = vmatprep.subr.mxu0 0.0
        %2637 = vmatpush1.msra.mxu0 0.0
        %2638 = vmatprep.subr.mxu0 0.0
        %2639 = vmatpush1.msra.mxu0 0.0
        %2640 = vmatprep.subr.mxu0 0.0
        %2641 = vmatpush1.msra.mxu0 0.0
        %2642 = vmatprep.subr.mxu0 0.0
        %2643 = vmatpush1.msra.mxu0 0.0
        %2644 = vmatprep.subr.mxu0 0.0
        %2645 = vmatpush1.msra.mxu0 0.0
        %2646 = vmatprep.subr.mxu0 0.0
        %2647 = vmatpush1.msra.mxu0 0.0
        %2648 = vmatprep.subr.mxu0 0.0
        %2649 = vmatpush1.msra.mxu0 0.0
        %2650 = vmatprep.subr.mxu0 0.0
        %2651 = vmatpush1.msra.mxu0 0.0
        %2652 = vmatprep.subr.mxu0 0.0
        %2653 = vmatpush1.msra.mxu0 0.0
        %2654 = vmatprep.subr.mxu0 0.0
        %2655 = vmatpush1.msra.mxu0 0.0
        %2656 = vmatprep.subr.mxu0 0.0
        %2657 = vmatpush1.msra.mxu0 0.0
        %2658 = vmatprep.subr.mxu0 0.0
        %2659 = vmatpush1.msra.mxu0 0.0
        %2660 = vmatprep.subr.mxu0 0.0
        %2661 = vmatpush1.msra.mxu0 0.0
        %2662 = vmatprep.subr.mxu0 0.0
        %2663 = vmatpush1.msra.mxu0 0.0
        %2664 = vmatprep.subr.mxu0 0.0
        %2665 = vmatpush1.msra.mxu0 0.0
        %2666 = vmatprep.mubr.f32.mxu0 0.0
        %2667 = vmatmul.mubr.f32.gmra.mrb[0].mxu0 %v2600
        %v2668 = vpop.f32.mrb[0].mxu0
        %v2669 = vadd.f32 0.0, %v2668
        %v2670 = vpop.f32.mrb[0].mxu0
        %2671 = vdwg.mxu0
        %s2672 = scalar_lea.vmem [#allocation7], 128
        %v2673 = vld [vmem:[%s2672] sm:$0xff]
        %v2674 = vld [vmem:[%s2672 + $0x8] sm:$0xff]
        %v2675 = vld [vmem:[%s2672 + $0x10] sm:$0xff]
        %v2676 = vld [vmem:[%s2672 + $0x18] sm:$0xff]
        %v2677 = vld [vmem:[%s2672 + $0x20] sm:$0xff]
        %v2678 = vld [vmem:[%s2672 + $0x28] sm:$0xff]
        %v2679 = vld [vmem:[%s2672 + $0x30] sm:$0xff]
        %v2680 = vld [vmem:[%s2672 + $0x38] sm:$0xff]
        %v2682 = vsel %vm854, %v2669, 0
        %2684 = vmatprep.subr.mxu0 0.0
        %2685 = vmatpush1.msra.mxu0 %v2673
        %2686 = vmatprep.subr.mxu0 0.0
        %2687 = vmatpush1.msra.mxu0 %v2674
        %2688 = vmatprep.subr.mxu0 0.0
        %2689 = vmatpush1.msra.mxu0 %v2675
        %2690 = vmatprep.subr.mxu0 0.0
        %2691 = vmatpush1.msra.mxu0 %v2676
        %2692 = vmatprep.subr.mxu0 0.0
        %2693 = vmatpush1.msra.mxu0 %v2677
        %2694 = vmatprep.subr.mxu0 0.0
        %2695 = vmatpush1.msra.mxu0 %v2678
        %2696 = vmatprep.subr.mxu0 0.0
        %2697 = vmatpush1.msra.mxu0 %v2679
        %2698 = vmatprep.subr.mxu0 0.0
        %2699 = vmatpush1.msra.mxu0 %v2680
        %2700 = vmatprep.subr.mxu0 0.0
        %2701 = vmatpush1.msra.mxu0 0.0
        %2702 = vmatprep.subr.mxu0 0.0
        %2703 = vmatpush1.msra.mxu0 0.0
        %2704 = vmatprep.subr.mxu0 0.0
        %2705 = vmatpush1.msra.mxu0 0.0
        %2706 = vmatprep.subr.mxu0 0.0
        %2707 = vmatpush1.msra.mxu0 0.0
        %2708 = vmatprep.subr.mxu0 0.0
        %2709 = vmatpush1.msra.mxu0 0.0
        %2710 = vmatprep.subr.mxu0 0.0
        %2711 = vmatpush1.msra.mxu0 0.0
        %2712 = vmatprep.subr.mxu0 0.0
        %2713 = vmatpush1.msra.mxu0 0.0
        %2714 = vmatprep.subr.mxu0 0.0
        %2715 = vmatpush1.msra.mxu0 0.0
        %2716 = vmatprep.subr.mxu0 0.0
        %2717 = vmatpush1.msra.mxu0 0.0
        %2718 = vmatprep.subr.mxu0 0.0
        %2719 = vmatpush1.msra.mxu0 0.0
        %2720 = vmatprep.subr.mxu0 0.0
        %2721 = vmatpush1.msra.mxu0 0.0
        %2722 = vmatprep.subr.mxu0 0.0
        %2723 = vmatpush1.msra.mxu0 0.0
        %2724 = vmatprep.subr.mxu0 0.0
        %2725 = vmatpush1.msra.mxu0 0.0
        %2726 = vmatprep.subr.mxu0 0.0
        %2727 = vmatpush1.msra.mxu0 0.0
        %2728 = vmatprep.subr.mxu0 0.0
        %2729 = vmatpush1.msra.mxu0 0.0
        %2730 = vmatprep.subr.mxu0 0.0
        %2731 = vmatpush1.msra.mxu0 0.0
        %2732 = vmatprep.subr.mxu0 0.0
        %2733 = vmatpush1.msra.mxu0 0.0
        %2734 = vmatprep.subr.mxu0 0.0
        %2735 = vmatpush1.msra.mxu0 0.0
        %2736 = vmatprep.subr.mxu0 0.0
        %2737 = vmatpush1.msra.mxu0 0.0
        %2738 = vmatprep.subr.mxu0 0.0
        %2739 = vmatpush1.msra.mxu0 0.0
        %2740 = vmatprep.subr.mxu0 0.0
        %2741 = vmatpush1.msra.mxu0 0.0
        %2742 = vmatprep.subr.mxu0 0.0
        %2743 = vmatpush1.msra.mxu0 0.0
        %2744 = vmatprep.subr.mxu0 0.0
        %2745 = vmatpush1.msra.mxu0 0.0
        %2746 = vmatprep.subr.mxu0 0.0
        %2747 = vmatpush1.msra.mxu0 0.0
        %2748 = vmatprep.mubr.f32.mxu0 0.0
        %2749 = vmatmul.mubr.f32.gmra.mrb[0].mxu0 %v2682
        %v2750 = vpop.f32.mrb[0].mxu0
        %v2751 = vadd.f32 0.0, %v2750
        %v2752 = vpop.f32.mrb[0].mxu0
        %2753 = vdwg.mxu0
        %v2754 = vadd.f32 %v2594, %v2751
        %s2755 = scalar_lea.vmem %s8, 6
        %v2756 = vld [vmem:[%s2755] sm:$0x3]
        %v2758 = vsel %vm2281, %v2756, 0
        %2760 = vmatprep.subr.mxu0 0.0
        %2761 = vmatpush1.msra.mxu0 %v2287
        %2762 = vmatprep.subr.mxu0 0.0
        %2763 = vmatpush1.msra.mxu0 0.0
        %2764 = vmatprep.subr.mxu0 0.0
        %2765 = vmatpush1.msra.mxu0 0.0
        %2766 = vmatprep.subr.mxu0 0.0
        %2767 = vmatpush1.msra.mxu0 0.0
        %2768 = vmatprep.subr.mxu0 0.0
        %2769 = vmatpush1.msra.mxu0 0.0
        %2770 = vmatprep.subr.mxu0 0.0
        %2771 = vmatpush1.msra.mxu0 0.0
        %2772 = vmatprep.subr.mxu0 0.0
        %2773 = vmatpush1.msra.mxu0 0.0
        %2774 = vmatprep.subr.mxu0 0.0
        %2775 = vmatpush1.msra.mxu0 0.0
        %2776 = vmatprep.subr.mxu0 0.0
        %2777 = vmatpush1.msra.mxu0 0.0
        %2778 = vmatprep.subr.mxu0 0.0
        %2779 = vmatpush1.msra.mxu0 0.0
        %2780 = vmatprep.subr.mxu0 0.0
        %2781 = vmatpush1.msra.mxu0 0.0
        %2782 = vmatprep.subr.mxu0 0.0
        %2783 = vmatpush1.msra.mxu0 0.0
        %2784 = vmatprep.subr.mxu0 0.0
        %2785 = vmatpush1.msra.mxu0 0.0
        %2786 = vmatprep.subr.mxu0 0.0
        %2787 = vmatpush1.msra.mxu0 0.0
        %2788 = vmatprep.subr.mxu0 0.0
        %2789 = vmatpush1.msra.mxu0 0.0
        %2790 = vmatprep.subr.mxu0 0.0
        %2791 = vmatpush1.msra.mxu0 0.0
        %2792 = vmatprep.subr.mxu0 0.0
        %2793 = vmatpush1.msra.mxu0 0.0
        %2794 = vmatprep.subr.mxu0 0.0
        %2795 = vmatpush1.msra.mxu0 0.0
        %2796 = vmatprep.subr.mxu0 0.0
        %2797 = vmatpush1.msra.mxu0 0.0
        %2798 = vmatprep.subr.mxu0 0.0
        %2799 = vmatpush1.msra.mxu0 0.0
        %2800 = vmatprep.subr.mxu0 0.0
        %2801 = vmatpush1.msra.mxu0 0.0
        %2802 = vmatprep.subr.mxu0 0.0
        %2803 = vmatpush1.msra.mxu0 0.0
        %2804 = vmatprep.subr.mxu0 0.0
        %2805 = vmatpush1.msra.mxu0 0.0
        %2806 = vmatprep.subr.mxu0 0.0
        %2807 = vmatpush1.msra.mxu0 0.0
        %2808 = vmatprep.subr.mxu0 0.0
        %2809 = vmatpush1.msra.mxu0 0.0
        %2810 = vmatprep.subr.mxu0 0.0
        %2811 = vmatpush1.msra.mxu0 0.0
        %2812 = vmatprep.subr.mxu0 0.0
        %2813 = vmatpush1.msra.mxu0 0.0
        %2814 = vmatprep.subr.mxu0 0.0
        %2815 = vmatpush1.msra.mxu0 0.0
        %2816 = vmatprep.subr.mxu0 0.0
        %2817 = vmatpush1.msra.mxu0 0.0
        %2818 = vmatprep.subr.mxu0 0.0
        %2819 = vmatpush1.msra.mxu0 0.0
        %2820 = vmatprep.subr.mxu0 0.0
        %2821 = vmatpush1.msra.mxu0 0.0
        %2822 = vmatprep.subr.mxu0 0.0
        %2823 = vmatpush1.msra.mxu0 0.0
        %2824 = vmatprep.mubr.f32.mxu0 0.0
        %2825 = vmatmul.mubr.f32.gmra.mrb[0].mxu0 %v2758
        %v2826 = vpop.f32.mrb[0].mxu0
        %v2827 = vadd.f32 0.0, %v2826
        %v2828 = vpop.f32.mrb[0].mxu0
        %2829 = vdwg.mxu0
        %s2830 = scalar_lea.vmem [#allocation7], 192
        %v2831 = vld [vmem:[%s2830] sm:$0xff]
        %v2832 = vld [vmem:[%s2830 + $0x8] sm:$0xff]
        %v2833 = vld [vmem:[%s2830 + $0x10] sm:$0xff]
        %v2834 = vld [vmem:[%s2830 + $0x18] sm:$0xff]
        %v2835 = vld [vmem:[%s2830 + $0x20] sm:$0xff]
        %v2836 = vld [vmem:[%s2830 + $0x28] sm:$0xff]
        %v2837 = vld [vmem:[%s2830 + $0x30] sm:$0xff]
        %v2838 = vld [vmem:[%s2830 + $0x38] sm:$0xff]
        %v2840 = vsel %vm854, %v2827, 0
        %2842 = vmatprep.subr.mxu0 0.0
        %2843 = vmatpush1.msra.mxu0 %v2831
        %2844 = vmatprep.subr.mxu0 0.0
        %2845 = vmatpush1.msra.mxu0 %v2832
        %2846 = vmatprep.subr.mxu0 0.0
        %2847 = vmatpush1.msra.mxu0 %v2833
        %2848 = vmatprep.subr.mxu0 0.0
        %2849 = vmatpush1.msra.mxu0 %v2834
        %2850 = vmatprep.subr.mxu0 0.0
        %2851 = vmatpush1.msra.mxu0 %v2835
        %2852 = vmatprep.subr.mxu0 0.0
        %2853 = vmatpush1.msra.mxu0 %v2836
        %2854 = vmatprep.subr.mxu0 0.0
        %2855 = vmatpush1.msra.mxu0 %v2837
        %2856 = vmatprep.subr.mxu0 0.0
        %2857 = vmatpush1.msra.mxu0 %v2838
        %2858 = vmatprep.subr.mxu0 0.0
        %2859 = vmatpush1.msra.mxu0 0.0
        %2860 = vmatprep.subr.mxu0 0.0
        %2861 = vmatpush1.msra.mxu0 0.0
        %2862 = vmatprep.subr.mxu0 0.0
        %2863 = vmatpush1.msra.mxu0 0.0
        %2864 = vmatprep.subr.mxu0 0.0
        %2865 = vmatpush1.msra.mxu0 0.0
        %2866 = vmatprep.subr.mxu0 0.0
        %2867 = vmatpush1.msra.mxu0 0.0
        %2868 = vmatprep.subr.mxu0 0.0
        %2869 = vmatpush1.msra.mxu0 0.0
        %2870 = vmatprep.subr.mxu0 0.0
        %2871 = vmatpush1.msra.mxu0 0.0
        %2872 = vmatprep.subr.mxu0 0.0
        %2873 = vmatpush1.msra.mxu0 0.0
        %2874 = vmatprep.subr.mxu0 0.0
        %2875 = vmatpush1.msra.mxu0 0.0
        %2876 = vmatprep.subr.mxu0 0.0
        %2877 = vmatpush1.msra.mxu0 0.0
        %2878 = vmatprep.subr.mxu0 0.0
        %2879 = vmatpush1.msra.mxu0 0.0
        %2880 = vmatprep.subr.mxu0 0.0
        %2881 = vmatpush1.msra.mxu0 0.0
        %2882 = vmatprep.subr.mxu0 0.0
        %2883 = vmatpush1.msra.mxu0 0.0
        %2884 = vmatprep.subr.mxu0 0.0
        %2885 = vmatpush1.msra.mxu0 0.0
        %2886 = vmatprep.subr.mxu0 0.0
        %2887 = vmatpush1.msra.mxu0 0.0
        %2888 = vmatprep.subr.mxu0 0.0
        %2889 = vmatpush1.msra.mxu0 0.0
        %2890 = vmatprep.subr.mxu0 0.0
        %2891 = vmatpush1.msra.mxu0 0.0
        %2892 = vmatprep.subr.mxu0 0.0
        %2893 = vmatpush1.msra.mxu0 0.0
        %2894 = vmatprep.subr.mxu0 0.0
        %2895 = vmatpush1.msra.mxu0 0.0
        %2896 = vmatprep.subr.mxu0 0.0
        %2897 = vmatpush1.msra.mxu0 0.0
        %2898 = vmatprep.subr.mxu0 0.0
        %2899 = vmatpush1.msra.mxu0 0.0
        %2900 = vmatprep.subr.mxu0 0.0
        %2901 = vmatpush1.msra.mxu0 0.0
        %2902 = vmatprep.subr.mxu0 0.0
        %2903 = vmatpush1.msra.mxu0 0.0
        %2904 = vmatprep.subr.mxu0 0.0
        %2905 = vmatpush1.msra.mxu0 0.0
        %2906 = vmatprep.mubr.f32.mxu0 0.0
        %2907 = vmatmul.mubr.f32.gmra.mrb[0].mxu0 %v2840
        %v2908 = vpop.f32.mrb[0].mxu0
        %v2909 = vadd.f32 0.0, %v2908
        %v2910 = vpop.f32.mrb[0].mxu0
        %2911 = vdwg.mxu0
        %v2912 = vadd.f32 %v2754, %v2909
        %s2913 = scalar_lea.vmem %s8, 8
        %v2914 = vld [vmem:[%s2913] sm:$0x3]
        %v2916 = vsel %vm2281, %v2914, 0
        %2918 = vmatprep.subr.mxu0 0.0
        %2919 = vmatpush1.msra.mxu0 %v2287
        %2920 = vmatprep.subr.mxu0 0.0
        %2921 = vmatpush1.msra.mxu0 0.0
        %2922 = vmatprep.subr.mxu0 0.0
        %2923 = vmatpush1.msra.mxu0 0.0
        %2924 = vmatprep.subr.mxu0 0.0
        %2925 = vmatpush1.msra.mxu0 0.0
        %2926 = vmatprep.subr.mxu0 0.0
        %2927 = vmatpush1.msra.mxu0 0.0
        %2928 = vmatprep.subr.mxu0 0.0
        %2929 = vmatpush1.msra.mxu0 0.0
        %2930 = vmatprep.subr.mxu0 0.0
        %2931 = vmatpush1.msra.mxu0 0.0
        %2932 = vmatprep.subr.mxu0 0.0
        %2933 = vmatpush1.msra.mxu0 0.0
        %2934 = vmatprep.subr.mxu0 0.0
        %2935 = vmatpush1.msra.mxu0 0.0
        %2936 = vmatprep.subr.mxu0 0.0
        %2937 = vmatpush1.msra.mxu0 0.0
        %2938 = vmatprep.subr.mxu0 0.0
        %2939 = vmatpush1.msra.mxu0 0.0
        %2940 = vmatprep.subr.mxu0 0.0
        %2941 = vmatpush1.msra.mxu0 0.0
        %2942 = vmatprep.subr.mxu0 0.0
        %2943 = vmatpush1.msra.mxu0 0.0
        %2944 = vmatprep.subr.mxu0 0.0
        %2945 = vmatpush1.msra.mxu0 0.0
        %2946 = vmatprep.subr.mxu0 0.0
        %2947 = vmatpush1.msra.mxu0 0.0
        %2948 = vmatprep.subr.mxu0 0.0
        %2949 = vmatpush1.msra.mxu0 0.0
        %2950 = vmatprep.subr.mxu0 0.0
        %2951 = vmatpush1.msra.mxu0 0.0
        %2952 = vmatprep.subr.mxu0 0.0
        %2953 = vmatpush1.msra.mxu0 0.0
        %2954 = vmatprep.subr.mxu0 0.0
        %2955 = vmatpush1.msra.mxu0 0.0
        %2956 = vmatprep.subr.mxu0 0.0
        %2957 = vmatpush1.msra.mxu0 0.0
        %2958 = vmatprep.subr.mxu0 0.0
        %2959 = vmatpush1.msra.mxu0 0.0
        %2960 = vmatprep.subr.mxu0 0.0
        %2961 = vmatpush1.msra.mxu0 0.0
        %2962 = vmatprep.subr.mxu0 0.0
        %2963 = vmatpush1.msra.mxu0 0.0
        %2964 = vmatprep.subr.mxu0 0.0
        %2965 = vmatpush1.msra.mxu0 0.0
        %2966 = vmatprep.subr.mxu0 0.0
        %2967 = vmatpush1.msra.mxu0 0.0
        %2968 = vmatprep.subr.mxu0 0.0
        %2969 = vmatpush1.msra.mxu0 0.0
        %2970 = vmatprep.subr.mxu0 0.0
        %2971 = vmatpush1.msra.mxu0 0.0
        %2972 = vmatprep.subr.mxu0 0.0
        %2973 = vmatpush1.msra.mxu0 0.0
        %2974 = vmatprep.subr.mxu0 0.0
        %2975 = vmatpush1.msra.mxu0 0.0
        %2976 = vmatprep.subr.mxu0 0.0
        %2977 = vmatpush1.msra.mxu0 0.0
        %2978 = vmatprep.subr.mxu0 0.0
        %2979 = vmatpush1.msra.mxu0 0.0
        %2980 = vmatprep.subr.mxu0 0.0
        %2981 = vmatpush1.msra.mxu0 0.0
        %2982 = vmatprep.mubr.f32.mxu0 0.0
        %2983 = vmatmul.mubr.f32.gmra.mrb[0].mxu0 %v2916
        %v2984 = vpop.f32.mrb[0].mxu0
        %v2985 = vadd.f32 0.0, %v2984
        %v2986 = vpop.f32.mrb[0].mxu0
        %2987 = vdwg.mxu0
        %s2988 = scalar_lea.vmem [#allocation7], 256
        %v2989 = vld [vmem:[%s2988] sm:$0xff]
        %v2990 = vld [vmem:[%s2988 + $0x8] sm:$0xff]
        %v2991 = vld [vmem:[%s2988 + $0x10] sm:$0xff]
        %v2992 = vld [vmem:[%s2988 + $0x18] sm:$0xff]
        %v2993 = vld [vmem:[%s2988 + $0x20] sm:$0xff]
        %v2994 = vld [vmem:[%s2988 + $0x28] sm:$0xff]
        %v2995 = vld [vmem:[%s2988 + $0x30] sm:$0xff]
        %v2996 = vld [vmem:[%s2988 + $0x38] sm:$0xff]
        %v2998 = vsel %vm854, %v2985, 0
        %3000 = vmatprep.subr.mxu0 0.0
        %3001 = vmatpush1.msra.mxu0 %v2989
        %3002 = vmatprep.subr.mxu0 0.0
        %3003 = vmatpush1.msra.mxu0 %v2990
        %3004 = vmatprep.subr.mxu0 0.0
        %3005 = vmatpush1.msra.mxu0 %v2991
        %3006 = vmatprep.subr.mxu0 0.0
        %3007 = vmatpush1.msra.mxu0 %v2992
        %3008 = vmatprep.subr.mxu0 0.0
        %3009 = vmatpush1.msra.mxu0 %v2993
        %3010 = vmatprep.subr.mxu0 0.0
        %3011 = vmatpush1.msra.mxu0 %v2994
        %3012 = vmatprep.subr.mxu0 0.0
        %3013 = vmatpush1.msra.mxu0 %v2995
        %3014 = vmatprep.subr.mxu0 0.0
        %3015 = vmatpush1.msra.mxu0 %v2996
        %3016 = vmatprep.subr.mxu0 0.0
        %3017 = vmatpush1.msra.mxu0 0.0
        %3018 = vmatprep.subr.mxu0 0.0
        %3019 = vmatpush1.msra.mxu0 0.0
        %3020 = vmatprep.subr.mxu0 0.0
        %3021 = vmatpush1.msra.mxu0 0.0
        %3022 = vmatprep.subr.mxu0 0.0
        %3023 = vmatpush1.msra.mxu0 0.0
        %3024 = vmatprep.subr.mxu0 0.0
        %3025 = vmatpush1.msra.mxu0 0.0
        %3026 = vmatprep.subr.mxu0 0.0
        %3027 = vmatpush1.msra.mxu0 0.0
        %3028 = vmatprep.subr.mxu0 0.0
        %3029 = vmatpush1.msra.mxu0 0.0
        %3030 = vmatprep.subr.mxu0 0.0
        %3031 = vmatpush1.msra.mxu0 0.0
        %3032 = vmatprep.subr.mxu0 0.0
        %3033 = vmatpush1.msra.mxu0 0.0
        %3034 = vmatprep.subr.mxu0 0.0
        %3035 = vmatpush1.msra.mxu0 0.0
        %3036 = vmatprep.subr.mxu0 0.0
        %3037 = vmatpush1.msra.mxu0 0.0
        %3038 = vmatprep.subr.mxu0 0.0
        %3039 = vmatpush1.msra.mxu0 0.0
        %3040 = vmatprep.subr.mxu0 0.0
        %3041 = vmatpush1.msra.mxu0 0.0
        %3042 = vmatprep.subr.mxu0 0.0
        %3043 = vmatpush1.msra.mxu0 0.0
        %3044 = vmatprep.subr.mxu0 0.0
        %3045 = vmatpush1.msra.mxu0 0.0
        %3046 = vmatprep.subr.mxu0 0.0
        %3047 = vmatpush1.msra.mxu0 0.0
        %3048 = vmatprep.subr.mxu0 0.0
        %3049 = vmatpush1.msra.mxu0 0.0
        %3050 = vmatprep.subr.mxu0 0.0
        %3051 = vmatpush1.msra.mxu0 0.0
        %3052 = vmatprep.subr.mxu0 0.0
        %3053 = vmatpush1.msra.mxu0 0.0
        %3054 = vmatprep.subr.mxu0 0.0
        %3055 = vmatpush1.msra.mxu0 0.0
        %3056 = vmatprep.subr.mxu0 0.0
        %3057 = vmatpush1.msra.mxu0 0.0
        %3058 = vmatprep.subr.mxu0 0.0
        %3059 = vmatpush1.msra.mxu0 0.0
        %3060 = vmatprep.subr.mxu0 0.0
        %3061 = vmatpush1.msra.mxu0 0.0
        %3062 = vmatprep.subr.mxu0 0.0
        %3063 = vmatpush1.msra.mxu0 0.0
        %3064 = vmatprep.mubr.f32.mxu0 0.0
        %3065 = vmatmul.mubr.f32.gmra.mrb[0].mxu0 %v2998
        %v3066 = vpop.f32.mrb[0].mxu0
        %v3067 = vadd.f32 0.0, %v3066
        %v3068 = vpop.f32.mrb[0].mxu0
        %3069 = vdwg.mxu0
        %v3070 = vadd.f32 %v2912, %v3067
        %v3071 = vld [vmem:[%s10] sm:$0x1]
        %v3073 = vlaneseq
        %v3074 = vshrl.u32 %v3073, 7
        %v3075 = vsub.s32 0, %v3074
        %v3076 = vrot.slane %v3071, %v3075
        %v3078 = vadd.f32 %v3070, %v3076
        %v3079 = vmax.f32 %v3078, 0.0
        %v3080 = vld [vmem:[%s11] sm:$0xff]
        %v3081 = vld [vmem:[%s11 + $0x8] sm:$0xff]
        %v3082 = vld [vmem:[%s11 + $0x10] sm:$0xff]
        %v3083 = vld [vmem:[%s11 + $0x18] sm:$0xff]
        %v3084 = vld [vmem:[%s11 + $0x20] sm:$0xff]
        %v3085 = vld [vmem:[%s11 + $0x28] sm:$0xff]
        %v3086 = vld [vmem:[%s11 + $0x30] sm:$0xff]
        %v3087 = vld [vmem:[%s11 + $0x38] sm:$0xff]
        %s3088 = scalar_lea.vmem %s11, 64
        %v3089 = vld [vmem:[%s3088] sm:$0xff]
        %v3090 = vld [vmem:[%s3088 + $0x8] sm:$0xff]
        %v3091 = vld [vmem:[%s3088 + $0x10] sm:$0xff]
        %v3092 = vld [vmem:[%s3088 + $0x18] sm:$0xff]
        %v3093 = vld [vmem:[%s3088 + $0x20] sm:$0xff]
        %v3094 = vld [vmem:[%s3088 + $0x28] sm:$0xff]
        %v3095 = vld [vmem:[%s3088 + $0x30] sm:$0xff]
        %v3096 = vld [vmem:[%s3088 + $0x38] sm:$0xff]
        %v3098 = vrot.slane %v3079, 1
        %v3099 = vsel %vm854, %v3098, 0
        %3101 = vmatprep.subr.mxu0 0.0
        %3102 = vmatpush1.msra.mxu0 %v3089
        %3103 = vmatprep.subr.mxu0 0.0
        %3104 = vmatpush1.msra.mxu0 %v3090
        %3105 = vmatprep.subr.mxu0 0.0
        %3106 = vmatpush1.msra.mxu0 %v3091
        %3107 = vmatprep.subr.mxu0 0.0
        %3108 = vmatpush1.msra.mxu0 %v3092
        %3109 = vmatprep.subr.mxu0 0.0
        %3110 = vmatpush1.msra.mxu0 %v3093
        %3111 = vmatprep.subr.mxu0 0.0
        %3112 = vmatpush1.msra.mxu0 %v3094
        %3113 = vmatprep.subr.mxu0 0.0
        %3114 = vmatpush1.msra.mxu0 %v3095
        %3115 = vmatprep.subr.mxu0 0.0
        %3116 = vmatpush1.msra.mxu0 %v3096
        %3117 = vmatprep.subr.mxu0 0.0
        %3118 = vmatpush1.msra.mxu0 0.0
        %3119 = vmatprep.subr.mxu0 0.0
        %3120 = vmatpush1.msra.mxu0 0.0
        %3121 = vmatprep.subr.mxu0 0.0
        %3122 = vmatpush1.msra.mxu0 0.0
        %3123 = vmatprep.subr.mxu0 0.0
        %3124 = vmatpush1.msra.mxu0 0.0
        %3125 = vmatprep.subr.mxu0 0.0
        %3126 = vmatpush1.msra.mxu0 0.0
        %3127 = vmatprep.subr.mxu0 0.0
        %3128 = vmatpush1.msra.mxu0 0.0
        %3129 = vmatprep.subr.mxu0 0.0
        %3130 = vmatpush1.msra.mxu0 0.0
        %3131 = vmatprep.subr.mxu0 0.0
        %3132 = vmatpush1.msra.mxu0 0.0
        %3133 = vmatprep.subr.mxu0 0.0
        %3134 = vmatpush1.msra.mxu0 0.0
        %3135 = vmatprep.subr.mxu0 0.0
        %3136 = vmatpush1.msra.mxu0 0.0
        %3137 = vmatprep.subr.mxu0 0.0
        %3138 = vmatpush1.msra.mxu0 0.0
        %3139 = vmatprep.subr.mxu0 0.0
        %3140 = vmatpush1.msra.mxu0 0.0
        %3141 = vmatprep.subr.mxu0 0.0
        %3142 = vmatpush1.msra.mxu0 0.0
        %3143 = vmatprep.subr.mxu0 0.0
        %3144 = vmatpush1.msra.mxu0 0.0
        %3145 = vmatprep.subr.mxu0 0.0
        %3146 = vmatpush1.msra.mxu0 0.0
        %3147 = vmatprep.subr.mxu0 0.0
        %3148 = vmatpush1.msra.mxu0 0.0
        %3149 = vmatprep.subr.mxu0 0.0
        %3150 = vmatpush1.msra.mxu0 0.0
        %3151 = vmatprep.subr.mxu0 0.0
        %3152 = vmatpush1.msra.mxu0 0.0
        %3153 = vmatprep.subr.mxu0 0.0
        %3154 = vmatpush1.msra.mxu0 0.0
        %3155 = vmatprep.subr.mxu0 0.0
        %3156 = vmatpush1.msra.mxu0 0.0
        %3157 = vmatprep.subr.mxu0 0.0
        %3158 = vmatpush1.msra.mxu0 0.0
        %3159 = vmatprep.subr.mxu0 0.0
        %3160 = vmatpush1.msra.mxu0 0.0
        %3161 = vmatprep.subr.mxu0 0.0
        %3162 = vmatpush1.msra.mxu0 0.0
        %3163 = vmatprep.subr.mxu0 0.0
        %3164 = vmatpush1.msra.mxu0 0.0
        %3165 = vmatprep.mubr.f32.mxu0 0.0
        %3166 = vmatmul.mubr.f32.gmra.mrb[0].mxu0 %v3099
        %v3167 = vpop.f32.mrb[0].mxu0
        %v3168 = vadd.f32 0.0, %v3167
        %v3169 = vpop.f32.mrb[0].mxu0
        %3170 = vdwg.mxu0
        %v3171 = vsel %vm854, %v3079, 0
        %3173 = vmatprep.subr.mxu0 0.0
        %3174 = vmatpush1.msra.mxu0 %v3080
        %3175 = vmatprep.subr.mxu0 0.0
        %3176 = vmatpush1.msra.mxu0 %v3081
        %3177 = vmatprep.subr.mxu0 0.0
        %3178 = vmatpush1.msra.mxu0 %v3082
        %3179 = vmatprep.subr.mxu0 0.0
        %3180 = vmatpush1.msra.mxu0 %v3083
        %3181 = vmatprep.subr.mxu0 0.0
        %3182 = vmatpush1.msra.mxu0 %v3084
        %3183 = vmatprep.subr.mxu0 0.0
        %3184 = vmatpush1.msra.mxu0 %v3085
        %3185 = vmatprep.subr.mxu0 0.0
        %3186 = vmatpush1.msra.mxu0 %v3086
        %3187 = vmatprep.subr.mxu0 0.0
        %3188 = vmatpush1.msra.mxu0 %v3087
        %3189 = vmatprep.subr.mxu0 0.0
        %3190 = vmatpush1.msra.mxu0 0.0
        %3191 = vmatprep.subr.mxu0 0.0
        %3192 = vmatpush1.msra.mxu0 0.0
        %3193 = vmatprep.subr.mxu0 0.0
        %3194 = vmatpush1.msra.mxu0 0.0
        %3195 = vmatprep.subr.mxu0 0.0
        %3196 = vmatpush1.msra.mxu0 0.0
        %3197 = vmatprep.subr.mxu0 0.0
        %3198 = vmatpush1.msra.mxu0 0.0
        %3199 = vmatprep.subr.mxu0 0.0
        %3200 = vmatpush1.msra.mxu0 0.0
        %3201 = vmatprep.subr.mxu0 0.0
        %3202 = vmatpush1.msra.mxu0 0.0
        %3203 = vmatprep.subr.mxu0 0.0
        %3204 = vmatpush1.msra.mxu0 0.0
        %3205 = vmatprep.subr.mxu0 0.0
        %3206 = vmatpush1.msra.mxu0 0.0
        %3207 = vmatprep.subr.mxu0 0.0
        %3208 = vmatpush1.msra.mxu0 0.0
        %3209 = vmatprep.subr.mxu0 0.0
        %3210 = vmatpush1.msra.mxu0 0.0
        %3211 = vmatprep.subr.mxu0 0.0
        %3212 = vmatpush1.msra.mxu0 0.0
        %3213 = vmatprep.subr.mxu0 0.0
        %3214 = vmatpush1.msra.mxu0 0.0
        %3215 = vmatprep.subr.mxu0 0.0
        %3216 = vmatpush1.msra.mxu0 0.0
        %3217 = vmatprep.subr.mxu0 0.0
        %3218 = vmatpush1.msra.mxu0 0.0
        %3219 = vmatprep.subr.mxu0 0.0
        %3220 = vmatpush1.msra.mxu0 0.0
        %3221 = vmatprep.subr.mxu0 0.0
        %3222 = vmatpush1.msra.mxu0 0.0
        %3223 = vmatprep.subr.mxu0 0.0
        %3224 = vmatpush1.msra.mxu0 0.0
        %3225 = vmatprep.subr.mxu0 0.0
        %3226 = vmatpush1.msra.mxu0 0.0
        %3227 = vmatprep.subr.mxu0 0.0
        %3228 = vmatpush1.msra.mxu0 0.0
        %3229 = vmatprep.subr.mxu0 0.0
        %3230 = vmatpush1.msra.mxu0 0.0
        %3231 = vmatprep.subr.mxu0 0.0
        %3232 = vmatpush1.msra.mxu0 0.0
        %3233 = vmatprep.subr.mxu0 0.0
        %3234 = vmatpush1.msra.mxu0 0.0
        %3235 = vmatprep.subr.mxu0 0.0
        %3236 = vmatpush1.msra.mxu0 0.0
        %3237 = vmatprep.mubr.f32.mxu0 0.0
        %3238 = vmatmul.mubr.f32.gmra.mrb[0].mxu0 %v3171
        %v3239 = vpop.f32.mrb[0].mxu0
        %v3240 = vadd.f32 %v3168, %v3239
        %v3241 = vpop.f32.mrb[0].mxu0
        %3242 = vdwg.mxu0
        %v3243 = vld [vmem:[%s12] sm:$0x1]
        %v3244 = vadd.f32 %v3240, %v3243
        %v3245 = vmax.f32 %v3244, 0.0
        %v3246 = vld [vmem:[#allocation8] sm:$0xff]
        %v3247 = vld [vmem:[#allocation8 + $0x8] sm:$0xff]
        %v3248 = vld [vmem:[#allocation8 + $0x10] sm:$0xff]
        %v3249 = vld [vmem:[#allocation8 + $0x18] sm:$0xff]
        %v3250 = vld [vmem:[%s684] sm:$0x1]
        %v3251 = vld [vmem:[#allocation10] sm:$0xff]
        %v3252 = vld [vmem:[#allocation10 + $0x8] sm:$0x3]
        %vm3253 = vcmask 80896
        %v3255 = vsel %vm3253, %v3250, 0
        %vm3257 = vcmask 1041408
        %v3259 = vsel %vm3257, %v3252, 0
        %3261 = vmatprep.subr.mxu0 0.0
        %3262 = vmatpush1.msra.mxu0 %v3251
        %3263 = vmatprep.subr.mxu0 0.0
        %3264 = vmatpush1.msra.mxu0 %v3259
        %3265 = vmatprep.subr.mxu0 0.0
        %3266 = vmatpush1.msra.mxu0 0.0
        %3267 = vmatprep.subr.mxu0 0.0
        %3268 = vmatpush1.msra.mxu0 0.0
        %3269 = vmatprep.subr.mxu0 0.0
        %3270 = vmatpush1.msra.mxu0 0.0
        %3271 = vmatprep.subr.mxu0 0.0
        %3272 = vmatpush1.msra.mxu0 0.0
        %3273 = vmatprep.subr.mxu0 0.0
        %3274 = vmatpush1.msra.mxu0 0.0
        %3275 = vmatprep.subr.mxu0 0.0
        %3276 = vmatpush1.msra.mxu0 0.0
        %3277 = vmatprep.subr.mxu0 0.0
        %3278 = vmatpush1.msra.mxu0 0.0
        %3279 = vmatprep.subr.mxu0 0.0
        %3280 = vmatpush1.msra.mxu0 0.0
        %3281 = vmatprep.subr.mxu0 0.0
        %3282 = vmatpush1.msra.mxu0 0.0
        %3283 = vmatprep.subr.mxu0 0.0
        %3284 = vmatpush1.msra.mxu0 0.0
        %3285 = vmatprep.subr.mxu0 0.0
        %3286 = vmatpush1.msra.mxu0 0.0
        %3287 = vmatprep.subr.mxu0 0.0
        %3288 = vmatpush1.msra.mxu0 0.0
        %3289 = vmatprep.subr.mxu0 0.0
        %3290 = vmatpush1.msra.mxu0 0.0
        %3291 = vmatprep.subr.mxu0 0.0
        %3292 = vmatpush1.msra.mxu0 0.0
        %3293 = vmatprep.subr.mxu0 0.0
        %3294 = vmatpush1.msra.mxu0 0.0
        %3295 = vmatprep.subr.mxu0 0.0
        %3296 = vmatpush1.msra.mxu0 0.0
        %3297 = vmatprep.subr.mxu0 0.0
        %3298 = vmatpush1.msra.mxu0 0.0
        %3299 = vmatprep.subr.mxu0 0.0
        %3300 = vmatpush1.msra.mxu0 0.0
        %3301 = vmatprep.subr.mxu0 0.0
        %3302 = vmatpush1.msra.mxu0 0.0
        %3303 = vmatprep.subr.mxu0 0.0
        %3304 = vmatpush1.msra.mxu0 0.0
        %3305 = vmatprep.subr.mxu0 0.0
        %3306 = vmatpush1.msra.mxu0 0.0
        %3307 = vmatprep.subr.mxu0 0.0
        %3308 = vmatpush1.msra.mxu0 0.0
        %3309 = vmatprep.subr.mxu0 0.0
        %3310 = vmatpush1.msra.mxu0 0.0
        %3311 = vmatprep.subr.mxu0 0.0
        %3312 = vmatpush1.msra.mxu0 0.0
        %3313 = vmatprep.subr.mxu0 0.0
        %3314 = vmatpush1.msra.mxu0 0.0
        %3315 = vmatprep.subr.mxu0 0.0
        %3316 = vmatpush1.msra.mxu0 0.0
        %3317 = vmatprep.subr.mxu0 0.0
        %3318 = vmatpush1.msra.mxu0 0.0
        %3319 = vmatprep.subr.mxu0 0.0
        %3320 = vmatpush1.msra.mxu0 0.0
        %3321 = vmatprep.subr.mxu0 0.0
        %3322 = vmatpush1.msra.mxu0 0.0
        %3323 = vmatprep.subr.mxu0 0.0
        %3324 = vmatpush1.msra.mxu0 0.0
        %3325 = vmatprep.mubr.f32.mxu0 0.0
        %3326 = vmatmul.mubr.f32.gmra.mrb[0].mxu0 %v3255
        %v3327 = vpop.f32.mrb[0].mxu0
        %v3328 = vadd.f32 0.0, %v3327
        %v3329 = vpop.f32.mrb[0].mxu0
        %3330 = vdwg.mxu0
        %vm3331 = vcmask 261120
        %v3333 = vsel %vm3331, %v3245, 0
        %3335 = vmatprep.subr.mxu0 0.0
        %3336 = vmatpush1.msra.mxu0 %v3246
        %3337 = vmatprep.subr.mxu0 0.0
        %3338 = vmatpush1.msra.mxu0 %v3247
        %3339 = vmatprep.subr.mxu0 0.0
        %3340 = vmatpush1.msra.mxu0 %v3248
        %3341 = vmatprep.subr.mxu0 0.0
        %3342 = vmatpush1.msra.mxu0 %v3249
        %3343 = vmatprep.subr.mxu0 0.0
        %3344 = vmatpush1.msra.mxu0 0.0
        %3345 = vmatprep.subr.mxu0 0.0
        %3346 = vmatpush1.msra.mxu0 0.0
        %3347 = vmatprep.subr.mxu0 0.0
        %3348 = vmatpush1.msra.mxu0 0.0
        %3349 = vmatprep.subr.mxu0 0.0
        %3350 = vmatpush1.msra.mxu0 0.0
        %3351 = vmatprep.subr.mxu0 0.0
        %3352 = vmatpush1.msra.mxu0 0.0
        %3353 = vmatprep.subr.mxu0 0.0
        %3354 = vmatpush1.msra.mxu0 0.0
        %3355 = vmatprep.subr.mxu0 0.0
        %3356 = vmatpush1.msra.mxu0 0.0
        %3357 = vmatprep.subr.mxu0 0.0
        %3358 = vmatpush1.msra.mxu0 0.0
        %3359 = vmatprep.subr.mxu0 0.0
        %3360 = vmatpush1.msra.mxu0 0.0
        %3361 = vmatprep.subr.mxu0 0.0
        %3362 = vmatpush1.msra.mxu0 0.0
        %3363 = vmatprep.subr.mxu0 0.0
        %3364 = vmatpush1.msra.mxu0 0.0
        %3365 = vmatprep.subr.mxu0 0.0
        %3366 = vmatpush1.msra.mxu0 0.0
        %3367 = vmatprep.subr.mxu0 0.0
        %3368 = vmatpush1.msra.mxu0 0.0
        %3369 = vmatprep.subr.mxu0 0.0
        %3370 = vmatpush1.msra.mxu0 0.0
        %3371 = vmatprep.subr.mxu0 0.0
        %3372 = vmatpush1.msra.mxu0 0.0
        %3373 = vmatprep.subr.mxu0 0.0
        %3374 = vmatpush1.msra.mxu0 0.0
        %3375 = vmatprep.subr.mxu0 0.0
        %3376 = vmatpush1.msra.mxu0 0.0
        %3377 = vmatprep.subr.mxu0 0.0
        %3378 = vmatpush1.msra.mxu0 0.0
        %3379 = vmatprep.subr.mxu0 0.0
        %3380 = vmatpush1.msra.mxu0 0.0
        %3381 = vmatprep.subr.mxu0 0.0
        %3382 = vmatpush1.msra.mxu0 0.0
        %3383 = vmatprep.subr.mxu0 0.0
        %3384 = vmatpush1.msra.mxu0 0.0
        %3385 = vmatprep.subr.mxu0 0.0
        %3386 = vmatpush1.msra.mxu0 0.0
        %3387 = vmatprep.subr.mxu0 0.0
        %3388 = vmatpush1.msra.mxu0 0.0
        %3389 = vmatprep.subr.mxu0 0.0
        %3390 = vmatpush1.msra.mxu0 0.0
        %3391 = vmatprep.subr.mxu0 0.0
        %3392 = vmatpush1.msra.mxu0 0.0
        %3393 = vmatprep.subr.mxu0 0.0
        %3394 = vmatpush1.msra.mxu0 0.0
        %3395 = vmatprep.subr.mxu0 0.0
        %3396 = vmatpush1.msra.mxu0 0.0
        %3397 = vmatprep.subr.mxu0 0.0
        %3398 = vmatpush1.msra.mxu0 0.0
        %3399 = vmatprep.mubr.f32.mxu0 0.0
        %3400 = vmatmul.mubr.f32.gmra.mrb[0].mxu0 %v3333
        %v3401 = vpop.f32.mrb[0].mxu0
        %v3402 = vadd.f32 %v3328, %v3401
        %v3403 = vpop.f32.mrb[0].mxu0
        %3404 = vdwg.mxu0
        %v3405 = vld [vmem:[#allocation11] sm:$0x1]
        %v3406 = vadd.f32 %v3402, %v3405
        %v3407 = vmax.f32 %v3406, 0.0
        %v3408 = vld [vmem:[%s16] sm:$0xff]
        %v3409 = vld [vmem:[%s16 + $0x8] sm:$0xff]
        %v3410 = vld [vmem:[%s16 + $0x10] sm:$0xff]
        %v3411 = vld [vmem:[%s16 + $0x18] sm:$0xff]
        %v3412 = vld [vmem:[#allocation13] sm:$0x1]
        %v3414 = vsel %vm3331, %v3407, 0
        %3416 = vmatprep.subr.mxu0 0.0
        %3417 = vmatpush1.msra.mxu0 %v3408
        %3418 = vmatprep.subr.mxu0 0.0
        %3419 = vmatpush1.msra.mxu0 %v3409
        %3420 = vmatprep.subr.mxu0 0.0
        %3421 = vmatpush1.msra.mxu0 %v3410
        %3422 = vmatprep.subr.mxu0 0.0
        %3423 = vmatpush1.msra.mxu0 %v3411
        %3424 = vmatprep.subr.mxu0 0.0
        %3425 = vmatpush1.msra.mxu0 0.0
        %3426 = vmatprep.subr.mxu0 0.0
        %3427 = vmatpush1.msra.mxu0 0.0
        %3428 = vmatprep.subr.mxu0 0.0
        %3429 = vmatpush1.msra.mxu0 0.0
        %3430 = vmatprep.subr.mxu0 0.0
        %3431 = vmatpush1.msra.mxu0 0.0
        %3432 = vmatprep.subr.mxu0 0.0
        %3433 = vmatpush1.msra.mxu0 0.0
        %3434 = vmatprep.subr.mxu0 0.0
        %3435 = vmatpush1.msra.mxu0 0.0
        %3436 = vmatprep.subr.mxu0 0.0
        %3437 = vmatpush1.msra.mxu0 0.0
        %3438 = vmatprep.subr.mxu0 0.0
        %3439 = vmatpush1.msra.mxu0 0.0
        %3440 = vmatprep.subr.mxu0 0.0
        %3441 = vmatpush1.msra.mxu0 0.0
        %3442 = vmatprep.subr.mxu0 0.0
        %3443 = vmatpush1.msra.mxu0 0.0
        %3444 = vmatprep.subr.mxu0 0.0
        %3445 = vmatpush1.msra.mxu0 0.0
        %3446 = vmatprep.subr.mxu0 0.0
        %3447 = vmatpush1.msra.mxu0 0.0
        %3448 = vmatprep.subr.mxu0 0.0
        %3449 = vmatpush1.msra.mxu0 0.0
        %3450 = vmatprep.subr.mxu0 0.0
        %3451 = vmatpush1.msra.mxu0 0.0
        %3452 = vmatprep.subr.mxu0 0.0
        %3453 = vmatpush1.msra.mxu0 0.0
        %3454 = vmatprep.subr.mxu0 0.0
        %3455 = vmatpush1.msra.mxu0 0.0
        %3456 = vmatprep.subr.mxu0 0.0
        %3457 = vmatpush1.msra.mxu0 0.0
        %3458 = vmatprep.subr.mxu0 0.0
        %3459 = vmatpush1.msra.mxu0 0.0
        %3460 = vmatprep.subr.mxu0 0.0
        %3461 = vmatpush1.msra.mxu0 0.0
        %3462 = vmatprep.subr.mxu0 0.0
        %3463 = vmatpush1.msra.mxu0 0.0
        %3464 = vmatprep.subr.mxu0 0.0
        %3465 = vmatpush1.msra.mxu0 0.0
        %3466 = vmatprep.subr.mxu0 0.0
        %3467 = vmatpush1.msra.mxu0 0.0
        %3468 = vmatprep.subr.mxu0 0.0
        %3469 = vmatpush1.msra.mxu0 0.0
        %3470 = vmatprep.subr.mxu0 0.0
        %3471 = vmatpush1.msra.mxu0 0.0
        %3472 = vmatprep.subr.mxu0 0.0
        %3473 = vmatpush1.msra.mxu0 0.0
        %3474 = vmatprep.subr.mxu0 0.0
        %3475 = vmatpush1.msra.mxu0 0.0
        %3476 = vmatprep.subr.mxu0 0.0
        %3477 = vmatpush1.msra.mxu0 0.0
        %3478 = vmatprep.subr.mxu0 0.0
        %3479 = vmatpush1.msra.mxu0 0.0
        %3480 = vmatprep.mubr.f32.mxu0 0.0
        %3481 = vmatmul.mubr.f32.gmra.mrb[0].mxu0 %v3414
        %v3482 = vpop.f32.mrb[0].mxu0
        %v3483 = vadd.f32 %v3412, %v3482
        %v3484 = vpop.f32.mrb[0].mxu0
        %3485 = vdwg.mxu0
        %vm3486 = vcmask 122880
        %3487 = vst.msk [vmem:[%s676] sm:$0x1] %vm3486, %v3483
        %s3488 = sand.u32 %s432, 1
        %s3489 = scalar_lea.sflag [#allocation4], %s3488
        %s3490 = sand.u32 %s432, 1
        %s3491 = scalar_lea.vmem [#allocation14], %s3490
        // Predicated region
        $region121: #{_forward.1} parent=91 // pred_check
          %p3492 = pneg %p442
        $region122: #{_forward.1} parent=91 // pred_check_branch
          %3494 = sbr.rel (%p3492) target = $region124
        $region123: #{_forward.1} parent=91 // pred_region
          %s3496 = ssub.s32 16, 16
          %3497 = vsyncadd %s3489, %s3496
          %s3498 = smul.addr %s36, 16
          %s3499 = scalar_lea.hbm %s18, %s3498
          %s3501 = sshll.u32 %s3491, 4
          %s3502 = int_to_ptr.vmem [resolvable:$true] %s3501
          %3504 = dma.vmem_to_hbm [thread:$0]  %s3502, 16, %s3499, %s3489
        $region124: #{_forward.1} parent=91 // pred_fallthru
          _
      $region92: #{_forward.1} parent=5 // pred_fallthru
        _
      %p3505 = scmp.le.s32.totalorder 2, %s31
      // Predicated region
      $region125: #{_forward.1} parent=5 // pred_check
        %p3506 = pneg %p3505
      $region126: #{_forward.1} parent=5 // pred_check_branch
        %3508 = sbr.rel (%p3506) target = $region128
      $region127: #{_forward.1} parent=5 // pred_region
        %s3509 = ssub.s32 %s31, 2
        // Predicated region
        $region129: #{_forward.1} parent=127 // pred_check
          %p3510 = pneg %p448
        $region130: #{_forward.1} parent=127 // pred_check_branch
          %3512 = sbr.rel (%p3510) target = $region132
        $region131: #{_forward.1} parent=127 // pred_region
          %s3513 = sand.u32 %s433, 1
          %s3514 = scalar_lea.sflag [#allocation4], %s3513
          %s3515 = sand.u32 %s433, 1
          %s3516 = scalar_lea.vmem [#allocation14], %s3515
          %3517 = dma.done %s3514, 16
        $region132: #{_forward.1} parent=127 // pred_fallthru
          _
      $region128: #{_forward.1} parent=5 // pred_fallthru
        _
    $region6: #{_forward.1} parent=1 // loop_footer
      %s35 = sadd.s32 1, %s31
    $region7: #{_forward.1} parent=1 // loop_footer_branch
      %30 = sbr.rel target = $region3
    $region8: #{_forward.1} parent=1 // loop_exit
      _
    %3518 = vsyncpa [#allocation3], 1
    %s3519 = scalar_lea.sflag [#allocation3], 1
    %3520 = vsyncpa %s3519, 1
    %3521 = vsyncpa [#allocation6], 1
    %3522 = vsyncpa [#allocation9], 1
    %3523 = vsyncpa [#allocation12], 1
    %3524 = vsyncpa [#allocation4], 1
    %s3525 = scalar_lea.sflag [#allocation4], 1
    %3526 = vsyncpa %s3525, 1

</llo_original>
